<compile_context>
chip_gen: v7x
topology: tpu7x:2x2x1
jax: 0.10.0
libtpu: 0.0.40
codegen_flags: <defaults>
</compile_context>

<pallas_src>
import functools

import jax
import jax.numpy as jnp
from jax import lax
from jax.experimental import pallas as pl
from jax.experimental.pallas import tpu as pltpu

_LANE = 128


def _round_up(n, m):
  return ((n + m - 1) // m) * m


def _vmem_capacity_bytes():
  try:
    return int(pltpu.get_tpu_info().vmem_capacity_bytes)
  except Exception:  # conservative fallback (v7x-sized) if the query fails
    return 64 * 1024 * 1024


_VMEM_CAP = _vmem_capacity_bytes()


def _tile_footprint_bytes(TH, W, Cp, C1p):
  """Rough per-grid-step VMEM footprint (double-buffered IO + scratch + temps)."""
  R = TH * W
  bf, f32 = 2, 4
  io = 2 * R * Cp * bf               # interior input block (double buffered)
  io += 2 * 2 * W * Cp * bf          # halo block
  io += 2 * R * Cp * bf              # output block (bf16)
  wts = (Cp * C1p + 9 * C1p * C1p + C1p * Cp) * bf + (2 * C1p + Cp) * f32
  scratch = (R + 2 * W) * 3 * C1p * bf   # conv2 kx-grouped, y-haloed input
  temps = 4 * R * C1p * f32              # h1 / conv2 partial sums / h3 temps
  return io + 2 * wts + scratch + temps


def _choose_row_tile(H, W, Cp, C1p, vmem_cap):
  """Largest row tile TH (TH | H, sublane-aligned) whose footprint fits VMEM."""
  budget = int(0.55 * vmem_cap)
  divisors = [d for d in range(1, H + 1)
              if H % d == 0 and ((d * W) % 8 == 0 or d == H)]
  for th in sorted(divisors, reverse=True):
    if _tile_footprint_bytes(th, W, Cp, C1p) <= budget:
      return th
  return min(divisors)


def _bottleneck_kernel(x_ref, xh_ref, w1_ref, b1_ref, w2_ref, b2_ref, w3_ref,
                       b3_ref, o_ref, buf_ref, *, TH, W, nt):
  """One (image, row-tile) per grid step. Lane-dense 2-D slabs.

  Shapes (channels padded to multiples of 128):
    x_ref  : (TH*W, Cp)        bf16   interior rows of this tile (NHWC-flat)
    xh_ref : (2*W, Cp)         bf16   y-halo rows: [row above tile; row below]
    w1_ref : (Cp, C1p)         bf16   folded conv1+bn1 (1x1)
    b1_ref : (1, C1p)          f32
    w2_ref : (3, 3*C1p, C1p)   bf16   folded conv2+bn2, kx taps grouped along K
    b2_ref : (1, C1p)          f32
    w3_ref : (C1p, Cp)         bf16   folded conv3+bn3 (1x1)
    b3_ref : (1, Cp)           f32
    o_ref  : (TH*W, Cp)        bf16
    buf_ref: ((TH+2)*W, 3*C1p) bf16   y-haloed, kx-grouped conv2 input (scratch)
  """
  t = pl.program_id(1)
  R = TH * W
  C1p = w2_ref.shape[-1]

  # ---- conv1 (1x1) + bn1 + relu on interior and halo rows ------------------
  h1 = jnp.dot(x_ref[...], w1_ref[...], preferred_element_type=jnp.float32)
  h1 = jnp.maximum(h1 + b1_ref[...], 0.0)                    # (R, C1p)  f32
  h1h = jnp.dot(xh_ref[...], w1_ref[...], preferred_element_type=jnp.float32)
  h1h = jnp.maximum(h1h + b1_ref[...], 0.0)                  # (2W, C1p) f32

  # ---- x-direction boundary masks, (rows, 1): cheap VPU, lane-broadcast ----
  xi = lax.broadcasted_iota(jnp.int32, (R, 1), 0) % W
  lm_i = (xi != 0).astype(jnp.float32)
  rm_i = (xi != W - 1).astype(jnp.float32)
  xh = lax.broadcasted_iota(jnp.int32, (2 * W, 1), 0) % W
  lm_h = (xh != 0).astype(jnp.float32)
  rm_h = (xh != W - 1).astype(jnp.float32)

  # ---- assemble kx-grouped, y-haloed conv2 input in VMEM scratch -----------
  # buf[(1 + y)*W + x, kx*C1p + c] == h1_global[tile_row0 + y, x + kx - 1, c]
  # (zero outside the image).  Rolls run on the XLU; the masks kill the
  # row wrap-around contamination at x == 0 / x == W-1.
  buf_ref[W:W + R, 0:C1p] = (pltpu.roll(h1, shift=1, axis=0)
                             * lm_i).astype(jnp.bfloat16)
  buf_ref[W:W + R, C1p:2 * C1p] = h1.astype(jnp.bfloat16)
  buf_ref[W:W + R, 2 * C1p:] = (pltpu.roll(h1, shift=R - 1, axis=0)
                                * rm_i).astype(jnp.bfloat16)

  h1h_l = (pltpu.roll(h1h, shift=1, axis=0) * lm_h).astype(jnp.bfloat16)
  h1h_c = h1h.astype(jnp.bfloat16)
  h1h_r = (pltpu.roll(h1h, shift=2 * W - 1, axis=0) * rm_h).astype(jnp.bfloat16)
  buf_ref[0:W, 0:C1p] = h1h_l[0:W]               # y = -1 halo row
  buf_ref[0:W, C1p:2 * C1p] = h1h_c[0:W]
  buf_ref[0:W, 2 * C1p:] = h1h_r[0:W]
  buf_ref[W + R:, 0:C1p] = h1h_l[W:]             # y = TH halo row
  buf_ref[W + R:, C1p:2 * C1p] = h1h_c[W:]
  buf_ref[W + R:, 2 * C1p:] = h1h_r[W:]

  # conv2 zero-pads the *activations*: out-of-image halo rows must be exactly
  # zero (not relu(b1) of the zero-padded x halo rows).
  @pl.when(t == 0)
  def _():
    buf_ref[0:W, :] = jnp.zeros((W, 3 * C1p), jnp.bfloat16)

  @pl.when(t == nt - 1)
  def _():
    buf_ref[W + R:, :] = jnp.zeros((W, 3 * C1p), jnp.bfloat16)

  # ---- conv2 (3x3, pad 1) + bn2 + relu : 3 fat matmuls, K = 3*C1p ----------
  # TODO(synk): fuse into one K=9*C1p matmul on v7x/v6e when VMEM allows.
  d0 = jnp.dot(buf_ref[0:R, :], w2_ref[0], preferred_element_type=jnp.float32)
  d1 = jnp.dot(buf_ref[W:W + R, :], w2_ref[1],
               preferred_element_type=jnp.float32)
  d2 = jnp.dot(buf_ref[2 * W:2 * W + R, :], w2_ref[2],
               preferred_element_type=jnp.float32)
  h2 = jnp.maximum(d0 + d1 + d2 + b2_ref[...], 0.0).astype(jnp.bfloat16)

  # ---- conv3 (1x1) + bn3, residual add, final relu (f32 math, bf16 store) --
  h3 = jnp.dot(h2, w3_ref[...], preferred_element_type=jnp.float32)
  # Re-read the VMEM-resident input tile here (short live range) instead of
  # keeping the conv1 load alive across the conv2 assembly.
  h3 = h3 + b3_ref[...] + x_ref[...].astype(jnp.float32)
  o_ref[...] = jnp.maximum(h3, 0.0).astype(jnp.bfloat16)


def _fold_bn(w_oihw, gamma, beta, mean, var, eps=1e-5):
  """Fold eval-mode BatchNorm into a conv weight (PyTorch OIHW layout)."""
  scale = gamma / jnp.sqrt(var + eps)
  return w_oihw * scale[:, None, None, None], beta - mean * scale


def prepare_params(params):
  """Fold eval-mode BN into conv weights and pack/pad them for the kernel."""
  w1, b1 = _fold_bn(params["conv1_w"], *params["bn1"])       # (C1, Cin, 1, 1)
  w2, b2 = _fold_bn(params["conv2_w"], *params["bn2"])       # (C1, C1, 3, 3)
  w3, b3 = _fold_bn(params["conv3_w"], *params["bn3"])       # (C3, C1, 1, 1)
  C1, Cin = w1.shape[0], w1.shape[1]
  C3 = w3.shape[0]
  assert C3 == Cin, "identity residual requires C3 == Cin (stride=1, no downsample)"

  Cp = _round_up(Cin, _LANE)
  C1p = _round_up(C1, _LANE)

  w1t = jnp.transpose(w1[:, :, 0, 0], (1, 0))
  w1t = jnp.pad(w1t, ((0, Cp - Cin), (0, C1p - C1))).astype(jnp.bfloat16)
  b1p = jnp.pad(b1, (0, C1p - C1)).reshape(1, C1p).astype(jnp.float32)

  w2t = jnp.transpose(w2, (2, 3, 1, 0))                      # (ky, kx, cin, cout)
  w2t = jnp.pad(w2t, ((0, 0), (0, 0), (0, C1p - C1), (0, C1p - C1)))
  w2g = w2t.reshape(3, 3 * C1p, C1p).astype(jnp.bfloat16)
  b2p = jnp.pad(b2, (0, C1p - C1)).reshape(1, C1p).astype(jnp.float32)

  w3t = jnp.transpose(w3[:, :, 0, 0], (1, 0))
  w3t = jnp.pad(w3t, ((0, C1p - C1), (0, Cp - C3))).astype(jnp.bfloat16)
  b3p = jnp.pad(b3, (0, Cp - C3)).reshape(1, Cp).astype(jnp.float32)
  return (w1t, b1p, w2g, b2p, w3t, b3p)


@functools.partial(jax.jit, static_argnames=("row_tile",))
def bottleneck_forward_padded(x_pad, packed, *, row_tile=None):
  """Fused Bottleneck on a channels-last, channel-padded bf16 activation.

  x_pad : (N, H, W, Cp) bf16, Cp a multiple of 128 (padding channels zero).
  Returns (N, H, W, Cp) bf16 — chain this between blocks to avoid per-block
  NCHW<->NHWC transpose / pad / slice HBM passes.
  """
  w1t, b1p, w2g, b2p, w3t, b3p = packed
  N, H, W, Cp = x_pad.shape
  C1p = w2g.shape[-1]
  HW = H * W

  TH = row_tile if row_tile is not None else _choose_row_tile(
      H, W, Cp, C1p, _VMEM_CAP)
  assert H % TH == 0 and ((TH * W) % 8 == 0 or TH == H)
  nt = H // TH
  R = TH * W

  # y-halo rows for every tile, gathered once in the wrapper (2 rows per tile:
  # the image row above the tile and the image row below it; zeros at edges).
  xp = jnp.pad(x_pad, ((0, 0), (1, 1), (0, 0), (0, 0)))
  tops = xp[:, 0:H - TH + 1:TH]                      # (N, nt, W, Cp)
  bots = xp[:, TH + 1:H + 2:TH]                      # (N, nt, W, Cp)
  halo = jnp.concatenate([tops, bots], axis=2).reshape(N, nt, 2 * W, Cp)

  x_flat = x_pad.reshape(N, HW, Cp)

  kernel = functools.partial(_bottleneck_kernel, TH=TH, W=W, nt=nt)
  full = lambda shape: pl.BlockSpec(shape, lambda n, t: (0,) * len(shape))

  fp = _tile_footprint_bytes(TH, W, Cp, C1p)
  vmem_limit = min(int(0.8 * _VMEM_CAP), 100 * 1024 * 1024,
                   max(2 * fp, 48 * 1024 * 1024))

  out_flat = pl.pallas_call(
      kernel,
      out_shape=jax.ShapeDtypeStruct((N, HW, Cp), jnp.bfloat16),
      grid_spec=pltpu.PrefetchScalarGridSpec(
          num_scalar_prefetch=0,
          grid=(N, nt),
          in_specs=[
              pl.BlockSpec((None, R, Cp), lambda n, t: (n, t, 0)),
              pl.BlockSpec((None, None, 2 * W, Cp), lambda n, t: (n, t, 0, 0)),
              full(w1t.shape), full(b1p.shape),
              full(w2g.shape), full(b2p.shape),
              full(w3t.shape), full(b3p.shape),
          ],
          out_specs=pl.BlockSpec((None, R, Cp), lambda n, t: (n, t, 0)),
          scratch_shapes=[
              pltpu.VMEM(((TH + 2) * W, 3 * C1p), jnp.bfloat16),
          ],
      ),
      compiler_params=pltpu.CompilerParams(
          dimension_semantics=("parallel", "parallel"),
          vmem_limit_bytes=vmem_limit),
  )(x_flat, halo, w1t, b1p, w2g, b2p, w3t, b3p)

  return out_flat.reshape(N, H, W, Cp)


@functools.partial(jax.jit, static_argnames=("row_tile",))
def bottleneck_forward(x_nchw, params, *, row_tile=None):
  """PyTorch-layout convenience wrapper: (N, Cin, H, W) f32 -> (N, C3, H, W) f32."""
  N, Cin, H, W = x_nchw.shape
  packed = prepare_params(params)
  Cp = packed[0].shape[0]
  C3 = params["conv3_w"].shape[0]

  x = jnp.transpose(x_nchw, (0, 2, 3, 1))
  x = jnp.pad(x, ((0, 0), (0, 0), (0, 0), (0, Cp - Cin))).astype(jnp.bfloat16)

  out = bottleneck_forward_padded(x, packed, row_tile=row_tile)
  if Cp != C3:       # real ResNet stages (C3 in {256,512,1024,2048}) skip this
    out = out[:, :, :, :C3]
  return jnp.transpose(out, (0, 3, 1, 2)).astype(jnp.float32)


def _reference_forward(x_nchw, params):
  """Pure-JAX f32 reference (un-fused conv + eval-mode BN) for validation."""
  def conv(x, w, stride, padding):
    return lax.conv_general_dilated(
        x, w, window_strides=(stride, stride), padding=padding,
        dimension_numbers=("NCHW", "OIHW", "NCHW"))

  def bn(x, p, eps=1e-5):
    g, b, m, v = p
    s = g / jnp.sqrt(v + eps)
    return x * s[None, :, None, None] + (b - m * s)[None, :, None, None]

  out = jax.nn.relu(bn(conv(x_nchw, params["conv1_w"], 1, "VALID"), params["bn1"]))
  out = jax.nn.relu(bn(conv(out, params["conv2_w"], 1, [(1, 1), (1, 1)]), params["bn2"]))
  out = bn(conv(out, params["conv3_w"], 1, "VALID"), params["bn3"])
  return jax.nn.relu(out + x_nchw)


def _init_params(key, inplanes, planes):
  expansion = 4
  c3 = planes * expansion
  ks = jax.random.split(key, 9)
  return {
      "conv1_w": jax.random.normal(ks[0], (planes, inplanes, 1, 1), jnp.float32) * 0.1,
      "conv2_w": jax.random.normal(ks[1], (planes, planes, 3, 3), jnp.float32) * 0.1,
      "conv3_w": jax.random.normal(ks[2], (c3, planes, 1, 1), jnp.float32) * 0.1,
      # BN params: (gamma, beta, running_mean, running_var)
      "bn1": (1.0 + 0.1 * jax.random.normal(ks[3], (planes,), jnp.float32),
              0.1 * jax.random.normal(ks[4], (planes,), jnp.float32),
              0.05 * jax.random.normal(ks[5], (planes,), jnp.float32),
              jnp.abs(1.0 + 0.1 * jax.random.normal(ks[6], (planes,), jnp.float32))),
      "bn2": (jnp.ones((planes,), jnp.float32),
              jnp.zeros((planes,), jnp.float32),
              jnp.zeros((planes,), jnp.float32),
              jnp.ones((planes,), jnp.float32)),
      "bn3": (1.0 + 0.1 * jax.random.normal(ks[7], (c3,), jnp.float32),
              0.1 * jax.random.normal(ks[8], (c3,), jnp.float32),
              jnp.zeros((c3,), jnp.float32),
              jnp.ones((c3,), jnp.float32)),
  }


if __name__ == "__main__":
  # Small shapes: inplanes = planes * expansion so the identity residual is
  # valid (stride=1, downsample=None, exactly as the default Bottleneck args).
  N, inplanes, planes, H, W = 2, 16, 4, 16, 16

  key = jax.random.PRNGKey(0)
  k_x, k_p = jax.random.split(key)
  x = jax.random.normal(k_x, (N, inplanes, H, W), jnp.float32)
  params = _init_params(k_p, inplanes, planes)

  ref = _reference_forward(x, params)

  # Auto-chosen row tile (whole image at these tiny shapes).
  out = jax.block_until_ready(bottleneck_forward(x, params))
  assert out.shape == (N, planes * 4, H, W)
  # bf16 MXU operands + bf16 activations/output (f32 accumulation) => loosened
  # tolerance vs the f32 reference.
  assert jnp.allclose(out, ref, atol=5e-2, rtol=5e-2), \
      f"max abs err {jnp.max(jnp.abs(out - ref))}"

  # Forced multi-tile path: exercises the row-tiled grid + y-halo logic
  # (the configuration used for large feature maps / v7x VMEM limits).
  out_tiled = jax.block_until_ready(bottleneck_forward(x, params, row_tile=4))
  assert jnp.allclose(out_tiled, ref, atol=5e-2, rtol=5e-2), \
      f"max abs err (tiled) {jnp.max(jnp.abs(out_tiled - ref))}"

  print("KERNEL_OK")
</pallas_src>

<mosaic_0001>
module attributes {stable_mosaic.version = 11 : i64} {
  func.func @_bottleneck_kernel(%arg0: i32, %arg1: i32, %arg2: memref<1x256x128xbf16, #tpu.memory_space<vmem>>, %arg3: memref<1x1x32x128xbf16, #tpu.memory_space<vmem>>, %arg4: memref<128x128xbf16, #tpu.memory_space<vmem>>, %arg5: memref<1x128xf32, #tpu.memory_space<vmem>>, %arg6: memref<3x384x128xbf16, #tpu.memory_space<vmem>>, %arg7: memref<1x128xf32, #tpu.memory_space<vmem>>, %arg8: memref<128x128xbf16, #tpu.memory_space<vmem>>, %arg9: memref<1x128xf32, #tpu.memory_space<vmem>>, %arg10: memref<1x256x128xbf16, #tpu.memory_space<vmem>>, %arg11: memref<288x384xbf16, #tpu.memory_space<vmem>>) attributes {dimension_semantics = [#tpu.dimension_semantics<parallel>, #tpu.dimension_semantics<parallel>], iteration_bounds = array<i64: 2, 1>, scalar_prefetch = 0 : i64, scratch_operands = 1 : i64, tpu.core_type = #tpu.core_type<tc>, window_params = [{transform_indices = @transform_0, window_bounds = array<i64: 1, 256, 128>}, {transform_indices = @transform_1, window_bounds = array<i64: 1, 1, 32, 128>}, {pipeline_mode = #tpu.pipeline_mode<synchronous>, transform_indices = @transform_2, window_bounds = array<i64: 128, 128>}, {pipeline_mode = #tpu.pipeline_mode<synchronous>, transform_indices = @transform_3, window_bounds = array<i64: 1, 128>}, {pipeline_mode = #tpu.pipeline_mode<synchronous>, transform_indices = @transform_4, window_bounds = array<i64: 3, 384, 128>}, {pipeline_mode = #tpu.pipeline_mode<synchronous>, transform_indices = @transform_5, window_bounds = array<i64: 1, 128>}, {pipeline_mode = #tpu.pipeline_mode<synchronous>, transform_indices = @transform_6, window_bounds = array<i64: 128, 128>}, {pipeline_mode = #tpu.pipeline_mode<synchronous>, transform_indices = @transform_7, window_bounds = array<i64: 1, 128>}, {transform_indices = @transform_8, window_bounds = array<i64: 1, 256, 128>}]} {
    %c0 = arith.constant 0 : index
    %c0_0 = arith.constant 0 : index
    %c0_1 = arith.constant 0 : index
    %0 = vector.load %arg2[%c0, %c0_0, %c0_1] : memref<1x256x128xbf16, #tpu.memory_space<vmem>>, vector<1x256x128xbf16>
    %1 = vector.shape_cast %0 : vector<1x256x128xbf16> to vector<256x128xbf16>
    %c0_2 = arith.constant 0 : index
    %c0_3 = arith.constant 0 : index
    %2 = vector.load %arg4[%c0_2, %c0_3] : memref<128x128xbf16, #tpu.memory_space<vmem>>, vector<128x128xbf16>
    %cst = arith.constant dense<0.000000e+00> : vector<256x128xf32>
    %3 = tpu.matmul %1, %2, %cst {dimension_numbers = #tpu.dot_dimension_numbers<[1], [0], [0], [1], [0, 0, 1, 1], [], []>} : vector<256x128xbf16>, vector<128x128xbf16>, vector<256x128xf32> -> vector<256x128xf32>
    %c0_4 = arith.constant 0 : index
    %c0_5 = arith.constant 0 : index
    %4 = vector.load %arg5[%c0_4, %c0_5] : memref<1x128xf32, #tpu.memory_space<vmem>>, vector<1x128xf32>
    %5 = vector.broadcast %4 : vector<1x128xf32> to vector<256x128xf32>
    %6 = arith.addf %3, %5 : vector<256x128xf32>
    %cst_6 = arith.constant 0.000000e+00 : f32
    %7 = vector.broadcast %cst_6 : f32 to vector<256x128xf32>
    %8 = arith.maximumf %6, %7 : vector<256x128xf32>
    %c0_7 = arith.constant 0 : index
    %c0_8 = arith.constant 0 : index
    %c0_9 = arith.constant 0 : index
    %c0_10 = arith.constant 0 : index
    %9 = vector.load %arg3[%c0_7, %c0_8, %c0_9, %c0_10] : memref<1x1x32x128xbf16, #tpu.memory_space<vmem>>, vector<1x1x32x128xbf16>
    %10 = vector.shape_cast %9 : vector<1x1x32x128xbf16> to vector<32x128xbf16>
    %c0_11 = arith.constant 0 : index
    %c0_12 = arith.constant 0 : index
    %11 = vector.load %arg4[%c0_11, %c0_12] : memref<128x128xbf16, #tpu.memory_space<vmem>>, vector<128x128xbf16>
    %cst_13 = arith.constant dense<0.000000e+00> : vector<32x128xf32>
    %12 = tpu.matmul %10, %11, %cst_13 {dimension_numbers = #tpu.dot_dimension_numbers<[1], [0], [0], [1], [0, 0, 1, 1], [], []>} : vector<32x128xbf16>, vector<128x128xbf16>, vector<32x128xf32> -> vector<32x128xf32>
    %c0_14 = arith.constant 0 : index
    %c0_15 = arith.constant 0 : index
    %13 = vector.load %arg5[%c0_14, %c0_15] : memref<1x128xf32, #tpu.memory_space<vmem>>, vector<1x128xf32>
    %14 = vector.broadcast %13 : vector<1x128xf32> to vector<32x128xf32>
    %15 = arith.addf %12, %14 : vector<32x128xf32>
    %cst_16 = arith.constant 0.000000e+00 : f32
    %16 = vector.broadcast %cst_16 : f32 to vector<32x128xf32>
    %17 = arith.maximumf %15, %16 : vector<32x128xf32>
    %18 = tpu.iota {dimensions = array<i32: 0>} : vector<256x1xi32>
    %c16_i32 = arith.constant 16 : i32
    %c0_i32 = arith.constant 0 : i32
    %19 = arith.cmpi eq, %c16_i32, %c0_i32 : i32
    %c1_i32 = arith.constant 1 : i32
    %20 = arith.select %19, %c1_i32, %c16_i32 : i32
    %21 = vector.broadcast %20 : i32 to vector<256x1xi32>
    %22 = arith.remsi %18, %21 : vector<256x1xi32>
    %c0_i32_17 = arith.constant 0 : i32
    %23 = vector.broadcast %c0_i32_17 : i32 to vector<256x1xi32>
    %24 = arith.cmpi ne, %22, %23 : vector<256x1xi32>
    %c0_i32_18 = arith.constant 0 : i32
    %25 = vector.broadcast %c0_i32_18 : i32 to vector<256x1xi32>
    %26 = arith.cmpi slt, %22, %25 : vector<256x1xi32>
    %c0_i32_19 = arith.constant 0 : i32
    %27 = arith.cmpi slt, %20, %c0_i32_19 : i32
    %28 = vector.broadcast %27 : i1 to vector<256x1xi1>
    %29 = vector.broadcast %28 : vector<256x1xi1> to vector<256x1xi1>
    %30 = arith.xori %26, %29 : vector<256x1xi1>
    %31 = arith.andi %30, %24 : vector<256x1xi1>
    %32 = vector.broadcast %20 : i32 to vector<256x1xi32>
    %33 = arith.addi %22, %32 : vector<256x1xi32>
    %34 = arith.select %31, %33, %22 : vector<256x1xi1>, vector<256x1xi32>
    %c0_i32_20 = arith.constant 0 : i32
    %35 = vector.broadcast %c0_i32_20 : i32 to vector<256x1xi32>
    %36 = arith.cmpi ne, %34, %35 : vector<256x1xi32>
    %37 = arith.extui %36 : vector<256x1xi1> to vector<256x1xi32>
    %38 = arith.sitofp %37 : vector<256x1xi32> to vector<256x1xf32>
    %c15_i32 = arith.constant 15 : i32
    %39 = vector.broadcast %c15_i32 : i32 to vector<256x1xi32>
    %40 = arith.cmpi ne, %34, %39 : vector<256x1xi32>
    %41 = arith.extui %40 : vector<256x1xi1> to vector<256x1xi32>
    %42 = arith.sitofp %41 : vector<256x1xi32> to vector<256x1xf32>
    %43 = tpu.iota {dimensions = array<i32: 0>} : vector<32x1xi32>
    %c16_i32_21 = arith.constant 16 : i32
    %c0_i32_22 = arith.constant 0 : i32
    %44 = arith.cmpi eq, %c16_i32_21, %c0_i32_22 : i32
    %c1_i32_23 = arith.constant 1 : i32
    %45 = arith.select %44, %c1_i32_23, %c16_i32_21 : i32
    %46 = vector.broadcast %45 : i32 to vector<32x1xi32>
    %47 = arith.remsi %43, %46 : vector<32x1xi32>
    %c0_i32_24 = arith.constant 0 : i32
    %48 = vector.broadcast %c0_i32_24 : i32 to vector<32x1xi32>
    %49 = arith.cmpi ne, %47, %48 : vector<32x1xi32>
    %c0_i32_25 = arith.constant 0 : i32
    %50 = vector.broadcast %c0_i32_25 : i32 to vector<32x1xi32>
    %51 = arith.cmpi slt, %47, %50 : vector<32x1xi32>
    %c0_i32_26 = arith.constant 0 : i32
    %52 = arith.cmpi slt, %45, %c0_i32_26 : i32
    %53 = vector.broadcast %52 : i1 to vector<32x1xi1>
    %54 = vector.broadcast %53 : vector<32x1xi1> to vector<32x1xi1>
    %55 = arith.xori %51, %54 : vector<32x1xi1>
    %56 = arith.andi %55, %49 : vector<32x1xi1>
    %57 = vector.broadcast %45 : i32 to vector<32x1xi32>
    %58 = arith.addi %47, %57 : vector<32x1xi32>
    %59 = arith.select %56, %58, %47 : vector<32x1xi1>, vector<32x1xi32>
    %c0_i32_27 = arith.constant 0 : i32
    %60 = vector.broadcast %c0_i32_27 : i32 to vector<32x1xi32>
    %61 = arith.cmpi ne, %59, %60 : vector<32x1xi32>
    %62 = arith.extui %61 : vector<32x1xi1> to vector<32x1xi32>
    %63 = arith.sitofp %62 : vector<32x1xi32> to vector<32x1xf32>
    %c15_i32_28 = arith.constant 15 : i32
    %64 = vector.broadcast %c15_i32_28 : i32 to vector<32x1xi32>
    %65 = arith.cmpi ne, %59, %64 : vector<32x1xi32>
    %66 = arith.extui %65 : vector<32x1xi1> to vector<32x1xi32>
    %67 = arith.sitofp %66 : vector<32x1xi32> to vector<32x1xf32>
    %c1_i32_29 = arith.constant 1 : i32
    %68 = tpu.dynamic_rotate %8 by %c1_i32_29 dim 0 : vector<256x128xf32>, i32 -> vector<256x128xf32>
    %69 = vector.broadcast %38 : vector<256x1xf32> to vector<256x128xf32>
    %70 = arith.mulf %68, %69 : vector<256x128xf32>
    %71 = arith.truncf %70 : vector<256x128xf32> to vector<256x128xbf16>
    %c16 = arith.constant 16 : index
    %c0_30 = arith.constant 0 : index
    %72 = vector.load %arg11[%c16, %c0_30] : memref<288x384xbf16, #tpu.memory_space<vmem>>, vector<256x128xbf16>
    tpu.vector_store %arg11[%c16, %c0_30], %71 {strides = array<i32>} : memref<288x384xbf16, #tpu.memory_space<vmem>>, vector<256x128xbf16>,
    %73 = arith.truncf %8 : vector<256x128xf32> to vector<256x128xbf16>
    %c16_31 = arith.constant 16 : index
    %c128 = arith.constant 128 : index
    %74 = vector.load %arg11[%c16_31, %c128] : memref<288x384xbf16, #tpu.memory_space<vmem>>, vector<256x128xbf16>
    tpu.vector_store %arg11[%c16_31, %c128], %73 {strides = array<i32>} : memref<288x384xbf16, #tpu.memory_space<vmem>>, vector<256x128xbf16>,
    %c255_i32 = arith.constant 255 : i32
    %75 = tpu.dynamic_rotate %8 by %c255_i32 dim 0 : vector<256x128xf32>, i32 -> vector<256x128xf32>
    %76 = vector.broadcast %42 : vector<256x1xf32> to vector<256x128xf32>
    %77 = arith.mulf %75, %76 : vector<256x128xf32>
    %78 = arith.truncf %77 : vector<256x128xf32> to vector<256x128xbf16>
    %c16_32 = arith.constant 16 : index
    %c256 = arith.constant 256 : index
    %79 = vector.load %arg11[%c16_32, %c256] : memref<288x384xbf16, #tpu.memory_space<vmem>>, vector<256x128xbf16>
    tpu.vector_store %arg11[%c16_32, %c256], %78 {strides = array<i32>} : memref<288x384xbf16, #tpu.memory_space<vmem>>, vector<256x128xbf16>,
    %c1_i32_33 = arith.constant 1 : i32
    %80 = tpu.dynamic_rotate %17 by %c1_i32_33 dim 0 : vector<32x128xf32>, i32 -> vector<32x128xf32>
    %81 = vector.broadcast %63 : vector<32x1xf32> to vector<32x128xf32>
    %82 = arith.mulf %80, %81 : vector<32x128xf32>
    %83 = arith.truncf %82 : vector<32x128xf32> to vector<32x128xbf16>
    %84 = arith.truncf %17 : vector<32x128xf32> to vector<32x128xbf16>
    %c31_i32 = arith.constant 31 : i32
    %85 = tpu.dynamic_rotate %17 by %c31_i32 dim 0 : vector<32x128xf32>, i32 -> vector<32x128xf32>
    %86 = vector.broadcast %67 : vector<32x1xf32> to vector<32x128xf32>
    %87 = arith.mulf %85, %86 : vector<32x128xf32>
    %88 = arith.truncf %87 : vector<32x128xf32> to vector<32x128xbf16>
    %89 = vector.extract_strided_slice %83 {offsets = [0, 0], sizes = [16, 128], strides = [1, 1]} : vector<32x128xbf16> to vector<16x128xbf16>
    %c0_34 = arith.constant 0 : index
    %c0_35 = arith.constant 0 : index
    %90 = vector.load %arg11[%c0_34, %c0_35] : memref<288x384xbf16, #tpu.memory_space<vmem>>, vector<16x128xbf16>
    tpu.vector_store %arg11[%c0_34, %c0_35], %89 {strides = array<i32>} : memref<288x384xbf16, #tpu.memory_space<vmem>>, vector<16x128xbf16>,
    %91 = vector.extract_strided_slice %84 {offsets = [0, 0], sizes = [16, 128], strides = [1, 1]} : vector<32x128xbf16> to vector<16x128xbf16>
    %c0_36 = arith.constant 0 : index
    %c128_37 = arith.constant 128 : index
    %92 = vector.load %arg11[%c0_36, %c128_37] : memref<288x384xbf16, #tpu.memory_space<vmem>>, vector<16x128xbf16>
    tpu.vector_store %arg11[%c0_36, %c128_37], %91 {strides = array<i32>} : memref<288x384xbf16, #tpu.memory_space<vmem>>, vector<16x128xbf16>,
    %93 = vector.extract_strided_slice %88 {offsets = [0, 0], sizes = [16, 128], strides = [1, 1]} : vector<32x128xbf16> to vector<16x128xbf16>
    %c0_38 = arith.constant 0 : index
    %c256_39 = arith.constant 256 : index
    %94 = vector.load %arg11[%c0_38, %c256_39] : memref<288x384xbf16, #tpu.memory_space<vmem>>, vector<16x128xbf16>
    tpu.vector_store %arg11[%c0_38, %c256_39], %93 {strides = array<i32>} : memref<288x384xbf16, #tpu.memory_space<vmem>>, vector<16x128xbf16>,
    %95 = vector.extract_strided_slice %83 {offsets = [16, 0], sizes = [16, 128], strides = [1, 1]} : vector<32x128xbf16> to vector<16x128xbf16>
    %c272 = arith.constant 272 : index
    %c0_40 = arith.constant 0 : index
    %96 = vector.load %arg11[%c272, %c0_40] : memref<288x384xbf16, #tpu.memory_space<vmem>>, vector<16x128xbf16>
    tpu.vector_store %arg11[%c272, %c0_40], %95 {strides = array<i32>} : memref<288x384xbf16, #tpu.memory_space<vmem>>, vector<16x128xbf16>,
    %97 = vector.extract_strided_slice %84 {offsets = [16, 0], sizes = [16, 128], strides = [1, 1]} : vector<32x128xbf16> to vector<16x128xbf16>
    %c272_41 = arith.constant 272 : index
    %c128_42 = arith.constant 128 : index
    %98 = vector.load %arg11[%c272_41, %c128_42] : memref<288x384xbf16, #tpu.memory_space<vmem>>, vector<16x128xbf16>
    tpu.vector_store %arg11[%c272_41, %c128_42], %97 {strides = array<i32>} : memref<288x384xbf16, #tpu.memory_space<vmem>>, vector<16x128xbf16>,
    %99 = vector.extract_strided_slice %88 {offsets = [16, 0], sizes = [16, 128], strides = [1, 1]} : vector<32x128xbf16> to vector<16x128xbf16>
    %c272_43 = arith.constant 272 : index
    %c256_44 = arith.constant 256 : index
    %100 = vector.load %arg11[%c272_43, %c256_44] : memref<288x384xbf16, #tpu.memory_space<vmem>>, vector<16x128xbf16>
    tpu.vector_store %arg11[%c272_43, %c256_44], %99 {strides = array<i32>} : memref<288x384xbf16, #tpu.memory_space<vmem>>, vector<16x128xbf16>,
    %c0_i32_45 = arith.constant 0 : i32
    %101 = arith.cmpi eq, %arg1, %c0_i32_45 : i32
    %102 = arith.extui %101 : i1 to i32
    %c0_i32_46 = arith.constant 0 : i32
    %103 = arith.cmpi ne, %102, %c0_i32_46 : i32
    scf.if %103 {
      %cst_79 = arith.constant 0.000000e+00 : bf16
      %142 = vector.broadcast %cst_79 : bf16 to vector<16x384xbf16>
      %c0_80 = arith.constant 0 : index
      %c0_81 = arith.constant 0 : index
      %143 = vector.load %arg11[%c0_80, %c0_81] : memref<288x384xbf16, #tpu.memory_space<vmem>>, vector<16x384xbf16>
      tpu.vector_store %arg11[%c0_80, %c0_81], %142 {strides = array<i32>} : memref<288x384xbf16, #tpu.memory_space<vmem>>, vector<16x384xbf16>,
    } else {
    }
    %c0_i32_47 = arith.constant 0 : i32
    %104 = arith.cmpi eq, %arg1, %c0_i32_47 : i32
    %105 = arith.extui %104 : i1 to i32
    %c0_i32_48 = arith.constant 0 : i32
    %106 = arith.cmpi ne, %105, %c0_i32_48 : i32
    scf.if %106 {
      %cst_79 = arith.constant 0.000000e+00 : bf16
      %142 = vector.broadcast %cst_79 : bf16 to vector<16x384xbf16>
      %c272_80 = arith.constant 272 : index
      %c0_81 = arith.constant 0 : index
      %143 = vector.load %arg11[%c272_80, %c0_81] : memref<288x384xbf16, #tpu.memory_space<vmem>>, vector<16x384xbf16>
      tpu.vector_store %arg11[%c272_80, %c0_81], %142 {strides = array<i32>} : memref<288x384xbf16, #tpu.memory_space<vmem>>, vector<16x384xbf16>,
    } else {
    }
    %c0_49 = arith.constant 0 : index
    %c0_50 = arith.constant 0 : index
    %107 = vector.load %arg11[%c0_49, %c0_50] : memref<288x384xbf16, #tpu.memory_space<vmem>>, vector<256x384xbf16>
    %c0_51 = arith.constant 0 : index
    %c0_52 = arith.constant 0 : index
    %c0_53 = arith.constant 0 : index
    %108 = vector.load %arg6[%c0_51, %c0_52, %c0_53] : memref<3x384x128xbf16, #tpu.memory_space<vmem>>, vector<1x384x128xbf16>
    %109 = vector.shape_cast %108 : vector<1x384x128xbf16> to vector<384x128xbf16>
    %cst_54 = arith.constant dense<0.000000e+00> : vector<256x128xf32>
    %110 = tpu.matmul %107, %109, %cst_54 {dimension_numbers = #tpu.dot_dimension_numbers<[1], [0], [0], [1], [0, 0, 1, 1], [], []>} : vector<256x384xbf16>, vector<384x128xbf16>, vector<256x128xf32> -> vector<256x128xf32>
    %c16_55 = arith.constant 16 : index
    %c0_56 = arith.constant 0 : index
    %111 = vector.load %arg11[%c16_55, %c0_56] : memref<288x384xbf16, #tpu.memory_space<vmem>>, vector<256x384xbf16>
    %c1 = arith.constant 1 : index
    %c0_57 = arith.constant 0 : index
    %c0_58 = arith.constant 0 : index
    %112 = vector.load %arg6[%c1, %c0_57, %c0_58] : memref<3x384x128xbf16, #tpu.memory_space<vmem>>, vector<1x384x128xbf16>
    %113 = vector.shape_cast %112 : vector<1x384x128xbf16> to vector<384x128xbf16>
    %cst_59 = arith.constant dense<0.000000e+00> : vector<256x128xf32>
    %114 = tpu.matmul %111, %113, %cst_59 {dimension_numbers = #tpu.dot_dimension_numbers<[1], [0], [0], [1], [0, 0, 1, 1], [], []>} : vector<256x384xbf16>, vector<384x128xbf16>, vector<256x128xf32> -> vector<256x128xf32>
    %c32 = arith.constant 32 : index
    %c0_60 = arith.constant 0 : index
    %115 = vector.load %arg11[%c32, %c0_60] : memref<288x384xbf16, #tpu.memory_space<vmem>>, vector<256x384xbf16>
    %c2 = arith.constant 2 : index
    %c0_61 = arith.constant 0 : index
    %c0_62 = arith.constant 0 : index
    %116 = vector.load %arg6[%c2, %c0_61, %c0_62] : memref<3x384x128xbf16, #tpu.memory_space<vmem>>, vector<1x384x128xbf16>
    %117 = vector.shape_cast %116 : vector<1x384x128xbf16> to vector<384x128xbf16>
    %cst_63 = arith.constant dense<0.000000e+00> : vector<256x128xf32>
    %118 = tpu.matmul %115, %117, %cst_63 {dimension_numbers = #tpu.dot_dimension_numbers<[1], [0], [0], [1], [0, 0, 1, 1], [], []>} : vector<256x384xbf16>, vector<384x128xbf16>, vector<256x128xf32> -> vector<256x128xf32>
    %119 = arith.addf %110, %114 : vector<256x128xf32>
    %120 = arith.addf %119, %118 : vector<256x128xf32>
    %c0_64 = arith.constant 0 : index
    %c0_65 = arith.constant 0 : index
    %121 = vector.load %arg7[%c0_64, %c0_65] : memref<1x128xf32, #tpu.memory_space<vmem>>, vector<1x128xf32>
    %122 = vector.broadcast %121 : vector<1x128xf32> to vector<256x128xf32>
    %123 = arith.addf %120, %122 : vector<256x128xf32>
    %cst_66 = arith.constant 0.000000e+00 : f32
    %124 = vector.broadcast %cst_66 : f32 to vector<256x128xf32>
    %125 = arith.maximumf %123, %124 : vector<256x128xf32>
    %126 = arith.truncf %125 : vector<256x128xf32> to vector<256x128xbf16>
    %c0_67 = arith.constant 0 : index
    %c0_68 = arith.constant 0 : index
    %127 = vector.load %arg8[%c0_67, %c0_68] : memref<128x128xbf16, #tpu.memory_space<vmem>>, vector<128x128xbf16>
    %cst_69 = arith.constant dense<0.000000e+00> : vector<256x128xf32>
    %128 = tpu.matmul %126, %127, %cst_69 {dimension_numbers = #tpu.dot_dimension_numbers<[1], [0], [0], [1], [0, 0, 1, 1], [], []>} : vector<256x128xbf16>, vector<128x128xbf16>, vector<256x128xf32> -> vector<256x128xf32>
    %c0_70 = arith.constant 0 : index
    %c0_71 = arith.constant 0 : index
    %129 = vector.load %arg9[%c0_70, %c0_71] : memref<1x128xf32, #tpu.memory_space<vmem>>, vector<1x128xf32>
    %130 = vector.broadcast %129 : vector<1x128xf32> to vector<256x128xf32>
    %131 = arith.addf %128, %130 : vector<256x128xf32>
    %c0_72 = arith.constant 0 : index
    %c0_73 = arith.constant 0 : index
    %c0_74 = arith.constant 0 : index
    %132 = vector.load %arg2[%c0_72, %c0_73, %c0_74] : memref<1x256x128xbf16, #tpu.memory_space<vmem>>, vector<1x256x128xbf16>
    %133 = vector.shape_cast %132 : vector<1x256x128xbf16> to vector<256x128xbf16>
    %134 = arith.extf %133 : vector<256x128xbf16> to vector<256x128xf32>
    %135 = arith.addf %131, %134 : vector<256x128xf32>
    %cst_75 = arith.constant 0.000000e+00 : f32
    %136 = vector.broadcast %cst_75 : f32 to vector<256x128xf32>
    %137 = arith.maximumf %135, %136 : vector<256x128xf32>
    %138 = arith.truncf %137 : vector<256x128xf32> to vector<256x128xbf16>
    %c0_76 = arith.constant 0 : index
    %c0_77 = arith.constant 0 : index
    %c0_78 = arith.constant 0 : index
    %139 = vector.load %arg10[%c0_76, %c0_77, %c0_78] : memref<1x256x128xbf16, #tpu.memory_space<vmem>>, vector<1x256x128xbf16>
    %140 = vector.shape_cast %139 : vector<1x256x128xbf16> to vector<256x128xbf16>
    %141 = vector.shape_cast %138 : vector<256x128xbf16> to vector<1x256x128xbf16>
    tpu.vector_store %arg10[%c0_76, %c0_77, %c0_78], %141 {strides = array<i32>} : memref<1x256x128xbf16, #tpu.memory_space<vmem>>, vector<1x256x128xbf16>,
    return
  }
  func.func @transform_0(%arg0: i32, %arg1: i32) -> (i32, i32, i32) {
    %c0_i32 = arith.constant 0 : i32
    %c0_i32_0 = arith.constant 0 : i32
    return %arg0, %arg1, %c0_i32 : i32, i32, i32
  }
  func.func @transform_1(%arg0: i32, %arg1: i32) -> (i32, i32, i32, i32) {
    %c0_i32 = arith.constant 0 : i32
    %c0_i32_0 = arith.constant 0 : i32
    %c0_i32_1 = arith.constant 0 : i32
    return %arg0, %arg1, %c0_i32, %c0_i32_0 : i32, i32, i32, i32
  }
  func.func @transform_2(%arg0: i32, %arg1: i32) -> (i32, i32) {
    %c0_i32 = arith.constant 0 : i32
    %c0_i32_0 = arith.constant 0 : i32
    %c0_i32_1 = arith.constant 0 : i32
    return %c0_i32, %c0_i32_0 : i32, i32
  }
  func.func @transform_3(%arg0: i32, %arg1: i32) -> (i32, i32) {
    %c0_i32 = arith.constant 0 : i32
    %c0_i32_0 = arith.constant 0 : i32
    %c0_i32_1 = arith.constant 0 : i32
    return %c0_i32, %c0_i32_0 : i32, i32
  }
  func.func @transform_4(%arg0: i32, %arg1: i32) -> (i32, i32, i32) {
    %c0_i32 = arith.constant 0 : i32
    %c0_i32_0 = arith.constant 0 : i32
    %c0_i32_1 = arith.constant 0 : i32
    %c0_i32_2 = arith.constant 0 : i32
    return %c0_i32, %c0_i32_0, %c0_i32_1 : i32, i32, i32
  }
  func.func @transform_5(%arg0: i32, %arg1: i32) -> (i32, i32) {
    %c0_i32 = arith.constant 0 : i32
    %c0_i32_0 = arith.constant 0 : i32
    %c0_i32_1 = arith.constant 0 : i32
    return %c0_i32, %c0_i32_0 : i32, i32
  }
  func.func @transform_6(%arg0: i32, %arg1: i32) -> (i32, i32) {
    %c0_i32 = arith.constant 0 : i32
    %c0_i32_0 = arith.constant 0 : i32
    %c0_i32_1 = arith.constant 0 : i32
    return %c0_i32, %c0_i32_0 : i32, i32
  }
  func.func @transform_7(%arg0: i32, %arg1: i32) -> (i32, i32) {
    %c0_i32 = arith.constant 0 : i32
    %c0_i32_0 = arith.constant 0 : i32
    %c0_i32_1 = arith.constant 0 : i32
    return %c0_i32, %c0_i32_0 : i32, i32
  }
  func.func @transform_8(%arg0: i32, %arg1: i32) -> (i32, i32, i32) {
    %c0_i32 = arith.constant 0 : i32
    %c0_i32_0 = arith.constant 0 : i32
    return %arg0, %arg1, %c0_i32 : i32, i32, i32
  }
}

</mosaic_0001>

<llo_original>
// kernel: bottleneck_forward_padded.1
$region0: #{bottleneck_forward_padded.1}
  #allocation0 [shape = 'u32[]', space=smem, size = 0x4, offset = 0x4, fixed_abs, tag = 'smem constant byte address 0x4 - core index']
  #allocation1 [shape = 'u32[144,128]{1,0:T(1,128)}', space=vmem, size = 0x12000, scoped, tag = 'internal scratch']
  #allocation2 [shape = 'bf16[288,384]{1,0:T(16,128)(2,1)}', space=vmem, size = 0x36000, scoped, tag = 'scratch operand']
  %s0 = inlined_call_operand.hbm [shape: bf16[2,256,128], index: 0, kind: input, shape index: {}]
  %s1 = inlined_call_operand.vmem [shape: bf16[2,1,32,128], index: 1, kind: input, shape index: {}]
  %s2 = inlined_call_operand.hbm [shape: bf16[128,128], index: 2, kind: input, shape index: {}]
  %s3 = inlined_call_operand.vmem [shape: f32[1,128], index: 3, kind: input, shape index: {}]
  %s4 = inlined_call_operand.hbm [shape: bf16[3,384,128], index: 4, kind: input, shape index: {}]
  %s5 = inlined_call_operand.vmem [shape: f32[1,128], index: 5, kind: input, shape index: {}]
  %s6 = inlined_call_operand.hbm [shape: bf16[128,128], index: 6, kind: input, shape index: {}]
  %s7 = inlined_call_operand.vmem [shape: f32[1,128], index: 7, kind: input, shape index: {}]
  %s8 = inlined_call_operand.hbm [shape: bf16[2,256,128], index: 8, kind: output, shape index: {}]
  %s9 = sld [smem:[#allocation0]]
  $region85: #{bottleneck_forward_padded.1} parent=0
    _
  %s11 = ssub.s32 1, %s9
  %s12 = scalar_select 0, %s11, %s9
  $region1: #{bottleneck_forward_padded.1} parent=0
    #allocation3 [shape = 'u8[131072]{0}', space=vmem, size = 0x20000, scoped, tag = 'input window, operand 0']
    #allocation4 [shape = 's32[2]{0}', space=sflag, size = 0x8, scoped, tag = 'scoped memory for bottleneck_forward_padded.1']
    #allocation5 [shape = 's32[2]{0}', space=sflag, size = 0x8, scoped, tag = 'scoped memory for bottleneck_forward_padded.1']
    #allocation6 [shape = 'u8[32768]{0}', space=vmem, size = 0x8000, scoped, tag = 'input window, operand 2, single buffered']
    #allocation7 [shape = 's32[1]{0}', space=sflag, size = 0x4, scoped, tag = 'scoped memory for bottleneck_forward_padded.1']
    #allocation8 [shape = 'u8[294912]{0}', space=vmem, size = 0x48000, scoped, tag = 'input window, operand 4, single buffered']
    #allocation9 [shape = 'u8[32768]{0}', space=vmem, size = 0x8000, scoped, tag = 'input window, operand 6, single buffered']
    #allocation10 [shape = 's32[1]{0}', space=sflag, size = 0x4, scoped, tag = 'scoped memory for bottleneck_forward_padded.1']
    #allocation11 [shape = 'u8[131072]{0}', space=vmem, size = 0x20000, scoped, tag = 'output window, operand 0']
    %13 = vsyncpa [#allocation4], 0
    %s14 = scalar_lea.sflag [#allocation4], 1
    %15 = vsyncpa %s14, 0
    %16 = vsyncpa [#allocation7], 0
    %17 = vsyncpa [#allocation10], 0
    %18 = vsyncpa [#allocation5], 0
    %s19 = scalar_lea.sflag [#allocation5], 1
    %20 = vsyncpa %s19, 0
    loop: start=0, step=1, limit=4
    $region2: #{bottleneck_forward_padded.1} parent=1 // loop_pre_header
      _
    $region3: #{bottleneck_forward_padded.1} parent=1 // loop_header
      %s22 = sphi 0, %s26
      %p23 = scmp.ge.s32.totalorder %s22, 4
      %s29 = sphi 0, %s41
      %s30 = sphi 0, %s37
      %s31 = sphi 0, %s29
      %s32 = sphi 0, %s30
      %s33 = sphi 0, %s31
      %s34 = sphi 0, %s32
      %s46 = sphi 0, %s48
      %s49 = sphi 0, %s46
      %s50 = sphi 0, %s49
      %s66 = sphi 0, %s50
      %s74 = sphi 0, %s76
      %s77 = sphi 0, %s74
      %s78 = sphi 0, %s77
      %s94 = sphi 0, %s78
      %s98 = sphi 0, %s98
      %s100 = sphi 0, %s98
      %s101 = sphi 0, %s100
      %s115 = sphi 0, %s101
      %s119 = sphi 0, %s119
      %s121 = sphi 0, %s119
      %s122 = sphi 0, %s121
      %s136 = sphi 0, %s122
      %s140 = sphi 0, %s140
      %s142 = sphi 0, %s140
      %s143 = sphi 0, %s142
      %s157 = sphi 0, %s143
      %s161 = sphi 0, %s161
      %s163 = sphi 0, %s161
      %s164 = sphi 0, %s163
      %s178 = sphi 0, %s164
      %s182 = sphi 0, %s182
      %s184 = sphi 0, %s182
      %s185 = sphi 0, %s184
      %s199 = sphi 0, %s185
      %s203 = sphi 0, %s203
      %s205 = sphi 0, %s203
      %s206 = sphi 0, %s205
      %s220 = sphi 0, %s206
      %s228 = sphi 0, %s230
      %s231 = sphi 0, %s228
      %s232 = sphi 0, %s231
      %s248 = sphi 0, %s232
    $region4: #{bottleneck_forward_padded.1} parent=1 // loop_header_branch
      %25 = sbr.rel (%p23) target = $region8
    $region5: #{bottleneck_forward_padded.1} parent=1 // loop_body
      %s27 = ssub.s32 %s22, 1
      %s28 = ssub.s32 %s22, 2
      %s35 = sadd.s32 1, %s30
      %p36 = scmp.ge.s32.totalorder %s35, 1
      %s37 = scalar_select %p36, 0, %s35
      %s38 = sadd.s32 1, %s29
      %s39 = scalar_select %p36, %s38, %s29
      %p40 = scmp.ge.s32.totalorder %s39, 2
      %s41 = scalar_select %p40, 0, %s39
      %s42 = ssub.s32 %s29, %s41
      %s43 = ssub.s32 %s30, %s37
      %s44 = sor.u32 %s42, %s43
      %p45 = scmp.eq.s32.totalorder %s44, 0
      %s47 = sadd.s32 %s46, 1
      %s48 = scalar_select %p45, %s46, %s47
      %p51 = pneg %p45
      %p52 = scmp.eq.s32.totalorder %s22, 1
      %p53 = por %p51, %p52
      %p54 = scmp.ne.s32.totalorder %s46, %s49
      %p55 = scmp.eq.s32.totalorder %s22, 0
      %p56 = por %p54, %p55
      %p57 = scmp.ne.s32.totalorder %s46, %s49
      %p58 = scmp.eq.s32.totalorder %s27, 1
      %p59 = por %p57, %p58
      %p60 = scmp.ne.s32.totalorder %s49, %s50
      %p61 = scmp.eq.s32.totalorder %s27, 0
      %p62 = por %p60, %p61
      %p63 = scmp.ne.s32.totalorder %s49, %s50
      %p64 = scmp.eq.s32.totalorder %s28, 1
      %p65 = por %p63, %p64
      %p67 = scmp.ne.s32.totalorder %s50, %s66
      %p68 = scmp.eq.s32.totalorder %s28, 0
      %p69 = por %p67, %p68
      %s70 = ssub.s32 %s29, %s41
      %s71 = ssub.s32 %s30, %s37
      %s72 = sor.u32 %s70, %s71
      %p73 = scmp.eq.s32.totalorder %s72, 0
      %s75 = sadd.s32 %s74, 1
      %s76 = scalar_select %p73, %s74, %s75
      %p79 = pneg %p73
      %p80 = scmp.eq.s32.totalorder %s22, 1
      %p81 = por %p79, %p80
      %p82 = scmp.ne.s32.totalorder %s74, %s77
      %p83 = scmp.eq.s32.totalorder %s22, 0
      %p84 = por %p82, %p83
      %p85 = scmp.ne.s32.totalorder %s74, %s77
      %p86 = scmp.eq.s32.totalorder %s27, 1
      %p87 = por %p85, %p86
      %p88 = scmp.ne.s32.totalorder %s77, %s78
      %p89 = scmp.eq.s32.totalorder %s27, 0
      %p90 = por %p88, %p89
      %p91 = scmp.ne.s32.totalorder %s77, %s78
      %p92 = scmp.eq.s32.totalorder %s28, 1
      %p93 = por %p91, %p92
      %p95 = scmp.ne.s32.totalorder %s78, %s94
      %p96 = scmp.eq.s32.totalorder %s28, 0
      %p97 = por %p95, %p96
      %s99 = sadd.s32 %s98, 1
      %p102 = scmp.eq.s32.totalorder %s22, 1
      %p103 = scmp.ne.s32.totalorder %s98, %s100
      %p104 = scmp.eq.s32.totalorder %s22, 0
      %p105 = por %p103, %p104
      %p106 = scmp.ne.s32.totalorder %s98, %s100
      %p107 = scmp.eq.s32.totalorder %s27, 1
      %p108 = por %p106, %p107
      %p109 = scmp.ne.s32.totalorder %s100, %s101
      %p110 = scmp.eq.s32.totalorder %s27, 0
      %p111 = por %p109, %p110
      %p112 = scmp.ne.s32.totalorder %s100, %s101
      %p113 = scmp.eq.s32.totalorder %s28, 1
      %p114 = por %p112, %p113
      %p116 = scmp.ne.s32.totalorder %s101, %s115
      %p117 = scmp.eq.s32.totalorder %s28, 0
      %p118 = por %p116, %p117
      %s120 = sadd.s32 %s119, 1
      %p123 = scmp.eq.s32.totalorder %s22, 1
      %p124 = scmp.ne.s32.totalorder %s119, %s121
      %p125 = scmp.eq.s32.totalorder %s22, 0
      %p126 = por %p124, %p125
      %p127 = scmp.ne.s32.totalorder %s119, %s121
      %p128 = scmp.eq.s32.totalorder %s27, 1
      %p129 = por %p127, %p128
      %p130 = scmp.ne.s32.totalorder %s121, %s122
      %p131 = scmp.eq.s32.totalorder %s27, 0
      %p132 = por %p130, %p131
      %p133 = scmp.ne.s32.totalorder %s121, %s122
      %p134 = scmp.eq.s32.totalorder %s28, 1
      %p135 = por %p133, %p134
      %p137 = scmp.ne.s32.totalorder %s122, %s136
      %p138 = scmp.eq.s32.totalorder %s28, 0
      %p139 = por %p137, %p138
      %s141 = sadd.s32 %s140, 1
      %p144 = scmp.eq.s32.totalorder %s22, 1
      %p145 = scmp.ne.s32.totalorder %s140, %s142
      %p146 = scmp.eq.s32.totalorder %s22, 0
      %p147 = por %p145, %p146
      %p148 = scmp.ne.s32.totalorder %s140, %s142
      %p149 = scmp.eq.s32.totalorder %s27, 1
      %p150 = por %p148, %p149
      %p151 = scmp.ne.s32.totalorder %s142, %s143
      %p152 = scmp.eq.s32.totalorder %s27, 0
      %p153 = por %p151, %p152
      %p154 = scmp.ne.s32.totalorder %s142, %s143
      %p155 = scmp.eq.s32.totalorder %s28, 1
      %p156 = por %p154, %p155
      %p158 = scmp.ne.s32.totalorder %s143, %s157
      %p159 = scmp.eq.s32.totalorder %s28, 0
      %p160 = por %p158, %p159
      %s162 = sadd.s32 %s161, 1
      %p165 = scmp.eq.s32.totalorder %s22, 1
      %p166 = scmp.ne.s32.totalorder %s161, %s163
      %p167 = scmp.eq.s32.totalorder %s22, 0
      %p168 = por %p166, %p167
      %p169 = scmp.ne.s32.totalorder %s161, %s163
      %p170 = scmp.eq.s32.totalorder %s27, 1
      %p171 = por %p169, %p170
      %p172 = scmp.ne.s32.totalorder %s163, %s164
      %p173 = scmp.eq.s32.totalorder %s27, 0
      %p174 = por %p172, %p173
      %p175 = scmp.ne.s32.totalorder %s163, %s164
      %p176 = scmp.eq.s32.totalorder %s28, 1
      %p177 = por %p175, %p176
      %p179 = scmp.ne.s32.totalorder %s164, %s178
      %p180 = scmp.eq.s32.totalorder %s28, 0
      %p181 = por %p179, %p180
      %s183 = sadd.s32 %s182, 1
      %p186 = scmp.eq.s32.totalorder %s22, 1
      %p187 = scmp.ne.s32.totalorder %s182, %s184
      %p188 = scmp.eq.s32.totalorder %s22, 0
      %p189 = por %p187, %p188
      %p190 = scmp.ne.s32.totalorder %s182, %s184
      %p191 = scmp.eq.s32.totalorder %s27, 1
      %p192 = por %p190, %p191
      %p193 = scmp.ne.s32.totalorder %s184, %s185
      %p194 = scmp.eq.s32.totalorder %s27, 0
      %p195 = por %p193, %p194
      %p196 = scmp.ne.s32.totalorder %s184, %s185
      %p197 = scmp.eq.s32.totalorder %s28, 1
      %p198 = por %p196, %p197
      %p200 = scmp.ne.s32.totalorder %s185, %s199
      %p201 = scmp.eq.s32.totalorder %s28, 0
      %p202 = por %p200, %p201
      %s204 = sadd.s32 %s203, 1
      %p207 = scmp.eq.s32.totalorder %s22, 1
      %p208 = scmp.ne.s32.totalorder %s203, %s205
      %p209 = scmp.eq.s32.totalorder %s22, 0
      %p210 = por %p208, %p209
      %p211 = scmp.ne.s32.totalorder %s203, %s205
      %p212 = scmp.eq.s32.totalorder %s27, 1
      %p213 = por %p211, %p212
      %p214 = scmp.ne.s32.totalorder %s205, %s206
      %p215 = scmp.eq.s32.totalorder %s27, 0
      %p216 = por %p214, %p215
      %p217 = scmp.ne.s32.totalorder %s205, %s206
      %p218 = scmp.eq.s32.totalorder %s28, 1
      %p219 = por %p217, %p218
      %p221 = scmp.ne.s32.totalorder %s206, %s220
      %p222 = scmp.eq.s32.totalorder %s28, 0
      %p223 = por %p221, %p222
      %s224 = ssub.s32 %s29, %s41
      %s225 = ssub.s32 %s30, %s37
      %s226 = sor.u32 %s224, %s225
      %p227 = scmp.eq.s32.totalorder %s226, 0
      %s229 = sadd.s32 %s228, 1
      %s230 = scalar_select %p227, %s228, %s229
      %p233 = pneg %p227
      %p234 = scmp.eq.s32.totalorder %s22, 1
      %p235 = por %p233, %p234
      %p236 = scmp.ne.s32.totalorder %s228, %s231
      %p237 = scmp.eq.s32.totalorder %s22, 0
      %p238 = por %p236, %p237
      %p239 = scmp.ne.s32.totalorder %s228, %s231
      %p240 = scmp.eq.s32.totalorder %s27, 1
      %p241 = por %p239, %p240
      %p242 = scmp.ne.s32.totalorder %s231, %s232
      %p243 = scmp.eq.s32.totalorder %s27, 0
      %p244 = por %p242, %p243
      %p245 = scmp.ne.s32.totalorder %s231, %s232
      %p246 = scmp.eq.s32.totalorder %s28, 1
      %p247 = por %p245, %p246
      %p249 = scmp.ne.s32.totalorder %s232, %s248
      %p250 = scmp.eq.s32.totalorder %s28, 0
      %p251 = por %p249, %p250
      %p252 = scmp.le.s32.totalorder 1, %s22
      %p253 = scmp.lt.s32.totalorder %s22, 3
      %p254 = pnand %p252, %p253
      %p255 = pneg %p254
      // Predicated region
      $region9: #{bottleneck_forward_padded.1} parent=5 // pred_check
        _
      $region10: #{bottleneck_forward_padded.1} parent=5 // pred_check_branch
        %257 = sbr.rel (%p254) target = $region12
      $region11: #{bottleneck_forward_padded.1} parent=5 // pred_region
        %s258 = ssub.s32 %s22, 1
        // Predicated region
        $region13: #{bottleneck_forward_padded.1} parent=11 // pred_check
          %p259 = pneg %p111
        $region14: #{bottleneck_forward_padded.1} parent=11 // pred_check_branch
          %261 = sbr.rel (%p259) target = $region16
        $region15: #{bottleneck_forward_padded.1} parent=11 // pred_region
          %s263 = ssub.s32 1024, 1024
          %264 = vsyncadd [#allocation7], %s263
          %s265 = sshll.u32 [#allocation6], 4
          %s266 = int_to_ptr.vmem [resolvable:$true] %s265
          %271 = dma.hbm_to_vmem [thread:$0]  %s2, 1024, %s266, [#allocation7], 64, 64, 4
        $region16: #{bottleneck_forward_padded.1} parent=11 // pred_fallthru
          _
        // Predicated region
        $region17: #{bottleneck_forward_padded.1} parent=11 // pred_check
          %p272 = pneg %p132
        $region18: #{bottleneck_forward_padded.1} parent=11 // pred_check_branch
          %274 = sbr.rel (%p272) target = $region20
        $region19: #{bottleneck_forward_padded.1} parent=11 // pred_region
          _
        $region20: #{bottleneck_forward_padded.1} parent=11 // pred_fallthru
          _
        // Predicated region
        $region21: #{bottleneck_forward_padded.1} parent=11 // pred_check
          %p275 = pneg %p153
        $region22: #{bottleneck_forward_padded.1} parent=11 // pred_check_branch
          %277 = sbr.rel (%p275) target = $region24
        $region23: #{bottleneck_forward_padded.1} parent=11 // pred_region
          %s279 = ssub.s32 9216, 9216
          %280 = vsyncadd [#allocation7], %s279
          %s281 = sshll.u32 [#allocation8], 4
          %s282 = int_to_ptr.vmem [resolvable:$true] %s281
          %287 = dma.hbm_to_vmem [thread:$0]  %s4, 9216, %s282, [#allocation7], 64, 64, 4
        $region24: #{bottleneck_forward_padded.1} parent=11 // pred_fallthru
          _
        // Predicated region
        $region25: #{bottleneck_forward_padded.1} parent=11 // pred_check
          %p288 = pneg %p174
        $region26: #{bottleneck_forward_padded.1} parent=11 // pred_check_branch
          %290 = sbr.rel (%p288) target = $region28
        $region27: #{bottleneck_forward_padded.1} parent=11 // pred_region
          _
        $region28: #{bottleneck_forward_padded.1} parent=11 // pred_fallthru
          _
        // Predicated region
        $region29: #{bottleneck_forward_padded.1} parent=11 // pred_check
          %p291 = pneg %p195
        $region30: #{bottleneck_forward_padded.1} parent=11 // pred_check_branch
          %293 = sbr.rel (%p291) target = $region32
        $region31: #{bottleneck_forward_padded.1} parent=11 // pred_region
          %s295 = ssub.s32 1024, 1024
          %296 = vsyncadd [#allocation10], %s295
          %s297 = sshll.u32 [#allocation9], 4
          %s298 = int_to_ptr.vmem [resolvable:$true] %s297
          %303 = dma.hbm_to_vmem [thread:$0]  %s6, 1024, %s298, [#allocation10], 64, 64, 4
        $region32: #{bottleneck_forward_padded.1} parent=11 // pred_fallthru
          _
        // Predicated region
        $region33: #{bottleneck_forward_padded.1} parent=11 // pred_check
          %p304 = pneg %p216
        $region34: #{bottleneck_forward_padded.1} parent=11 // pred_check_branch
          %306 = sbr.rel (%p304) target = $region36
        $region35: #{bottleneck_forward_padded.1} parent=11 // pred_region
          _
        $region36: #{bottleneck_forward_padded.1} parent=11 // pred_fallthru
          _
      $region12: #{bottleneck_forward_padded.1} parent=5 // pred_fallthru
        _
      %p307 = scmp.lt.s32.totalorder %s22, 2
      // Predicated region
      $region37: #{bottleneck_forward_padded.1} parent=5 // pred_check
        %p308 = pneg %p307
      $region38: #{bottleneck_forward_padded.1} parent=5 // pred_check_branch
        %310 = sbr.rel (%p308) target = $region40
      $region39: #{bottleneck_forward_padded.1} parent=5 // pred_region
        // Predicated region
        $region41: #{bottleneck_forward_padded.1} parent=39 // pred_check
          %p311 = pneg %p56
        $region42: #{bottleneck_forward_padded.1} parent=39 // pred_check_branch
          %313 = sbr.rel (%p311) target = $region44
        $region43: #{bottleneck_forward_padded.1} parent=39 // pred_region
          %s314 = sand.u32 %s46, 1
          %s315 = scalar_lea.sflag [#allocation4], %s314
          %s316 = sand.u32 %s46, 1
          %s317 = smul.addr %s316, 128
          %s318 = scalar_lea.vmem [#allocation3], %s317
          %s319 = smul.u32 32, %s30
          %s321 = ssub.s32 2048, 2048
          %322 = vsyncadd %s315, %s321
          %s323 = smul.addr %s29, 32
          %s324 = sadd.s32 %s319, %s323
          %s325 = smul.addr %s324, 64
          %s326 = scalar_lea.hbm %s0, %s325
          %s327 = sshll.u32 %s318, 4
          %s328 = int_to_ptr.vmem [resolvable:$true] %s327
          %333 = dma.hbm_to_vmem [thread:$0]  %s326, 2048, %s328, %s315, 64, 64, 4
        $region44: #{bottleneck_forward_padded.1} parent=39 // pred_fallthru
          _
        // Predicated region
        $region45: #{bottleneck_forward_padded.1} parent=39 // pred_check
          %p334 = pneg %p84
        $region46: #{bottleneck_forward_padded.1} parent=39 // pred_check_branch
          %336 = sbr.rel (%p334) target = $region48
        $region47: #{bottleneck_forward_padded.1} parent=39 // pred_region
          %p337 = scmp.lt.s32.totalorder %s29, 1
          %s338 = scalar_select %p337, %s29, 1
          %p339 = scmp.lt.s32.totalorder %s30, 0
          %s340 = scalar_select %p339, %s30, 0
          %s341 = smul.addr %s340, 4
          %s342 = smul.addr %s338, 4
          %s343 = sadd.s32 %s341, %s342
          %s344 = smul.addr %s343, 4
          %s345 = scalar_lea.vmem %s1, %s344
        $region48: #{bottleneck_forward_padded.1} parent=39 // pred_fallthru
          _
      $region40: #{bottleneck_forward_padded.1} parent=5 // pred_fallthru
        _
      %p346 = scmp.le.s32.totalorder 1, %s22
      %p347 = scmp.lt.s32.totalorder %s22, 3
      %p348 = pnand %p346, %p347
      %p349 = pneg %p348
      // Predicated region
      $region49: #{bottleneck_forward_padded.1} parent=5 // pred_check
        _
      $region50: #{bottleneck_forward_padded.1} parent=5 // pred_check_branch
        %351 = sbr.rel (%p348) target = $region52
      $region51: #{bottleneck_forward_padded.1} parent=5 // pred_region
        %s352 = ssub.s32 %s22, 1
        %s353 = sand.u32 %s49, 1
        %s354 = scalar_lea.sflag [#allocation4], %s353
        %s355 = sand.u32 %s49, 1
        %s356 = smul.addr %s355, 128
        %s357 = scalar_lea.vmem [#allocation3], %s356
        // Predicated region
        $region53: #{bottleneck_forward_padded.1} parent=51 // pred_check
          %p358 = pneg %p62
        $region54: #{bottleneck_forward_padded.1} parent=51 // pred_check_branch
          %360 = sbr.rel (%p358) target = $region56
        $region55: #{bottleneck_forward_padded.1} parent=51 // pred_region
          %361 = dma.done %s354, 2048
        $region56: #{bottleneck_forward_padded.1} parent=51 // pred_fallthru
          _
        // Predicated region
        $region57: #{bottleneck_forward_padded.1} parent=51 // pred_check
          %p362 = pneg %p111
        $region58: #{bottleneck_forward_padded.1} parent=51 // pred_check_branch
          %364 = sbr.rel (%p362) target = $region60
        $region59: #{bottleneck_forward_padded.1} parent=51 // pred_region
          %365 = dma.done [#allocation7], 1024
        $region60: #{bottleneck_forward_padded.1} parent=51 // pred_fallthru
          _
        // Predicated region
        $region61: #{bottleneck_forward_padded.1} parent=51 // pred_check
          %p366 = pneg %p153
        $region62: #{bottleneck_forward_padded.1} parent=51 // pred_check_branch
          %368 = sbr.rel (%p366) target = $region64
        $region63: #{bottleneck_forward_padded.1} parent=51 // pred_region
          %369 = dma.done [#allocation7], 9216
        $region64: #{bottleneck_forward_padded.1} parent=51 // pred_fallthru
          _
        // Predicated region
        $region65: #{bottleneck_forward_padded.1} parent=51 // pred_check
          %p370 = pneg %p195
        $region66: #{bottleneck_forward_padded.1} parent=51 // pred_check_branch
          %372 = sbr.rel (%p370) target = $region68
        $region67: #{bottleneck_forward_padded.1} parent=51 // pred_region
          %373 = dma.done [#allocation10], 1024
        $region68: #{bottleneck_forward_padded.1} parent=51 // pred_fallthru
          _
        %s374 = sand.u32 %s49, 1
        %s375 = scalar_lea.sflag [#allocation4], %s374
        %s376 = sand.u32 %s49, 1
        %s377 = smul.addr %s376, 128
        %s378 = scalar_lea.vmem [#allocation3], %s377
        %p379 = pneg %p62
        %p380 = pneg %p59
        %p381 = scmp.lt.s32.totalorder %s31, 1
        %s382 = scalar_select %p381, %s31, 1
        %p383 = scmp.lt.s32.totalorder %s32, 0
        %s384 = scalar_select %p383, %s32, 0
        %s385 = smul.addr %s384, 4
        %s386 = smul.addr %s382, 4
        %s387 = sadd.s32 %s385, %s386
        %s388 = smul.addr %s387, 4
        %s389 = scalar_lea.vmem %s1, %s388
        %p390 = pneg %p90
        %p391 = pneg %p87
        %p392 = pneg %p111
        %p393 = pneg %p108
        %p394 = pneg %p132
        %p395 = pneg %p129
        %p396 = pneg %p153
        %p397 = pneg %p150
        %p398 = pneg %p174
        %p399 = pneg %p171
        %p400 = pneg %p195
        %p401 = pneg %p192
        %p402 = pneg %p216
        %p403 = pneg %p213
        %p404 = pneg %p244
        %p405 = pneg %p241
        %s406 = sand.u32 %s231, 1
        %s407 = scalar_lea.sflag [#allocation5], %s406
        %s408 = sand.u32 %s231, 1
        %s409 = smul.addr %s408, 128
        %s410 = scalar_lea.vmem [#allocation11], %s409
        %s411 = smul.u32 32, %s32
        %p412 = scmp.lt.s32.totalorder %s31, 1
        %s413 = scalar_select %p412, %s31, 1
        %p414 = scmp.lt.s32.totalorder %s32, 0
        %s415 = scalar_select %p414, %s32, 0
        %s416 = smul.addr %s415, 4
        %s417 = smul.addr %s413, 4
        %s418 = sadd.s32 %s416, %s417
        %s419 = smul.addr %s418, 4
        %s420 = scalar_lea.vmem %s1, %s419
        %s421 = smul.u32 32, %s32
        %v423 = vld [vmem:[%s357] sm:$0xf]
        %v424 = vld [vmem:[%s357 + $0x4] sm:$0xf]
        %v425 = vld [vmem:[%s357 + $0x8] sm:$0xf]
        %v426 = vld [vmem:[%s357 + $0xc] sm:$0xf]
        %v427 = vld [vmem:[%s357 + $0x10] sm:$0xf]
        %v428 = vld [vmem:[%s357 + $0x14] sm:$0xf]
        %v429 = vld [vmem:[%s357 + $0x18] sm:$0xf]
        %v430 = vld [vmem:[%s357 + $0x1c] sm:$0xf]
        %v431 = vld [vmem:[%s357 + $0x20] sm:$0xf]
        %v432 = vld [vmem:[%s357 + $0x24] sm:$0xf]
        %v433 = vld [vmem:[%s357 + $0x28] sm:$0xf]
        %v434 = vld [vmem:[%s357 + $0x2c] sm:$0xf]
        %v435 = vld [vmem:[%s357 + $0x30] sm:$0xf]
        %v436 = vld [vmem:[%s357 + $0x34] sm:$0xf]
        %v437 = vld [vmem:[%s357 + $0x38] sm:$0xf]
        %v438 = vld [vmem:[%s357 + $0x3c] sm:$0xf]
        %v439 = vld [vmem:[%s357 + $0x40] sm:$0xf]
        %v440 = vld [vmem:[%s357 + $0x44] sm:$0xf]
        %v441 = vld [vmem:[%s357 + $0x48] sm:$0xf]
        %v442 = vld [vmem:[%s357 + $0x4c] sm:$0xf]
        %v443 = vld [vmem:[%s357 + $0x50] sm:$0xf]
        %v444 = vld [vmem:[%s357 + $0x54] sm:$0xf]
        %v445 = vld [vmem:[%s357 + $0x58] sm:$0xf]
        %v446 = vld [vmem:[%s357 + $0x5c] sm:$0xf]
        %v447 = vld [vmem:[%s357 + $0x60] sm:$0xf]
        %v448 = vld [vmem:[%s357 + $0x64] sm:$0xf]
        %v449 = vld [vmem:[%s357 + $0x68] sm:$0xf]
        %v450 = vld [vmem:[%s357 + $0x6c] sm:$0xf]
        %v451 = vld [vmem:[%s357 + $0x70] sm:$0xf]
        %v452 = vld [vmem:[%s357 + $0x74] sm:$0xf]
        %v453 = vld [vmem:[%s357 + $0x78] sm:$0xf]
        %v454 = vld [vmem:[%s357 + $0x7c] sm:$0xf]
        %v455 = vld [vmem:[#allocation6] sm:$0xf]
        %v456 = vld [vmem:[#allocation6 + $0x4] sm:$0xf]
        %v457 = vld [vmem:[#allocation6 + $0x8] sm:$0xf]
        %v458 = vld [vmem:[#allocation6 + $0xc] sm:$0xf]
        %v459 = vld [vmem:[#allocation6 + $0x10] sm:$0xf]
        %v460 = vld [vmem:[#allocation6 + $0x14] sm:$0xf]
        %v461 = vld [vmem:[#allocation6 + $0x18] sm:$0xf]
        %v462 = vld [vmem:[#allocation6 + $0x1c] sm:$0xf]
        %v463 = vld [vmem:[#allocation6 + $0x20] sm:$0xf]
        %v464 = vld [vmem:[#allocation6 + $0x24] sm:$0xf]
        %v465 = vld [vmem:[#allocation6 + $0x28] sm:$0xf]
        %v466 = vld [vmem:[#allocation6 + $0x2c] sm:$0xf]
        %v467 = vld [vmem:[#allocation6 + $0x30] sm:$0xf]
        %v468 = vld [vmem:[#allocation6 + $0x34] sm:$0xf]
        %v469 = vld [vmem:[#allocation6 + $0x38] sm:$0xf]
        %v470 = vld [vmem:[#allocation6 + $0x3c] sm:$0xf]
        %v471 = vld [vmem:[%s3] sm:$0x1]
        %v473 = vlaneseq
        %v474 = vshrl.u32 %v473, 7
        %v475 = vsub.s32 0, %v474
        %v476 = vrot.slane %v471, %v475
        %v510 = vunpack.c.l.b16 %v423
        %v511 = vunpack.c.l.b16 %v424
        %v512 = vunpack.c.l.b16 %v425
        %v513 = vunpack.c.l.b16 %v426
        %v514 = vunpack.c.l.b16 %v427
        %v515 = vunpack.c.l.b16 %v428
        %v516 = vunpack.c.l.b16 %v429
        %v517 = vunpack.c.l.b16 %v430
        %v518 = vunpack.c.l.b16 %v431
        %v519 = vunpack.c.l.b16 %v432
        %v520 = vunpack.c.l.b16 %v433
        %v521 = vunpack.c.l.b16 %v434
        %v522 = vunpack.c.l.b16 %v435
        %v523 = vunpack.c.l.b16 %v436
        %v524 = vunpack.c.l.b16 %v437
        %v525 = vunpack.c.l.b16 %v438
        %v526 = vunpack.c.l.b16 %v439
        %v527 = vunpack.c.l.b16 %v440
        %v528 = vunpack.c.l.b16 %v441
        %v529 = vunpack.c.l.b16 %v442
        %v530 = vunpack.c.l.b16 %v443
        %v531 = vunpack.c.l.b16 %v444
        %v532 = vunpack.c.l.b16 %v445
        %v533 = vunpack.c.l.b16 %v446
        %v534 = vunpack.c.l.b16 %v447
        %v535 = vunpack.c.l.b16 %v448
        %v536 = vunpack.c.l.b16 %v449
        %v537 = vunpack.c.l.b16 %v450
        %v538 = vunpack.c.l.b16 %v451
        %v539 = vunpack.c.l.b16 %v452
        %v540 = vunpack.c.l.b16 %v453
        %v541 = vunpack.c.l.b16 %v454
        %v542 = vpack.c.b16 %v511, %v510
        %v543 = vpack.c.b16 %v513, %v512
        %v544 = vpack.c.b16 %v515, %v514
        %v545 = vpack.c.b16 %v517, %v516
        %v546 = vpack.c.b16 %v519, %v518
        %v547 = vpack.c.b16 %v521, %v520
        %v548 = vpack.c.b16 %v523, %v522
        %v549 = vpack.c.b16 %v525, %v524
        %v550 = vpack.c.b16 %v527, %v526
        %v551 = vpack.c.b16 %v529, %v528
        %v552 = vpack.c.b16 %v531, %v530
        %v553 = vpack.c.b16 %v533, %v532
        %v554 = vpack.c.b16 %v535, %v534
        %v555 = vpack.c.b16 %v537, %v536
        %v556 = vpack.c.b16 %v539, %v538
        %v557 = vpack.c.b16 %v541, %v540
        %v590 = vunpack.c.l.b16 %v455
        %v591 = vunpack.c.l.b16 %v456
        %v592 = vunpack.c.l.b16 %v457
        %v593 = vunpack.c.l.b16 %v458
        %v594 = vunpack.c.l.b16 %v459
        %v595 = vunpack.c.l.b16 %v460
        %v596 = vunpack.c.l.b16 %v461
        %v597 = vunpack.c.l.b16 %v462
        %v598 = vunpack.c.l.b16 %v463
        %v599 = vunpack.c.l.b16 %v464
        %v600 = vunpack.c.l.b16 %v465
        %v601 = vunpack.c.l.b16 %v466
        %v602 = vunpack.c.l.b16 %v467
        %v603 = vunpack.c.l.b16 %v468
        %v604 = vunpack.c.l.b16 %v469
        %v605 = vunpack.c.l.b16 %v470
        %v606 = vpack.c.b16 %v591, %v590
        %v607 = vpack.c.b16 %v593, %v592
        %v608 = vpack.c.b16 %v595, %v594
        %v609 = vpack.c.b16 %v597, %v596
        %v610 = vpack.c.b16 %v599, %v598
        %v611 = vpack.c.b16 %v601, %v600
        %v612 = vpack.c.b16 %v603, %v602
        %v613 = vpack.c.b16 %v605, %v604
        %622 = vmatprep.subr.bf16.mxu0 0
        %623 = vmatpush1.bf16.msra.mxu0 %v606
        %624 = vmatprep.subr.bf16.mxu0 0
        %625 = vmatpush1.bf16.msra.mxu0 %v607
        %626 = vmatprep.subr.bf16.mxu0 0
        %627 = vmatpush1.bf16.msra.mxu0 %v608
        %628 = vmatprep.subr.bf16.mxu0 0
        %629 = vmatpush1.bf16.msra.mxu0 %v609
        %630 = vmatprep.subr.bf16.mxu0 0
        %631 = vmatpush1.bf16.msra.mxu0 %v610
        %632 = vmatprep.subr.bf16.mxu0 0
        %633 = vmatpush1.bf16.msra.mxu0 %v611
        %634 = vmatprep.subr.bf16.mxu0 0
        %635 = vmatpush1.bf16.msra.mxu0 %v612
        %636 = vmatprep.subr.bf16.mxu0 0
        %637 = vmatpush1.bf16.msra.mxu0 %v613
        %638 = vmatprep.subr.bf16.mxu0 0
        %639 = vmatpush1.bf16.msra.mxu0 0
        %640 = vmatprep.subr.bf16.mxu0 0
        %641 = vmatpush1.bf16.msra.mxu0 0
        %642 = vmatprep.subr.bf16.mxu0 0
        %643 = vmatpush1.bf16.msra.mxu0 0
        %644 = vmatprep.subr.bf16.mxu0 0
        %645 = vmatpush1.bf16.msra.mxu0 0
        %646 = vmatprep.subr.bf16.mxu0 0
        %647 = vmatpush1.bf16.msra.mxu0 0
        %648 = vmatprep.subr.bf16.mxu0 0
        %649 = vmatpush1.bf16.msra.mxu0 0
        %650 = vmatprep.subr.bf16.mxu0 0
        %651 = vmatpush1.bf16.msra.mxu0 0
        %652 = vmatprep.subr.bf16.mxu0 0
        %653 = vmatpush1.bf16.msra.mxu0 0
        %654 = vmatprep.mubr.bf16.mxu0 0
        %655 = vmatmul.mubr.bf16.gmra.mrb[0].mxu0 %v542
        %v656 = vpop.f32.mrb[0].mxu0
        %v657 = vadd.f32 %v476, %v656
        %v658 = vpop.f32.mrb[0].mxu0
        %v659 = vpop.f32.mrb[0].mxu0
        %v660 = vadd.f32 %v476, %v659
        %v661 = vpop.f32.mrb[0].mxu0
        %662 = vmatprep.mubr.bf16.mxu0 0
        %663 = vmatmul.mubr.bf16.gmra.mrb[0].mxu0 %v543
        %v664 = vpop.f32.mrb[0].mxu0
        %v665 = vadd.f32 %v476, %v664
        %v666 = vpop.f32.mrb[0].mxu0
        %v667 = vpop.f32.mrb[0].mxu0
        %v668 = vadd.f32 %v476, %v667
        %v669 = vpop.f32.mrb[0].mxu0
        %670 = vmatprep.mubr.bf16.mxu0 0
        %671 = vmatmul.mubr.bf16.gmra.mrb[0].mxu0 %v544
        %v672 = vpop.f32.mrb[0].mxu0
        %v673 = vadd.f32 %v476, %v672
        %v674 = vpop.f32.mrb[0].mxu0
        %v675 = vpop.f32.mrb[0].mxu0
        %v676 = vadd.f32 %v476, %v675
        %v677 = vpop.f32.mrb[0].mxu0
        %678 = vmatprep.mubr.bf16.mxu0 0
        %679 = vmatmul.mubr.bf16.gmra.mrb[0].mxu0 %v545
        %v680 = vpop.f32.mrb[0].mxu0
        %v681 = vadd.f32 %v476, %v680
        %v682 = vpop.f32.mrb[0].mxu0
        %v683 = vpop.f32.mrb[0].mxu0
        %v684 = vadd.f32 %v476, %v683
        %v685 = vpop.f32.mrb[0].mxu0
        %686 = vmatprep.mubr.bf16.mxu0 0
        %687 = vmatmul.mubr.bf16.gmra.mrb[0].mxu0 %v546
        %v688 = vpop.f32.mrb[0].mxu0
        %v689 = vadd.f32 %v476, %v688
        %v690 = vpop.f32.mrb[0].mxu0
        %v691 = vpop.f32.mrb[0].mxu0
        %v692 = vadd.f32 %v476, %v691
        %v693 = vpop.f32.mrb[0].mxu0
        %694 = vmatprep.mubr.bf16.mxu0 0
        %695 = vmatmul.mubr.bf16.gmra.mrb[0].mxu0 %v547
        %v696 = vpop.f32.mrb[0].mxu0
        %v697 = vadd.f32 %v476, %v696
        %v698 = vpop.f32.mrb[0].mxu0
        %v699 = vpop.f32.mrb[0].mxu0
        %v700 = vadd.f32 %v476, %v699
        %v701 = vpop.f32.mrb[0].mxu0
        %702 = vmatprep.mubr.bf16.mxu0 0
        %703 = vmatmul.mubr.bf16.gmra.mrb[0].mxu0 %v548
        %v704 = vpop.f32.mrb[0].mxu0
        %v705 = vadd.f32 %v476, %v704
        %v706 = vpop.f32.mrb[0].mxu0
        %v707 = vpop.f32.mrb[0].mxu0
        %v708 = vadd.f32 %v476, %v707
        %v709 = vpop.f32.mrb[0].mxu0
        %710 = vmatprep.mubr.bf16.mxu0 0
        %711 = vmatmul.mubr.bf16.gmra.mrb[0].mxu0 %v549
        %v712 = vpop.f32.mrb[0].mxu0
        %v713 = vadd.f32 %v476, %v712
        %v714 = vpop.f32.mrb[0].mxu0
        %v715 = vpop.f32.mrb[0].mxu0
        %v716 = vadd.f32 %v476, %v715
        %v717 = vpop.f32.mrb[0].mxu0
        %718 = vmatprep.mubr.bf16.mxu0 0
        %719 = vmatmul.mubr.bf16.gmra.mrb[0].mxu0 %v550
        %v720 = vpop.f32.mrb[0].mxu0
        %v721 = vadd.f32 %v476, %v720
        %v722 = vpop.f32.mrb[0].mxu0
        %v723 = vpop.f32.mrb[0].mxu0
        %v724 = vadd.f32 %v476, %v723
        %v725 = vpop.f32.mrb[0].mxu0
        %726 = vmatprep.mubr.bf16.mxu0 0
        %727 = vmatmul.mubr.bf16.gmra.mrb[0].mxu0 %v551
        %v728 = vpop.f32.mrb[0].mxu0
        %v729 = vadd.f32 %v476, %v728
        %v730 = vpop.f32.mrb[0].mxu0
        %v731 = vpop.f32.mrb[0].mxu0
        %v732 = vadd.f32 %v476, %v731
        %v733 = vpop.f32.mrb[0].mxu0
        %734 = vmatprep.mubr.bf16.mxu0 0
        %735 = vmatmul.mubr.bf16.gmra.mrb[0].mxu0 %v552
        %v736 = vpop.f32.mrb[0].mxu0
        %v737 = vadd.f32 %v476, %v736
        %v738 = vpop.f32.mrb[0].mxu0
        %v739 = vpop.f32.mrb[0].mxu0
        %v740 = vadd.f32 %v476, %v739
        %v741 = vpop.f32.mrb[0].mxu0
        %742 = vmatprep.mubr.bf16.mxu0 0
        %743 = vmatmul.mubr.bf16.gmra.mrb[0].mxu0 %v553
        %v744 = vpop.f32.mrb[0].mxu0
        %v745 = vadd.f32 %v476, %v744
        %v746 = vpop.f32.mrb[0].mxu0
        %v747 = vpop.f32.mrb[0].mxu0
        %v748 = vadd.f32 %v476, %v747
        %v749 = vpop.f32.mrb[0].mxu0
        %750 = vmatprep.mubr.bf16.mxu0 0
        %751 = vmatmul.mubr.bf16.gmra.mrb[0].mxu0 %v554
        %v752 = vpop.f32.mrb[0].mxu0
        %v753 = vadd.f32 %v476, %v752
        %v754 = vpop.f32.mrb[0].mxu0
        %v755 = vpop.f32.mrb[0].mxu0
        %v756 = vadd.f32 %v476, %v755
        %v757 = vpop.f32.mrb[0].mxu0
        %758 = vmatprep.mubr.bf16.mxu0 0
        %759 = vmatmul.mubr.bf16.gmra.mrb[0].mxu0 %v555
        %v760 = vpop.f32.mrb[0].mxu0
        %v761 = vadd.f32 %v476, %v760
        %v762 = vpop.f32.mrb[0].mxu0
        %v763 = vpop.f32.mrb[0].mxu0
        %v764 = vadd.f32 %v476, %v763
        %v765 = vpop.f32.mrb[0].mxu0
        %766 = vmatprep.mubr.bf16.mxu0 0
        %767 = vmatmul.mubr.bf16.gmra.mrb[0].mxu0 %v556
        %v768 = vpop.f32.mrb[0].mxu0
        %v769 = vadd.f32 %v476, %v768
        %v770 = vpop.f32.mrb[0].mxu0
        %v771 = vpop.f32.mrb[0].mxu0
        %v772 = vadd.f32 %v476, %v771
        %v773 = vpop.f32.mrb[0].mxu0
        %774 = vmatprep.mubr.bf16.mxu0 0
        %775 = vmatmul.mubr.bf16.gmra.mrb[0].mxu0 %v557
        %v776 = vpop.f32.mrb[0].mxu0
        %v777 = vadd.f32 %v476, %v776
        %v778 = vpop.f32.mrb[0].mxu0
        %v779 = vpop.f32.mrb[0].mxu0
        %v780 = vadd.f32 %v476, %v779
        %v781 = vpop.f32.mrb[0].mxu0
        %782 = vdwg.mxu0
        %v783 = vmax.f32 %v657, 0.0
        %v784 = vmax.f32 %v660, 0.0
        %v785 = vmax.f32 %v665, 0.0
        %v786 = vmax.f32 %v668, 0.0
        %v787 = vmax.f32 %v673, 0.0
        %v788 = vmax.f32 %v676, 0.0
        %v789 = vmax.f32 %v681, 0.0
        %v790 = vmax.f32 %v684, 0.0
        %v791 = vmax.f32 %v689, 0.0
        %v792 = vmax.f32 %v692, 0.0
        %v793 = vmax.f32 %v697, 0.0
        %v794 = vmax.f32 %v700, 0.0
        %v795 = vmax.f32 %v705, 0.0
        %v796 = vmax.f32 %v708, 0.0
        %v797 = vmax.f32 %v713, 0.0
        %v798 = vmax.f32 %v716, 0.0
        %v799 = vmax.f32 %v721, 0.0
        %v800 = vmax.f32 %v724, 0.0
        %v801 = vmax.f32 %v729, 0.0
        %v802 = vmax.f32 %v732, 0.0
        %v803 = vmax.f32 %v737, 0.0
        %v804 = vmax.f32 %v740, 0.0
        %v805 = vmax.f32 %v745, 0.0
        %v806 = vmax.f32 %v748, 0.0
        %v807 = vmax.f32 %v753, 0.0
        %v808 = vmax.f32 %v756, 0.0
        %v809 = vmax.f32 %v761, 0.0
        %v810 = vmax.f32 %v764, 0.0
        %v811 = vmax.f32 %v769, 0.0
        %v812 = vmax.f32 %v772, 0.0
        %v813 = vmax.f32 %v777, 0.0
        %v814 = vmax.f32 %v780, 0.0
        %v815 = vld [vmem:[%s420] sm:$0xf]
        %v816 = vld [vmem:[%s420 + $0x4] sm:$0xf]
        %v817 = vld [vmem:[%s420 + $0x8] sm:$0xf]
        %v818 = vld [vmem:[%s420 + $0xc] sm:$0xf]
        %v823 = vunpack.c.l.b16 %v815
        %v824 = vunpack.c.l.b16 %v816
        %v825 = vunpack.c.l.b16 %v817
        %v826 = vunpack.c.l.b16 %v818
        %v827 = vpack.c.b16 %v824, %v823
        %v828 = vpack.c.b16 %v826, %v825
        %831 = vmatprep.subr.bf16.mxu0 0
        %832 = vmatpush1.bf16.msra.mxu0 %v606
        %833 = vmatprep.subr.bf16.mxu0 0
        %834 = vmatpush1.bf16.msra.mxu0 %v607
        %835 = vmatprep.subr.bf16.mxu0 0
        %836 = vmatpush1.bf16.msra.mxu0 %v608
        %837 = vmatprep.subr.bf16.mxu0 0
        %838 = vmatpush1.bf16.msra.mxu0 %v609
        %839 = vmatprep.subr.bf16.mxu0 0
        %840 = vmatpush1.bf16.msra.mxu0 %v610
        %841 = vmatprep.subr.bf16.mxu0 0
        %842 = vmatpush1.bf16.msra.mxu0 %v611
        %843 = vmatprep.subr.bf16.mxu0 0
        %844 = vmatpush1.bf16.msra.mxu0 %v612
        %845 = vmatprep.subr.bf16.mxu0 0
        %846 = vmatpush1.bf16.msra.mxu0 %v613
        %847 = vmatprep.subr.bf16.mxu0 0
        %848 = vmatpush1.bf16.msra.mxu0 0
        %849 = vmatprep.subr.bf16.mxu0 0
        %850 = vmatpush1.bf16.msra.mxu0 0
        %851 = vmatprep.subr.bf16.mxu0 0
        %852 = vmatpush1.bf16.msra.mxu0 0
        %853 = vmatprep.subr.bf16.mxu0 0
        %854 = vmatpush1.bf16.msra.mxu0 0
        %855 = vmatprep.subr.bf16.mxu0 0
        %856 = vmatpush1.bf16.msra.mxu0 0
        %857 = vmatprep.subr.bf16.mxu0 0
        %858 = vmatpush1.bf16.msra.mxu0 0
        %859 = vmatprep.subr.bf16.mxu0 0
        %860 = vmatpush1.bf16.msra.mxu0 0
        %861 = vmatprep.subr.bf16.mxu0 0
        %862 = vmatpush1.bf16.msra.mxu0 0
        %863 = vmatprep.mubr.bf16.mxu0 0
        %864 = vmatmul.mubr.bf16.gmra.mrb[0].mxu0 %v827
        %v865 = vpop.f32.mrb[0].mxu0
        %v866 = vadd.f32 %v476, %v865
        %v867 = vpop.f32.mrb[0].mxu0
        %v868 = vpop.f32.mrb[0].mxu0
        %v869 = vadd.f32 %v476, %v868
        %v870 = vpop.f32.mrb[0].mxu0
        %871 = vmatprep.mubr.bf16.mxu0 0
        %872 = vmatmul.mubr.bf16.gmra.mrb[0].mxu0 %v828
        %v873 = vpop.f32.mrb[0].mxu0
        %v874 = vadd.f32 %v476, %v873
        %v875 = vpop.f32.mrb[0].mxu0
        %v876 = vpop.f32.mrb[0].mxu0
        %v877 = vadd.f32 %v476, %v876
        %v878 = vpop.f32.mrb[0].mxu0
        %879 = vdwg.mxu0
        %v880 = vmax.f32 %v866, 0.0
        %v881 = vmax.f32 %v869, 0.0
        %v882 = vmax.f32 %v874, 0.0
        %v883 = vmax.f32 %v877, 0.0
        %v884 = vlaneseq
        %v885 = vshrl.u32 %v884, 7
        %v886 = vadd.s32 %v885, 8
        %v887 = vadd.s32 %v885, 16
        %v888 = vadd.s32 %v885, 24
        %v889 = vadd.s32 %v885, 32
        %v890 = vadd.s32 %v885, 40
        %v891 = vadd.s32 %v885, 48
        %v892 = vadd.s32 %v885, 56
        %v893 = vadd.s32 %v885, 64
        %v894 = vadd.s32 %v885, 72
        %v895 = vadd.s32 %v885, 80
        %v896 = vadd.s32 %v885, 88
        %v897 = vadd.s32 %v885, 96
        %v898 = vadd.s32 %v885, 104
        %v899 = vadd.s32 %v885, 112
        %v900 = vadd.s32 %v885, 120
        %v901 = vadd.s32 %v885, 128
        %v902 = vadd.s32 %v885, 136
        %v903 = vadd.s32 %v885, 144
        %v904 = vadd.s32 %v885, 152
        %v905 = vadd.s32 %v885, 160
        %v906 = vadd.s32 %v885, 168
        %v907 = vadd.s32 %v885, 176
        %v908 = vadd.s32 %v885, 184
        %v909 = vadd.s32 %v885, 192
        %v910 = vadd.s32 %v885, 200
        %v911 = vadd.s32 %v885, 208
        %v912 = vadd.s32 %v885, 216
        %v913 = vadd.s32 %v885, 224
        %v914 = vadd.s32 %v885, 232
        %v915 = vadd.s32 %v885, 240
        %v916 = vadd.s32 %v885, 248
        %vm917 = vcmp.lt.s32.totalorder %v885, 0
        %v918 = vsub.s32 0, %v885
        %v919 = vsel %vm917, %v918, %v885
        %v920 = vshrl.u32 %v919, 4
        %v921 = vand.u32 %v919, 15
        %v922 = vsub.s32 0, %v921
        %v923 = vsel %vm917, %v922, %v921
        %vm924 = vcmp.lt.s32.totalorder %v886, 0
        %v925 = vsub.s32 0, %v886
        %v926 = vsel %vm924, %v925, %v886
        %v927 = vshrl.u32 %v926, 4
        %v928 = vand.u32 %v926, 15
        %v929 = vsub.s32 0, %v928
        %v930 = vsel %vm924, %v929, %v928
        %vm931 = vcmp.lt.s32.totalorder %v887, 0
        %v932 = vsub.s32 0, %v887
        %v933 = vsel %vm931, %v932, %v887
        %v934 = vshrl.u32 %v933, 4
        %v935 = vand.u32 %v933, 15
        %v936 = vsub.s32 0, %v935
        %v937 = vsel %vm931, %v936, %v935
        %vm938 = vcmp.lt.s32.totalorder %v888, 0
        %v939 = vsub.s32 0, %v888
        %v940 = vsel %vm938, %v939, %v888
        %v941 = vshrl.u32 %v940, 4
        %v942 = vand.u32 %v940, 15
        %v943 = vsub.s32 0, %v942
        %v944 = vsel %vm938, %v943, %v942
        %vm945 = vcmp.lt.s32.totalorder %v889, 0
        %v946 = vsub.s32 0, %v889
        %v947 = vsel %vm945, %v946, %v889
        %v948 = vshrl.u32 %v947, 4
        %v949 = vand.u32 %v947, 15
        %v950 = vsub.s32 0, %v949
        %v951 = vsel %vm945, %v950, %v949
        %vm952 = vcmp.lt.s32.totalorder %v890, 0
        %v953 = vsub.s32 0, %v890
        %v954 = vsel %vm952, %v953, %v890
        %v955 = vshrl.u32 %v954, 4
        %v956 = vand.u32 %v954, 15
        %v957 = vsub.s32 0, %v956
        %v958 = vsel %vm952, %v957, %v956
        %vm959 = vcmp.lt.s32.totalorder %v891, 0
        %v960 = vsub.s32 0, %v891
        %v961 = vsel %vm959, %v960, %v891
        %v962 = vshrl.u32 %v961, 4
        %v963 = vand.u32 %v961, 15
        %v964 = vsub.s32 0, %v963
        %v965 = vsel %vm959, %v964, %v963
        %vm966 = vcmp.lt.s32.totalorder %v892, 0
        %v967 = vsub.s32 0, %v892
        %v968 = vsel %vm966, %v967, %v892
        %v969 = vshrl.u32 %v968, 4
        %v970 = vand.u32 %v968, 15
        %v971 = vsub.s32 0, %v970
        %v972 = vsel %vm966, %v971, %v970
        %vm973 = vcmp.lt.s32.totalorder %v893, 0
        %v974 = vsub.s32 0, %v893
        %v975 = vsel %vm973, %v974, %v893
        %v976 = vshrl.u32 %v975, 4
        %v977 = vand.u32 %v975, 15
        %v978 = vsub.s32 0, %v977
        %v979 = vsel %vm973, %v978, %v977
        %vm980 = vcmp.lt.s32.totalorder %v894, 0
        %v981 = vsub.s32 0, %v894
        %v982 = vsel %vm980, %v981, %v894
        %v983 = vshrl.u32 %v982, 4
        %v984 = vand.u32 %v982, 15
        %v985 = vsub.s32 0, %v984
        %v986 = vsel %vm980, %v985, %v984
        %vm987 = vcmp.lt.s32.totalorder %v895, 0
        %v988 = vsub.s32 0, %v895
        %v989 = vsel %vm987, %v988, %v895
        %v990 = vshrl.u32 %v989, 4
        %v991 = vand.u32 %v989, 15
        %v992 = vsub.s32 0, %v991
        %v993 = vsel %vm987, %v992, %v991
        %vm994 = vcmp.lt.s32.totalorder %v896, 0
        %v995 = vsub.s32 0, %v896
        %v996 = vsel %vm994, %v995, %v896
        %v997 = vshrl.u32 %v996, 4
        %v998 = vand.u32 %v996, 15
        %v999 = vsub.s32 0, %v998
        %v1000 = vsel %vm994, %v999, %v998
        %vm1001 = vcmp.lt.s32.totalorder %v897, 0
        %v1002 = vsub.s32 0, %v897
        %v1003 = vsel %vm1001, %v1002, %v897
        %v1004 = vshrl.u32 %v1003, 4
        %v1005 = vand.u32 %v1003, 15
        %v1006 = vsub.s32 0, %v1005
        %v1007 = vsel %vm1001, %v1006, %v1005
        %vm1008 = vcmp.lt.s32.totalorder %v898, 0
        %v1009 = vsub.s32 0, %v898
        %v1010 = vsel %vm1008, %v1009, %v898
        %v1011 = vshrl.u32 %v1010, 4
        %v1012 = vand.u32 %v1010, 15
        %v1013 = vsub.s32 0, %v1012
        %v1014 = vsel %vm1008, %v1013, %v1012
        %vm1015 = vcmp.lt.s32.totalorder %v899, 0
        %v1016 = vsub.s32 0, %v899
        %v1017 = vsel %vm1015, %v1016, %v899
        %v1018 = vshrl.u32 %v1017, 4
        %v1019 = vand.u32 %v1017, 15
        %v1020 = vsub.s32 0, %v1019
        %v1021 = vsel %vm1015, %v1020, %v1019
        %vm1022 = vcmp.lt.s32.totalorder %v900, 0
        %v1023 = vsub.s32 0, %v900
        %v1024 = vsel %vm1022, %v1023, %v900
        %v1025 = vshrl.u32 %v1024, 4
        %v1026 = vand.u32 %v1024, 15
        %v1027 = vsub.s32 0, %v1026
        %v1028 = vsel %vm1022, %v1027, %v1026
        %vm1029 = vcmp.lt.s32.totalorder %v901, 0
        %v1030 = vsub.s32 0, %v901
        %v1031 = vsel %vm1029, %v1030, %v901
        %v1032 = vshrl.u32 %v1031, 4
        %v1033 = vand.u32 %v1031, 15
        %v1034 = vsub.s32 0, %v1033
        %v1035 = vsel %vm1029, %v1034, %v1033
        %vm1036 = vcmp.lt.s32.totalorder %v902, 0
        %v1037 = vsub.s32 0, %v902
        %v1038 = vsel %vm1036, %v1037, %v902
        %v1039 = vshrl.u32 %v1038, 4
        %v1040 = vand.u32 %v1038, 15
        %v1041 = vsub.s32 0, %v1040
        %v1042 = vsel %vm1036, %v1041, %v1040
        %vm1043 = vcmp.lt.s32.totalorder %v903, 0
        %v1044 = vsub.s32 0, %v903
        %v1045 = vsel %vm1043, %v1044, %v903
        %v1046 = vshrl.u32 %v1045, 4
        %v1047 = vand.u32 %v1045, 15
        %v1048 = vsub.s32 0, %v1047
        %v1049 = vsel %vm1043, %v1048, %v1047
        %vm1050 = vcmp.lt.s32.totalorder %v904, 0
        %v1051 = vsub.s32 0, %v904
        %v1052 = vsel %vm1050, %v1051, %v904
        %v1053 = vshrl.u32 %v1052, 4
        %v1054 = vand.u32 %v1052, 15
        %v1055 = vsub.s32 0, %v1054
        %v1056 = vsel %vm1050, %v1055, %v1054
        %vm1057 = vcmp.lt.s32.totalorder %v905, 0
        %v1058 = vsub.s32 0, %v905
        %v1059 = vsel %vm1057, %v1058, %v905
        %v1060 = vshrl.u32 %v1059, 4
        %v1061 = vand.u32 %v1059, 15
        %v1062 = vsub.s32 0, %v1061
        %v1063 = vsel %vm1057, %v1062, %v1061
        %vm1064 = vcmp.lt.s32.totalorder %v906, 0
        %v1065 = vsub.s32 0, %v906
        %v1066 = vsel %vm1064, %v1065, %v906
        %v1067 = vshrl.u32 %v1066, 4
        %v1068 = vand.u32 %v1066, 15
        %v1069 = vsub.s32 0, %v1068
        %v1070 = vsel %vm1064, %v1069, %v1068
        %vm1071 = vcmp.lt.s32.totalorder %v907, 0
        %v1072 = vsub.s32 0, %v907
        %v1073 = vsel %vm1071, %v1072, %v907
        %v1074 = vshrl.u32 %v1073, 4
        %v1075 = vand.u32 %v1073, 15
        %v1076 = vsub.s32 0, %v1075
        %v1077 = vsel %vm1071, %v1076, %v1075
        %vm1078 = vcmp.lt.s32.totalorder %v908, 0
        %v1079 = vsub.s32 0, %v908
        %v1080 = vsel %vm1078, %v1079, %v908
        %v1081 = vshrl.u32 %v1080, 4
        %v1082 = vand.u32 %v1080, 15
        %v1083 = vsub.s32 0, %v1082
        %v1084 = vsel %vm1078, %v1083, %v1082
        %vm1085 = vcmp.lt.s32.totalorder %v909, 0
        %v1086 = vsub.s32 0, %v909
        %v1087 = vsel %vm1085, %v1086, %v909
        %v1088 = vshrl.u32 %v1087, 4
        %v1089 = vand.u32 %v1087, 15
        %v1090 = vsub.s32 0, %v1089
        %v1091 = vsel %vm1085, %v1090, %v1089
        %vm1092 = vcmp.lt.s32.totalorder %v910, 0
        %v1093 = vsub.s32 0, %v910
        %v1094 = vsel %vm1092, %v1093, %v910
        %v1095 = vshrl.u32 %v1094, 4
        %v1096 = vand.u32 %v1094, 15
        %v1097 = vsub.s32 0, %v1096
        %v1098 = vsel %vm1092, %v1097, %v1096
        %vm1099 = vcmp.lt.s32.totalorder %v911, 0
        %v1100 = vsub.s32 0, %v911
        %v1101 = vsel %vm1099, %v1100, %v911
        %v1102 = vshrl.u32 %v1101, 4
        %v1103 = vand.u32 %v1101, 15
        %v1104 = vsub.s32 0, %v1103
        %v1105 = vsel %vm1099, %v1104, %v1103
        %vm1106 = vcmp.lt.s32.totalorder %v912, 0
        %v1107 = vsub.s32 0, %v912
        %v1108 = vsel %vm1106, %v1107, %v912
        %v1109 = vshrl.u32 %v1108, 4
        %v1110 = vand.u32 %v1108, 15
        %v1111 = vsub.s32 0, %v1110
        %v1112 = vsel %vm1106, %v1111, %v1110
        %vm1113 = vcmp.lt.s32.totalorder %v913, 0
        %v1114 = vsub.s32 0, %v913
        %v1115 = vsel %vm1113, %v1114, %v913
        %v1116 = vshrl.u32 %v1115, 4
        %v1117 = vand.u32 %v1115, 15
        %v1118 = vsub.s32 0, %v1117
        %v1119 = vsel %vm1113, %v1118, %v1117
        %vm1120 = vcmp.lt.s32.totalorder %v914, 0
        %v1121 = vsub.s32 0, %v914
        %v1122 = vsel %vm1120, %v1121, %v914
        %v1123 = vshrl.u32 %v1122, 4
        %v1124 = vand.u32 %v1122, 15
        %v1125 = vsub.s32 0, %v1124
        %v1126 = vsel %vm1120, %v1125, %v1124
        %vm1127 = vcmp.lt.s32.totalorder %v915, 0
        %v1128 = vsub.s32 0, %v915
        %v1129 = vsel %vm1127, %v1128, %v915
        %v1130 = vshrl.u32 %v1129, 4
        %v1131 = vand.u32 %v1129, 15
        %v1132 = vsub.s32 0, %v1131
        %v1133 = vsel %vm1127, %v1132, %v1131
        %vm1134 = vcmp.lt.s32.totalorder %v916, 0
        %v1135 = vsub.s32 0, %v916
        %v1136 = vsel %vm1134, %v1135, %v916
        %v1137 = vshrl.u32 %v1136, 4
        %v1138 = vand.u32 %v1136, 15
        %v1139 = vsub.s32 0, %v1138
        %v1140 = vsel %vm1134, %v1139, %v1138
        %vm1141 = vcmp.ne.s32.totalorder %v923, 0
        %vm1142 = vcmp.ne.s32.totalorder %v930, 0
        %vm1143 = vcmp.ne.s32.totalorder %v937, 0
        %vm1144 = vcmp.ne.s32.totalorder %v944, 0
        %vm1145 = vcmp.ne.s32.totalorder %v951, 0
        %vm1146 = vcmp.ne.s32.totalorder %v958, 0
        %vm1147 = vcmp.ne.s32.totalorder %v965, 0
        %vm1148 = vcmp.ne.s32.totalorder %v972, 0
        %vm1149 = vcmp.ne.s32.totalorder %v979, 0
        %vm1150 = vcmp.ne.s32.totalorder %v986, 0
        %vm1151 = vcmp.ne.s32.totalorder %v993, 0
        %vm1152 = vcmp.ne.s32.totalorder %v1000, 0
        %vm1153 = vcmp.ne.s32.totalorder %v1007, 0
        %vm1154 = vcmp.ne.s32.totalorder %v1014, 0
        %vm1155 = vcmp.ne.s32.totalorder %v1021, 0
        %vm1156 = vcmp.ne.s32.totalorder %v1028, 0
        %vm1157 = vcmp.ne.s32.totalorder %v1035, 0
        %vm1158 = vcmp.ne.s32.totalorder %v1042, 0
        %vm1159 = vcmp.ne.s32.totalorder %v1049, 0
        %vm1160 = vcmp.ne.s32.totalorder %v1056, 0
        %vm1161 = vcmp.ne.s32.totalorder %v1063, 0
        %vm1162 = vcmp.ne.s32.totalorder %v1070, 0
        %vm1163 = vcmp.ne.s32.totalorder %v1077, 0
        %vm1164 = vcmp.ne.s32.totalorder %v1084, 0
        %vm1165 = vcmp.ne.s32.totalorder %v1091, 0
        %vm1166 = vcmp.ne.s32.totalorder %v1098, 0
        %vm1167 = vcmp.ne.s32.totalorder %v1105, 0
        %vm1168 = vcmp.ne.s32.totalorder %v1112, 0
        %vm1169 = vcmp.ne.s32.totalorder %v1119, 0
        %vm1170 = vcmp.ne.s32.totalorder %v1126, 0
        %vm1171 = vcmp.ne.s32.totalorder %v1133, 0
        %vm1172 = vcmp.ne.s32.totalorder %v1140, 0
        %vm1173 = vcmp.lt.s32.totalorder %v923, 0
        %vm1174 = vcmp.lt.s32.totalorder %v930, 0
        %vm1175 = vcmp.lt.s32.totalorder %v937, 0
        %vm1176 = vcmp.lt.s32.totalorder %v944, 0
        %vm1177 = vcmp.lt.s32.totalorder %v951, 0
        %vm1178 = vcmp.lt.s32.totalorder %v958, 0
        %vm1179 = vcmp.lt.s32.totalorder %v965, 0
        %vm1180 = vcmp.lt.s32.totalorder %v972, 0
        %vm1181 = vcmp.lt.s32.totalorder %v979, 0
        %vm1182 = vcmp.lt.s32.totalorder %v986, 0
        %vm1183 = vcmp.lt.s32.totalorder %v993, 0
        %vm1184 = vcmp.lt.s32.totalorder %v1000, 0
        %vm1185 = vcmp.lt.s32.totalorder %v1007, 0
        %vm1186 = vcmp.lt.s32.totalorder %v1014, 0
        %vm1187 = vcmp.lt.s32.totalorder %v1021, 0
        %vm1188 = vcmp.lt.s32.totalorder %v1028, 0
        %vm1189 = vcmp.lt.s32.totalorder %v1035, 0
        %vm1190 = vcmp.lt.s32.totalorder %v1042, 0
        %vm1191 = vcmp.lt.s32.totalorder %v1049, 0
        %vm1192 = vcmp.lt.s32.totalorder %v1056, 0
        %vm1193 = vcmp.lt.s32.totalorder %v1063, 0
        %vm1194 = vcmp.lt.s32.totalorder %v1070, 0
        %vm1195 = vcmp.lt.s32.totalorder %v1077, 0
        %vm1196 = vcmp.lt.s32.totalorder %v1084, 0
        %vm1197 = vcmp.lt.s32.totalorder %v1091, 0
        %vm1198 = vcmp.lt.s32.totalorder %v1098, 0
        %vm1199 = vcmp.lt.s32.totalorder %v1105, 0
        %vm1200 = vcmp.lt.s32.totalorder %v1112, 0
        %vm1201 = vcmp.lt.s32.totalorder %v1119, 0
        %vm1202 = vcmp.lt.s32.totalorder %v1126, 0
        %vm1203 = vcmp.lt.s32.totalorder %v1133, 0
        %vm1204 = vcmp.lt.s32.totalorder %v1140, 0
        %vm1205 = vmand %vm1173, %vm1141
        %vm1206 = vmand %vm1174, %vm1142
        %vm1207 = vmand %vm1175, %vm1143
        %vm1208 = vmand %vm1176, %vm1144
        %vm1209 = vmand %vm1177, %vm1145
        %vm1210 = vmand %vm1178, %vm1146
        %vm1211 = vmand %vm1179, %vm1147
        %vm1212 = vmand %vm1180, %vm1148
        %vm1213 = vmand %vm1181, %vm1149
        %vm1214 = vmand %vm1182, %vm1150
        %vm1215 = vmand %vm1183, %vm1151
        %vm1216 = vmand %vm1184, %vm1152
        %vm1217 = vmand %vm1185, %vm1153
        %vm1218 = vmand %vm1186, %vm1154
        %vm1219 = vmand %vm1187, %vm1155
        %vm1220 = vmand %vm1188, %vm1156
        %vm1221 = vmand %vm1189, %vm1157
        %vm1222 = vmand %vm1190, %vm1158
        %vm1223 = vmand %vm1191, %vm1159
        %vm1224 = vmand %vm1192, %vm1160
        %vm1225 = vmand %vm1193, %vm1161
        %vm1226 = vmand %vm1194, %vm1162
        %vm1227 = vmand %vm1195, %vm1163
        %vm1228 = vmand %vm1196, %vm1164
        %vm1229 = vmand %vm1197, %vm1165
        %vm1230 = vmand %vm1198, %vm1166
        %vm1231 = vmand %vm1199, %vm1167
        %vm1232 = vmand %vm1200, %vm1168
        %vm1233 = vmand %vm1201, %vm1169
        %vm1234 = vmand %vm1202, %vm1170
        %vm1235 = vmand %vm1203, %vm1171
        %vm1236 = vmand %vm1204, %vm1172
        %v1237 = vadd.s32 %v923, 16
        %v1238 = vadd.s32 %v930, 16
        %v1239 = vadd.s32 %v937, 16
        %v1240 = vadd.s32 %v944, 16
        %v1241 = vadd.s32 %v951, 16
        %v1242 = vadd.s32 %v958, 16
        %v1243 = vadd.s32 %v965, 16
        %v1244 = vadd.s32 %v972, 16
        %v1245 = vadd.s32 %v979, 16
        %v1246 = vadd.s32 %v986, 16
        %v1247 = vadd.s32 %v993, 16
        %v1248 = vadd.s32 %v1000, 16
        %v1249 = vadd.s32 %v1007, 16
        %v1250 = vadd.s32 %v1014, 16
        %v1251 = vadd.s32 %v1021, 16
        %v1252 = vadd.s32 %v1028, 16
        %v1253 = vadd.s32 %v1035, 16
        %v1254 = vadd.s32 %v1042, 16
        %v1255 = vadd.s32 %v1049, 16
        %v1256 = vadd.s32 %v1056, 16
        %v1257 = vadd.s32 %v1063, 16
        %v1258 = vadd.s32 %v1070, 16
        %v1259 = vadd.s32 %v1077, 16
        %v1260 = vadd.s32 %v1084, 16
        %v1261 = vadd.s32 %v1091, 16
        %v1262 = vadd.s32 %v1098, 16
        %v1263 = vadd.s32 %v1105, 16
        %v1264 = vadd.s32 %v1112, 16
        %v1265 = vadd.s32 %v1119, 16
        %v1266 = vadd.s32 %v1126, 16
        %v1267 = vadd.s32 %v1133, 16
        %v1268 = vadd.s32 %v1140, 16
        %v1269 = vsel %vm1205, %v1237, %v923
        %v1270 = vsel %vm1206, %v1238, %v930
        %v1271 = vsel %vm1207, %v1239, %v937
        %v1272 = vsel %vm1208, %v1240, %v944
        %v1273 = vsel %vm1209, %v1241, %v951
        %v1274 = vsel %vm1210, %v1242, %v958
        %v1275 = vsel %vm1211, %v1243, %v965
        %v1276 = vsel %vm1212, %v1244, %v972
        %v1277 = vsel %vm1213, %v1245, %v979
        %v1278 = vsel %vm1214, %v1246, %v986
        %v1279 = vsel %vm1215, %v1247, %v993
        %v1280 = vsel %vm1216, %v1248, %v1000
        %v1281 = vsel %vm1217, %v1249, %v1007
        %v1282 = vsel %vm1218, %v1250, %v1014
        %v1283 = vsel %vm1219, %v1251, %v1021
        %v1284 = vsel %vm1220, %v1252, %v1028
        %v1285 = vsel %vm1221, %v1253, %v1035
        %v1286 = vsel %vm1222, %v1254, %v1042
        %v1287 = vsel %vm1223, %v1255, %v1049
        %v1288 = vsel %vm1224, %v1256, %v1056
        %v1289 = vsel %vm1225, %v1257, %v1063
        %v1290 = vsel %vm1226, %v1258, %v1070
        %v1291 = vsel %vm1227, %v1259, %v1077
        %v1292 = vsel %vm1228, %v1260, %v1084
        %v1293 = vsel %vm1229, %v1261, %v1091
        %v1294 = vsel %vm1230, %v1262, %v1098
        %v1295 = vsel %vm1231, %v1263, %v1105
        %v1296 = vsel %vm1232, %v1264, %v1112
        %v1297 = vsel %vm1233, %v1265, %v1119
        %v1298 = vsel %vm1234, %v1266, %v1126
        %v1299 = vsel %vm1235, %v1267, %v1133
        %v1300 = vsel %vm1236, %v1268, %v1140
        %vm1301 = vcmp.ne.s32.totalorder %v1269, 0
        %vm1302 = vcmp.ne.s32.totalorder %v1270, 0
        %vm1303 = vcmp.ne.s32.totalorder %v1271, 0
        %vm1304 = vcmp.ne.s32.totalorder %v1272, 0
        %vm1305 = vcmp.ne.s32.totalorder %v1273, 0
        %vm1306 = vcmp.ne.s32.totalorder %v1274, 0
        %vm1307 = vcmp.ne.s32.totalorder %v1275, 0
        %vm1308 = vcmp.ne.s32.totalorder %v1276, 0
        %vm1309 = vcmp.ne.s32.totalorder %v1277, 0
        %vm1310 = vcmp.ne.s32.totalorder %v1278, 0
        %vm1311 = vcmp.ne.s32.totalorder %v1279, 0
        %vm1312 = vcmp.ne.s32.totalorder %v1280, 0
        %vm1313 = vcmp.ne.s32.totalorder %v1281, 0
        %vm1314 = vcmp.ne.s32.totalorder %v1282, 0
        %vm1315 = vcmp.ne.s32.totalorder %v1283, 0
        %vm1316 = vcmp.ne.s32.totalorder %v1284, 0
        %vm1317 = vcmp.ne.s32.totalorder %v1285, 0
        %vm1318 = vcmp.ne.s32.totalorder %v1286, 0
        %vm1319 = vcmp.ne.s32.totalorder %v1287, 0
        %vm1320 = vcmp.ne.s32.totalorder %v1288, 0
        %vm1321 = vcmp.ne.s32.totalorder %v1289, 0
        %vm1322 = vcmp.ne.s32.totalorder %v1290, 0
        %vm1323 = vcmp.ne.s32.totalorder %v1291, 0
        %vm1324 = vcmp.ne.s32.totalorder %v1292, 0
        %vm1325 = vcmp.ne.s32.totalorder %v1293, 0
        %vm1326 = vcmp.ne.s32.totalorder %v1294, 0
        %vm1327 = vcmp.ne.s32.totalorder %v1295, 0
        %vm1328 = vcmp.ne.s32.totalorder %v1296, 0
        %vm1329 = vcmp.ne.s32.totalorder %v1297, 0
        %vm1330 = vcmp.ne.s32.totalorder %v1298, 0
        %vm1331 = vcmp.ne.s32.totalorder %v1299, 0
        %vm1332 = vcmp.ne.s32.totalorder %v1300, 0
        %v1333 = vsel %vm1301, 1, 0
        %v1334 = vsel %vm1302, 1, 0
        %v1335 = vsel %vm1303, 1, 0
        %v1336 = vsel %vm1304, 1, 0
        %v1337 = vsel %vm1305, 1, 0
        %v1338 = vsel %vm1306, 1, 0
        %v1339 = vsel %vm1307, 1, 0
        %v1340 = vsel %vm1308, 1, 0
        %v1341 = vsel %vm1309, 1, 0
        %v1342 = vsel %vm1310, 1, 0
        %v1343 = vsel %vm1311, 1, 0
        %v1344 = vsel %vm1312, 1, 0
        %v1345 = vsel %vm1313, 1, 0
        %v1346 = vsel %vm1314, 1, 0
        %v1347 = vsel %vm1315, 1, 0
        %v1348 = vsel %vm1316, 1, 0
        %v1349 = vsel %vm1317, 1, 0
        %v1350 = vsel %vm1318, 1, 0
        %v1351 = vsel %vm1319, 1, 0
        %v1352 = vsel %vm1320, 1, 0
        %v1353 = vsel %vm1321, 1, 0
        %v1354 = vsel %vm1322, 1, 0
        %v1355 = vsel %vm1323, 1, 0
        %v1356 = vsel %vm1324, 1, 0
        %v1357 = vsel %vm1325, 1, 0
        %v1358 = vsel %vm1326, 1, 0
        %v1359 = vsel %vm1327, 1, 0
        %v1360 = vsel %vm1328, 1, 0
        %v1361 = vsel %vm1329, 1, 0
        %v1362 = vsel %vm1330, 1, 0
        %v1363 = vsel %vm1331, 1, 0
        %v1364 = vsel %vm1332, 1, 0
        %v1365 = vcvt.s32.f32 %v1333
        %v1366 = vcvt.s32.f32 %v1334
        %v1367 = vcvt.s32.f32 %v1335
        %v1368 = vcvt.s32.f32 %v1336
        %v1369 = vcvt.s32.f32 %v1337
        %v1370 = vcvt.s32.f32 %v1338
        %v1371 = vcvt.s32.f32 %v1339
        %v1372 = vcvt.s32.f32 %v1340
        %v1373 = vcvt.s32.f32 %v1341
        %v1374 = vcvt.s32.f32 %v1342
        %v1375 = vcvt.s32.f32 %v1343
        %v1376 = vcvt.s32.f32 %v1344
        %v1377 = vcvt.s32.f32 %v1345
        %v1378 = vcvt.s32.f32 %v1346
        %v1379 = vcvt.s32.f32 %v1347
        %v1380 = vcvt.s32.f32 %v1348
        %v1381 = vcvt.s32.f32 %v1349
        %v1382 = vcvt.s32.f32 %v1350
        %v1383 = vcvt.s32.f32 %v1351
        %v1384 = vcvt.s32.f32 %v1352
        %v1385 = vcvt.s32.f32 %v1353
        %v1386 = vcvt.s32.f32 %v1354
        %v1387 = vcvt.s32.f32 %v1355
        %v1388 = vcvt.s32.f32 %v1356
        %v1389 = vcvt.s32.f32 %v1357
        %v1390 = vcvt.s32.f32 %v1358
        %v1391 = vcvt.s32.f32 %v1359
        %v1392 = vcvt.s32.f32 %v1360
        %v1393 = vcvt.s32.f32 %v1361
        %v1394 = vcvt.s32.f32 %v1362
        %v1395 = vcvt.s32.f32 %v1363
        %v1396 = vcvt.s32.f32 %v1364
        %vm1397 = vcmp.ne.s32.totalorder %v1269, 15
        %vm1398 = vcmp.ne.s32.totalorder %v1270, 15
        %vm1399 = vcmp.ne.s32.totalorder %v1271, 15
        %vm1400 = vcmp.ne.s32.totalorder %v1272, 15
        %vm1401 = vcmp.ne.s32.totalorder %v1273, 15
        %vm1402 = vcmp.ne.s32.totalorder %v1274, 15
        %vm1403 = vcmp.ne.s32.totalorder %v1275, 15
        %vm1404 = vcmp.ne.s32.totalorder %v1276, 15
        %vm1405 = vcmp.ne.s32.totalorder %v1277, 15
        %vm1406 = vcmp.ne.s32.totalorder %v1278, 15
        %vm1407 = vcmp.ne.s32.totalorder %v1279, 15
        %vm1408 = vcmp.ne.s32.totalorder %v1280, 15
        %vm1409 = vcmp.ne.s32.totalorder %v1281, 15
        %vm1410 = vcmp.ne.s32.totalorder %v1282, 15
        %vm1411 = vcmp.ne.s32.totalorder %v1283, 15
        %vm1412 = vcmp.ne.s32.totalorder %v1284, 15
        %vm1413 = vcmp.ne.s32.totalorder %v1285, 15
        %vm1414 = vcmp.ne.s32.totalorder %v1286, 15
        %vm1415 = vcmp.ne.s32.totalorder %v1287, 15
        %vm1416 = vcmp.ne.s32.totalorder %v1288, 15
        %vm1417 = vcmp.ne.s32.totalorder %v1289, 15
        %vm1418 = vcmp.ne.s32.totalorder %v1290, 15
        %vm1419 = vcmp.ne.s32.totalorder %v1291, 15
        %vm1420 = vcmp.ne.s32.totalorder %v1292, 15
        %vm1421 = vcmp.ne.s32.totalorder %v1293, 15
        %vm1422 = vcmp.ne.s32.totalorder %v1294, 15
        %vm1423 = vcmp.ne.s32.totalorder %v1295, 15
        %vm1424 = vcmp.ne.s32.totalorder %v1296, 15
        %vm1425 = vcmp.ne.s32.totalorder %v1297, 15
        %vm1426 = vcmp.ne.s32.totalorder %v1298, 15
        %vm1427 = vcmp.ne.s32.totalorder %v1299, 15
        %vm1428 = vcmp.ne.s32.totalorder %v1300, 15
        %v1429 = vsel %vm1397, 1, 0
        %v1430 = vsel %vm1398, 1, 0
        %v1431 = vsel %vm1399, 1, 0
        %v1432 = vsel %vm1400, 1, 0
        %v1433 = vsel %vm1401, 1, 0
        %v1434 = vsel %vm1402, 1, 0
        %v1435 = vsel %vm1403, 1, 0
        %v1436 = vsel %vm1404, 1, 0
        %v1437 = vsel %vm1405, 1, 0
        %v1438 = vsel %vm1406, 1, 0
        %v1439 = vsel %vm1407, 1, 0
        %v1440 = vsel %vm1408, 1, 0
        %v1441 = vsel %vm1409, 1, 0
        %v1442 = vsel %vm1410, 1, 0
        %v1443 = vsel %vm1411, 1, 0
        %v1444 = vsel %vm1412, 1, 0
        %v1445 = vsel %vm1413, 1, 0
        %v1446 = vsel %vm1414, 1, 0
        %v1447 = vsel %vm1415, 1, 0
        %v1448 = vsel %vm1416, 1, 0
        %v1449 = vsel %vm1417, 1, 0
        %v1450 = vsel %vm1418, 1, 0
        %v1451 = vsel %vm1419, 1, 0
        %v1452 = vsel %vm1420, 1, 0
        %v1453 = vsel %vm1421, 1, 0
        %v1454 = vsel %vm1422, 1, 0
        %v1455 = vsel %vm1423, 1, 0
        %v1456 = vsel %vm1424, 1, 0
        %v1457 = vsel %vm1425, 1, 0
        %v1458 = vsel %vm1426, 1, 0
        %v1459 = vsel %vm1427, 1, 0
        %v1460 = vsel %vm1428, 1, 0
        %v1461 = vcvt.s32.f32 %v1429
        %v1462 = vcvt.s32.f32 %v1430
        %v1463 = vcvt.s32.f32 %v1431
        %v1464 = vcvt.s32.f32 %v1432
        %v1465 = vcvt.s32.f32 %v1433
        %v1466 = vcvt.s32.f32 %v1434
        %v1467 = vcvt.s32.f32 %v1435
        %v1468 = vcvt.s32.f32 %v1436
        %v1469 = vcvt.s32.f32 %v1437
        %v1470 = vcvt.s32.f32 %v1438
        %v1471 = vcvt.s32.f32 %v1439
        %v1472 = vcvt.s32.f32 %v1440
        %v1473 = vcvt.s32.f32 %v1441
        %v1474 = vcvt.s32.f32 %v1442
        %v1475 = vcvt.s32.f32 %v1443
        %v1476 = vcvt.s32.f32 %v1444
        %v1477 = vcvt.s32.f32 %v1445
        %v1478 = vcvt.s32.f32 %v1446
        %v1479 = vcvt.s32.f32 %v1447
        %v1480 = vcvt.s32.f32 %v1448
        %v1481 = vcvt.s32.f32 %v1449
        %v1482 = vcvt.s32.f32 %v1450
        %v1483 = vcvt.s32.f32 %v1451
        %v1484 = vcvt.s32.f32 %v1452
        %v1485 = vcvt.s32.f32 %v1453
        %v1486 = vcvt.s32.f32 %v1454
        %v1487 = vcvt.s32.f32 %v1455
        %v1488 = vcvt.s32.f32 %v1456
        %v1489 = vcvt.s32.f32 %v1457
        %v1490 = vcvt.s32.f32 %v1458
        %v1491 = vcvt.s32.f32 %v1459
        %v1492 = vcvt.s32.f32 %v1460
        %v1493 = vrot.slane %v783, 7
        %v1494 = vrot.slane %v784, 7
        %v1495 = vrot.slane %v785, 7
        %v1496 = vrot.slane %v786, 7
        %v1497 = vrot.slane %v787, 7
        %v1498 = vrot.slane %v788, 7
        %v1499 = vrot.slane %v789, 7
        %v1500 = vrot.slane %v790, 7
        %v1501 = vrot.slane %v791, 7
        %v1502 = vrot.slane %v792, 7
        %v1503 = vrot.slane %v793, 7
        %v1504 = vrot.slane %v794, 7
        %v1505 = vrot.slane %v795, 7
        %v1506 = vrot.slane %v796, 7
        %v1507 = vrot.slane %v797, 7
        %v1508 = vrot.slane %v798, 7
        %v1509 = vrot.slane %v799, 7
        %v1510 = vrot.slane %v800, 7
        %v1511 = vrot.slane %v801, 7
        %v1512 = vrot.slane %v802, 7
        %v1513 = vrot.slane %v803, 7
        %v1514 = vrot.slane %v804, 7
        %v1515 = vrot.slane %v805, 7
        %v1516 = vrot.slane %v806, 7
        %v1517 = vrot.slane %v807, 7
        %v1518 = vrot.slane %v808, 7
        %v1519 = vrot.slane %v809, 7
        %v1520 = vrot.slane %v810, 7
        %v1521 = vrot.slane %v811, 7
        %v1522 = vrot.slane %v812, 7
        %v1523 = vrot.slane %v813, 7
        %v1524 = vrot.slane %v814, 7
        %vm1525 = vcmp.lt.s32.totalorder %v885, 1
        %v1526 = vsel %vm1525, %v1523, %v1524
        %v1527 = vsel %vm1525, %v1522, %v1523
        %v1528 = vsel %vm1525, %v1521, %v1522
        %v1529 = vsel %vm1525, %v1520, %v1521
        %v1530 = vsel %vm1525, %v1519, %v1520
        %v1531 = vsel %vm1525, %v1518, %v1519
        %v1532 = vsel %vm1525, %v1517, %v1518
        %v1533 = vsel %vm1525, %v1516, %v1517
        %v1534 = vsel %vm1525, %v1515, %v1516
        %v1535 = vsel %vm1525, %v1514, %v1515
        %v1536 = vsel %vm1525, %v1513, %v1514
        %v1537 = vsel %vm1525, %v1512, %v1513
        %v1538 = vsel %vm1525, %v1511, %v1512
        %v1539 = vsel %vm1525, %v1510, %v1511
        %v1540 = vsel %vm1525, %v1509, %v1510
        %v1541 = vsel %vm1525, %v1508, %v1509
        %v1542 = vsel %vm1525, %v1507, %v1508
        %v1543 = vsel %vm1525, %v1506, %v1507
        %v1544 = vsel %vm1525, %v1505, %v1506
        %v1545 = vsel %vm1525, %v1504, %v1505
        %v1546 = vsel %vm1525, %v1503, %v1504
        %v1547 = vsel %vm1525, %v1502, %v1503
        %v1548 = vsel %vm1525, %v1501, %v1502
        %v1549 = vsel %vm1525, %v1500, %v1501
        %v1550 = vsel %vm1525, %v1499, %v1500
        %v1551 = vsel %vm1525, %v1498, %v1499
        %v1552 = vsel %vm1525, %v1497, %v1498
        %v1553 = vsel %vm1525, %v1496, %v1497
        %v1554 = vsel %vm1525, %v1495, %v1496
        %v1555 = vsel %vm1525, %v1494, %v1495
        %v1556 = vsel %vm1525, %v1493, %v1494
        %v1557 = vsel %vm1525, %v1524, %v1493
        %v1558 = vmul.f32 %v1557, %v1365
        %v1559 = vmul.f32 %v1556, %v1366
        %v1560 = vmul.f32 %v1555, %v1367
        %v1561 = vmul.f32 %v1554, %v1368
        %v1562 = vmul.f32 %v1553, %v1369
        %v1563 = vmul.f32 %v1552, %v1370
        %v1564 = vmul.f32 %v1551, %v1371
        %v1565 = vmul.f32 %v1550, %v1372
        %v1566 = vmul.f32 %v1549, %v1373
        %v1567 = vmul.f32 %v1548, %v1374
        %v1568 = vmul.f32 %v1547, %v1375
        %v1569 = vmul.f32 %v1546, %v1376
        %v1570 = vmul.f32 %v1545, %v1377
        %v1571 = vmul.f32 %v1544, %v1378
        %v1572 = vmul.f32 %v1543, %v1379
        %v1573 = vmul.f32 %v1542, %v1380
        %v1574 = vmul.f32 %v1541, %v1381
        %v1575 = vmul.f32 %v1540, %v1382
        %v1576 = vmul.f32 %v1539, %v1383
        %v1577 = vmul.f32 %v1538, %v1384
        %v1578 = vmul.f32 %v1537, %v1385
        %v1579 = vmul.f32 %v1536, %v1386
        %v1580 = vmul.f32 %v1535, %v1387
        %v1581 = vmul.f32 %v1534, %v1388
        %v1582 = vmul.f32 %v1533, %v1389
        %v1583 = vmul.f32 %v1532, %v1390
        %v1584 = vmul.f32 %v1531, %v1391
        %v1585 = vmul.f32 %v1530, %v1392
        %v1586 = vmul.f32 %v1529, %v1393
        %v1587 = vmul.f32 %v1528, %v1394
        %v1588 = vmul.f32 %v1527, %v1395
        %v1589 = vmul.f32 %v1526, %v1396
        %v1590 = vpack.c.bf16 %v1559, %v1558
        %v1591 = vpack.c.bf16 %v1561, %v1560
        %v1592 = vpack.c.bf16 %v1563, %v1562
        %v1593 = vpack.c.bf16 %v1565, %v1564
        %v1594 = vpack.c.bf16 %v1567, %v1566
        %v1595 = vpack.c.bf16 %v1569, %v1568
        %v1596 = vpack.c.bf16 %v1571, %v1570
        %v1597 = vpack.c.bf16 %v1573, %v1572
        %v1598 = vpack.c.bf16 %v1575, %v1574
        %v1599 = vpack.c.bf16 %v1577, %v1576
        %v1600 = vpack.c.bf16 %v1579, %v1578
        %v1601 = vpack.c.bf16 %v1581, %v1580
        %v1602 = vpack.c.bf16 %v1583, %v1582
        %v1603 = vpack.c.bf16 %v1585, %v1584
        %v1604 = vpack.c.bf16 %v1587, %v1586
        %v1605 = vpack.c.bf16 %v1589, %v1588
        %1606 = vst [vmem:[#allocation2 + $0x18] sm:$0xff] %v1590
        %1607 = vst [vmem:[#allocation2 + $0x30] sm:$0xff] %v1591
        %1608 = vst [vmem:[#allocation2 + $0x48] sm:$0xff] %v1592
        %1609 = vst [vmem:[#allocation2 + $0x60] sm:$0xff] %v1593
        %1610 = vst [vmem:[#allocation2 + $0x78] sm:$0xff] %v1594
        %1611 = vst [vmem:[#allocation2 + $0x90] sm:$0xff] %v1595
        %1612 = vst [vmem:[#allocation2 + $0xa8] sm:$0xff] %v1596
        %1613 = vst [vmem:[#allocation2 + $0xc0] sm:$0xff] %v1597
        %1614 = vst [vmem:[#allocation2 + $0xd8] sm:$0xff] %v1598
        %1615 = vst [vmem:[#allocation2 + $0xf0] sm:$0xff] %v1599
        %1616 = vst [vmem:[#allocation2 + $0x108] sm:$0xff] %v1600
        %1617 = vst [vmem:[#allocation2 + $0x120] sm:$0xff] %v1601
        %1618 = vst [vmem:[#allocation2 + $0x138] sm:$0xff] %v1602
        %1619 = vst [vmem:[#allocation2 + $0x150] sm:$0xff] %v1603
        %1620 = vst [vmem:[#allocation2 + $0x168] sm:$0xff] %v1604
        %1621 = vst [vmem:[#allocation2 + $0x180] sm:$0xff] %v1605
        %v1622 = vpack.c.bf16 %v784, %v783
        %v1623 = vpack.c.bf16 %v786, %v785
        %v1624 = vpack.c.bf16 %v788, %v787
        %v1625 = vpack.c.bf16 %v790, %v789
        %v1626 = vpack.c.bf16 %v792, %v791
        %v1627 = vpack.c.bf16 %v794, %v793
        %v1628 = vpack.c.bf16 %v796, %v795
        %v1629 = vpack.c.bf16 %v798, %v797
        %v1630 = vpack.c.bf16 %v800, %v799
        %v1631 = vpack.c.bf16 %v802, %v801
        %v1632 = vpack.c.bf16 %v804, %v803
        %v1633 = vpack.c.bf16 %v806, %v805
        %v1634 = vpack.c.bf16 %v808, %v807
        %v1635 = vpack.c.bf16 %v810, %v809
        %v1636 = vpack.c.bf16 %v812, %v811
        %v1637 = vpack.c.bf16 %v814, %v813
        %1638 = vst [vmem:[#allocation2 + $0x20] sm:$0xff] %v1622
        %1639 = vst [vmem:[#allocation2 + $0x38] sm:$0xff] %v1623
        %1640 = vst [vmem:[#allocation2 + $0x50] sm:$0xff] %v1624
        %1641 = vst [vmem:[#allocation2 + $0x68] sm:$0xff] %v1625
        %1642 = vst [vmem:[#allocation2 + $0x80] sm:$0xff] %v1626
        %1643 = vst [vmem:[#allocation2 + $0x98] sm:$0xff] %v1627
        %1644 = vst [vmem:[#allocation2 + $0xb0] sm:$0xff] %v1628
        %1645 = vst [vmem:[#allocation2 + $0xc8] sm:$0xff] %v1629
        %1646 = vst [vmem:[#allocation2 + $0xe0] sm:$0xff] %v1630
        %1647 = vst [vmem:[#allocation2 + $0xf8] sm:$0xff] %v1631
        %1648 = vst [vmem:[#allocation2 + $0x110] sm:$0xff] %v1632
        %1649 = vst [vmem:[#allocation2 + $0x128] sm:$0xff] %v1633
        %1650 = vst [vmem:[#allocation2 + $0x140] sm:$0xff] %v1634
        %1651 = vst [vmem:[#allocation2 + $0x158] sm:$0xff] %v1635
        %1652 = vst [vmem:[#allocation2 + $0x170] sm:$0xff] %v1636
        %1653 = vst [vmem:[#allocation2 + $0x188] sm:$0xff] %v1637
        %v1654 = vrot.slane %v783, 1
        %v1655 = vrot.slane %v784, 1
        %v1656 = vrot.slane %v785, 1
        %v1657 = vrot.slane %v786, 1
        %v1658 = vrot.slane %v787, 1
        %v1659 = vrot.slane %v788, 1
        %v1660 = vrot.slane %v789, 1
        %v1661 = vrot.slane %v790, 1
        %v1662 = vrot.slane %v791, 1
        %v1663 = vrot.slane %v792, 1
        %v1664 = vrot.slane %v793, 1
        %v1665 = vrot.slane %v794, 1
        %v1666 = vrot.slane %v795, 1
        %v1667 = vrot.slane %v796, 1
        %v1668 = vrot.slane %v797, 1
        %v1669 = vrot.slane %v798, 1
        %v1670 = vrot.slane %v799, 1
        %v1671 = vrot.slane %v800, 1
        %v1672 = vrot.slane %v801, 1
        %v1673 = vrot.slane %v802, 1
        %v1674 = vrot.slane %v803, 1
        %v1675 = vrot.slane %v804, 1
        %v1676 = vrot.slane %v805, 1
        %v1677 = vrot.slane %v806, 1
        %v1678 = vrot.slane %v807, 1
        %v1679 = vrot.slane %v808, 1
        %v1680 = vrot.slane %v809, 1
        %v1681 = vrot.slane %v810, 1
        %v1682 = vrot.slane %v811, 1
        %v1683 = vrot.slane %v812, 1
        %v1684 = vrot.slane %v813, 1
        %v1685 = vrot.slane %v814, 1
        %vm1686 = vcmp.lt.s32.totalorder %v885, 7
        %v1687 = vsel %vm1686, %v1684, %v1685
        %v1688 = vsel %vm1686, %v1683, %v1684
        %v1689 = vsel %vm1686, %v1682, %v1683
        %v1690 = vsel %vm1686, %v1681, %v1682
        %v1691 = vsel %vm1686, %v1680, %v1681
        %v1692 = vsel %vm1686, %v1679, %v1680
        %v1693 = vsel %vm1686, %v1678, %v1679
        %v1694 = vsel %vm1686, %v1677, %v1678
        %v1695 = vsel %vm1686, %v1676, %v1677
        %v1696 = vsel %vm1686, %v1675, %v1676
        %v1697 = vsel %vm1686, %v1674, %v1675
        %v1698 = vsel %vm1686, %v1673, %v1674
        %v1699 = vsel %vm1686, %v1672, %v1673
        %v1700 = vsel %vm1686, %v1671, %v1672
        %v1701 = vsel %vm1686, %v1670, %v1671
        %v1702 = vsel %vm1686, %v1669, %v1670
        %v1703 = vsel %vm1686, %v1668, %v1669
        %v1704 = vsel %vm1686, %v1667, %v1668
        %v1705 = vsel %vm1686, %v1666, %v1667
        %v1706 = vsel %vm1686, %v1665, %v1666
        %v1707 = vsel %vm1686, %v1664, %v1665
        %v1708 = vsel %vm1686, %v1663, %v1664
        %v1709 = vsel %vm1686, %v1662, %v1663
        %v1710 = vsel %vm1686, %v1661, %v1662
        %v1711 = vsel %vm1686, %v1660, %v1661
        %v1712 = vsel %vm1686, %v1659, %v1660
        %v1713 = vsel %vm1686, %v1658, %v1659
        %v1714 = vsel %vm1686, %v1657, %v1658
        %v1715 = vsel %vm1686, %v1656, %v1657
        %v1716 = vsel %vm1686, %v1655, %v1656
        %v1717 = vsel %vm1686, %v1654, %v1655
        %v1718 = vsel %vm1686, %v1685, %v1654
        %v1719 = vmul.f32 %v1717, %v1461
        %v1720 = vmul.f32 %v1716, %v1462
        %v1721 = vmul.f32 %v1715, %v1463
        %v1722 = vmul.f32 %v1714, %v1464
        %v1723 = vmul.f32 %v1713, %v1465
        %v1724 = vmul.f32 %v1712, %v1466
        %v1725 = vmul.f32 %v1711, %v1467
        %v1726 = vmul.f32 %v1710, %v1468
        %v1727 = vmul.f32 %v1709, %v1469
        %v1728 = vmul.f32 %v1708, %v1470
        %v1729 = vmul.f32 %v1707, %v1471
        %v1730 = vmul.f32 %v1706, %v1472
        %v1731 = vmul.f32 %v1705, %v1473
        %v1732 = vmul.f32 %v1704, %v1474
        %v1733 = vmul.f32 %v1703, %v1475
        %v1734 = vmul.f32 %v1702, %v1476
        %v1735 = vmul.f32 %v1701, %v1477
        %v1736 = vmul.f32 %v1700, %v1478
        %v1737 = vmul.f32 %v1699, %v1479
        %v1738 = vmul.f32 %v1698, %v1480
        %v1739 = vmul.f32 %v1697, %v1481
        %v1740 = vmul.f32 %v1696, %v1482
        %v1741 = vmul.f32 %v1695, %v1483
        %v1742 = vmul.f32 %v1694, %v1484
        %v1743 = vmul.f32 %v1693, %v1485
        %v1744 = vmul.f32 %v1692, %v1486
        %v1745 = vmul.f32 %v1691, %v1487
        %v1746 = vmul.f32 %v1690, %v1488
        %v1747 = vmul.f32 %v1689, %v1489
        %v1748 = vmul.f32 %v1688, %v1490
        %v1749 = vmul.f32 %v1687, %v1491
        %v1750 = vmul.f32 %v1718, %v1492
        %v1751 = vpack.c.bf16 %v1720, %v1719
        %v1752 = vpack.c.bf16 %v1722, %v1721
        %v1753 = vpack.c.bf16 %v1724, %v1723
        %v1754 = vpack.c.bf16 %v1726, %v1725
        %v1755 = vpack.c.bf16 %v1728, %v1727
        %v1756 = vpack.c.bf16 %v1730, %v1729
        %v1757 = vpack.c.bf16 %v1732, %v1731
        %v1758 = vpack.c.bf16 %v1734, %v1733
        %v1759 = vpack.c.bf16 %v1736, %v1735
        %v1760 = vpack.c.bf16 %v1738, %v1737
        %v1761 = vpack.c.bf16 %v1740, %v1739
        %v1762 = vpack.c.bf16 %v1742, %v1741
        %v1763 = vpack.c.bf16 %v1744, %v1743
        %v1764 = vpack.c.bf16 %v1746, %v1745
        %v1765 = vpack.c.bf16 %v1748, %v1747
        %v1766 = vpack.c.bf16 %v1750, %v1749
        %1767 = vst [vmem:[#allocation2 + $0x28] sm:$0xff] %v1751
        %1768 = vst [vmem:[#allocation2 + $0x40] sm:$0xff] %v1752
        %1769 = vst [vmem:[#allocation2 + $0x58] sm:$0xff] %v1753
        %1770 = vst [vmem:[#allocation2 + $0x70] sm:$0xff] %v1754
        %1771 = vst [vmem:[#allocation2 + $0x88] sm:$0xff] %v1755
        %1772 = vst [vmem:[#allocation2 + $0xa0] sm:$0xff] %v1756
        %1773 = vst [vmem:[#allocation2 + $0xb8] sm:$0xff] %v1757
        %1774 = vst [vmem:[#allocation2 + $0xd0] sm:$0xff] %v1758
        %1775 = vst [vmem:[#allocation2 + $0xe8] sm:$0xff] %v1759
        %1776 = vst [vmem:[#allocation2 + $0x100] sm:$0xff] %v1760
        %1777 = vst [vmem:[#allocation2 + $0x118] sm:$0xff] %v1761
        %1778 = vst [vmem:[#allocation2 + $0x130] sm:$0xff] %v1762
        %1779 = vst [vmem:[#allocation2 + $0x148] sm:$0xff] %v1763
        %1780 = vst [vmem:[#allocation2 + $0x160] sm:$0xff] %v1764
        %1781 = vst [vmem:[#allocation2 + $0x178] sm:$0xff] %v1765
        %1782 = vst [vmem:[#allocation2 + $0x190] sm:$0xff] %v1766
        %v1783 = vrot.slane %v880, 7
        %v1784 = vrot.slane %v881, 7
        %v1785 = vrot.slane %v882, 7
        %v1786 = vrot.slane %v883, 7
        %v1787 = vsel %vm1525, %v1785, %v1786
        %v1788 = vsel %vm1525, %v1784, %v1785
        %v1789 = vsel %vm1525, %v1783, %v1784
        %v1790 = vsel %vm1525, %v1786, %v1783
        %v1791 = vmul.f32 %v1790, %v1365
        %v1792 = vmul.f32 %v1789, %v1366
        %v1793 = vmul.f32 %v1788, %v1367
        %v1794 = vmul.f32 %v1787, %v1368
        %v1795 = vpack.c.bf16 %v1792, %v1791
        %v1796 = vpack.c.bf16 %v1794, %v1793
        %v1797 = vpack.c.bf16 %v881, %v880
        %v1798 = vpack.c.bf16 %v883, %v882
        %v1799 = vrot.slane %v880, 1
        %v1800 = vrot.slane %v881, 1
        %v1801 = vrot.slane %v882, 1
        %v1802 = vrot.slane %v883, 1
        %v1803 = vsel %vm1686, %v1801, %v1802
        %v1804 = vsel %vm1686, %v1800, %v1801
        %v1805 = vsel %vm1686, %v1799, %v1800
        %v1806 = vsel %vm1686, %v1802, %v1799
        %v1807 = vmul.f32 %v1805, %v1461
        %v1808 = vmul.f32 %v1804, %v1462
        %v1809 = vmul.f32 %v1803, %v1463
        %v1810 = vmul.f32 %v1806, %v1464
        %v1811 = vpack.c.bf16 %v1808, %v1807
        %v1812 = vpack.c.bf16 %v1810, %v1809
        %1813 = vst [vmem:[#allocation2] sm:$0xff] %v1795
        %1814 = vst [vmem:[#allocation2 + $0x8] sm:$0xff] %v1797
        %1815 = vst [vmem:[#allocation2 + $0x10] sm:$0xff] %v1811
        %1816 = vst [vmem:[#allocation2 + $0x198] sm:$0xff] %v1796
        %1817 = vst [vmem:[#allocation2 + $0x1a0] sm:$0xff] %v1798
        %1818 = vst [vmem:[#allocation2 + $0x1a8] sm:$0xff] %v1812
        %p1819 = scmp.eq.s32.totalorder %s32, 0
        // Predicated region
        $region69: #{bottleneck_forward_padded.1} parent=51 // pred_check
          %p1820 = pneg %p1819
        $region70: #{bottleneck_forward_padded.1} parent=51 // pred_check_branch
          %1822 = sbr.rel (%p1820) target = $region72
        $region71: #{bottleneck_forward_padded.1} parent=51 // pred_region
          %1823 = vst [vmem:[#allocation2] sm:$0xff] 0
          %1824 = vst [vmem:[#allocation2 + $0x8] sm:$0xff] 0
          %1825 = vst [vmem:[#allocation2 + $0x10] sm:$0xff] 0
          %1826 = vst [vmem:[#allocation2 + $0x198] sm:$0xff] 0
          %1827 = vst [vmem:[#allocation2 + $0x1a0] sm:$0xff] 0
          %1828 = vst [vmem:[#allocation2 + $0x1a8] sm:$0xff] 0
        $region72: #{bottleneck_forward_padded.1} parent=51 // pred_fallthru
          _
        %v1829 = vld [vmem:[#allocation2] sm:$0xff]
        %v1830 = vld [vmem:[#allocation2 + $0x8] sm:$0xff]
        %v1831 = vld [vmem:[#allocation2 + $0x10] sm:$0xff]
        %v1832 = vld [vmem:[#allocation2 + $0x18] sm:$0xff]
        %v1833 = vld [vmem:[#allocation2 + $0x20] sm:$0xff]
        %v1834 = vld [vmem:[#allocation2 + $0x28] sm:$0xff]
        %v1835 = vld [vmem:[#allocation2 + $0x30] sm:$0xff]
        %v1836 = vld [vmem:[#allocation2 + $0x38] sm:$0xff]
        %v1837 = vld [vmem:[#allocation2 + $0x40] sm:$0xff]
        %v1838 = vld [vmem:[#allocation2 + $0x48] sm:$0xff]
        %v1839 = vld [vmem:[#allocation2 + $0x50] sm:$0xff]
        %v1840 = vld [vmem:[#allocation2 + $0x58] sm:$0xff]
        %v1841 = vld [vmem:[#allocation2 + $0x60] sm:$0xff]
        %v1842 = vld [vmem:[#allocation2 + $0x68] sm:$0xff]
        %v1843 = vld [vmem:[#allocation2 + $0x70] sm:$0xff]
        %v1844 = vld [vmem:[#allocation2 + $0x78] sm:$0xff]
        %v1845 = vld [vmem:[#allocation2 + $0x80] sm:$0xff]
        %v1846 = vld [vmem:[#allocation2 + $0x88] sm:$0xff]
        %v1847 = vld [vmem:[#allocation2 + $0x90] sm:$0xff]
        %v1848 = vld [vmem:[#allocation2 + $0x98] sm:$0xff]
        %v1849 = vld [vmem:[#allocation2 + $0xa0] sm:$0xff]
        %v1850 = vld [vmem:[#allocation2 + $0xa8] sm:$0xff]
        %v1851 = vld [vmem:[#allocation2 + $0xb0] sm:$0xff]
        %v1852 = vld [vmem:[#allocation2 + $0xb8] sm:$0xff]
        %v1853 = vld [vmem:[#allocation2 + $0xc0] sm:$0xff]
        %v1854 = vld [vmem:[#allocation2 + $0xc8] sm:$0xff]
        %v1855 = vld [vmem:[#allocation2 + $0xd0] sm:$0xff]
        %v1856 = vld [vmem:[#allocation2 + $0xd8] sm:$0xff]
        %v1857 = vld [vmem:[#allocation2 + $0xe0] sm:$0xff]
        %v1858 = vld [vmem:[#allocation2 + $0xe8] sm:$0xff]
        %v1859 = vld [vmem:[#allocation2 + $0xf0] sm:$0xff]
        %v1860 = vld [vmem:[#allocation2 + $0xf8] sm:$0xff]
        %v1861 = vld [vmem:[#allocation2 + $0x100] sm:$0xff]
        %v1862 = vld [vmem:[#allocation2 + $0x108] sm:$0xff]
        %v1863 = vld [vmem:[#allocation2 + $0x110] sm:$0xff]
        %v1864 = vld [vmem:[#allocation2 + $0x118] sm:$0xff]
        %v1865 = vld [vmem:[#allocation2 + $0x120] sm:$0xff]
        %v1866 = vld [vmem:[#allocation2 + $0x128] sm:$0xff]
        %v1867 = vld [vmem:[#allocation2 + $0x130] sm:$0xff]
        %v1868 = vld [vmem:[#allocation2 + $0x138] sm:$0xff]
        %v1869 = vld [vmem:[#allocation2 + $0x140] sm:$0xff]
        %v1870 = vld [vmem:[#allocation2 + $0x148] sm:$0xff]
        %v1871 = vld [vmem:[#allocation2 + $0x150] sm:$0xff]
        %v1872 = vld [vmem:[#allocation2 + $0x158] sm:$0xff]
        %v1873 = vld [vmem:[#allocation2 + $0x160] sm:$0xff]
        %v1874 = vld [vmem:[#allocation2 + $0x168] sm:$0xff]
        %v1875 = vld [vmem:[#allocation2 + $0x170] sm:$0xff]
        %v1876 = vld [vmem:[#allocation2 + $0x178] sm:$0xff]
        %v1877 = vld [vmem:[#allocation8] sm:$0xf]
        %v1878 = vld [vmem:[#allocation8 + $0x4] sm:$0xf]
        %v1879 = vld [vmem:[#allocation8 + $0x8] sm:$0xf]
        %v1880 = vld [vmem:[#allocation8 + $0xc] sm:$0xf]
        %v1881 = vld [vmem:[#allocation8 + $0x10] sm:$0xf]
        %v1882 = vld [vmem:[#allocation8 + $0x14] sm:$0xf]
        %v1883 = vld [vmem:[#allocation8 + $0x18] sm:$0xf]
        %v1884 = vld [vmem:[#allocation8 + $0x1c] sm:$0xf]
        %v1885 = vld [vmem:[#allocation8 + $0x20] sm:$0xf]
        %v1886 = vld [vmem:[#allocation8 + $0x24] sm:$0xf]
        %v1887 = vld [vmem:[#allocation8 + $0x28] sm:$0xf]
        %v1888 = vld [vmem:[#allocation8 + $0x2c] sm:$0xf]
        %v1889 = vld [vmem:[#allocation8 + $0x30] sm:$0xf]
        %v1890 = vld [vmem:[#allocation8 + $0x34] sm:$0xf]
        %v1891 = vld [vmem:[#allocation8 + $0x38] sm:$0xf]
        %v1892 = vld [vmem:[#allocation8 + $0x3c] sm:$0xf]
        %v1893 = vld [vmem:[#allocation8 + $0x40] sm:$0xf]
        %v1894 = vld [vmem:[#allocation8 + $0x44] sm:$0xf]
        %v1895 = vld [vmem:[#allocation8 + $0x48] sm:$0xf]
        %v1896 = vld [vmem:[#allocation8 + $0x4c] sm:$0xf]
        %v1897 = vld [vmem:[#allocation8 + $0x50] sm:$0xf]
        %v1898 = vld [vmem:[#allocation8 + $0x54] sm:$0xf]
        %v1899 = vld [vmem:[#allocation8 + $0x58] sm:$0xf]
        %v1900 = vld [vmem:[#allocation8 + $0x5c] sm:$0xf]
        %v1901 = vld [vmem:[#allocation8 + $0x60] sm:$0xf]
        %v1902 = vld [vmem:[#allocation8 + $0x64] sm:$0xf]
        %v1903 = vld [vmem:[#allocation8 + $0x68] sm:$0xf]
        %v1904 = vld [vmem:[#allocation8 + $0x6c] sm:$0xf]
        %v1905 = vld [vmem:[#allocation8 + $0x70] sm:$0xf]
        %v1906 = vld [vmem:[#allocation8 + $0x74] sm:$0xf]
        %v1907 = vld [vmem:[#allocation8 + $0x78] sm:$0xf]
        %v1908 = vld [vmem:[#allocation8 + $0x7c] sm:$0xf]
        %v1909 = vld [vmem:[#allocation8 + $0x80] sm:$0xf]
        %v1910 = vld [vmem:[#allocation8 + $0x84] sm:$0xf]
        %v1911 = vld [vmem:[#allocation8 + $0x88] sm:$0xf]
        %v1912 = vld [vmem:[#allocation8 + $0x8c] sm:$0xf]
        %v1913 = vld [vmem:[#allocation8 + $0x90] sm:$0xf]
        %v1914 = vld [vmem:[#allocation8 + $0x94] sm:$0xf]
        %v1915 = vld [vmem:[#allocation8 + $0x98] sm:$0xf]
        %v1916 = vld [vmem:[#allocation8 + $0x9c] sm:$0xf]
        %v1917 = vld [vmem:[#allocation8 + $0xa0] sm:$0xf]
        %v1918 = vld [vmem:[#allocation8 + $0xa4] sm:$0xf]
        %v1919 = vld [vmem:[#allocation8 + $0xa8] sm:$0xf]
        %v1920 = vld [vmem:[#allocation8 + $0xac] sm:$0xf]
        %v1921 = vld [vmem:[#allocation8 + $0xb0] sm:$0xf]
        %v1922 = vld [vmem:[#allocation8 + $0xb4] sm:$0xf]
        %v1923 = vld [vmem:[#allocation8 + $0xb8] sm:$0xf]
        %v1924 = vld [vmem:[#allocation8 + $0xbc] sm:$0xf]
        %v1925 = vld [vmem:[#allocation2 + $0x180] sm:$0xff]
        %v1926 = vld [vmem:[#allocation2 + $0x188] sm:$0xff]
        %v1927 = vld [vmem:[#allocation2 + $0x190] sm:$0xff]
        %s1928 = scalar_lea.vmem [#allocation8], 192
        %v1929 = vld [vmem:[%s1928] sm:$0xf]
        %v1930 = vld [vmem:[%s1928 + $0x4] sm:$0xf]
        %v1931 = vld [vmem:[%s1928 + $0x8] sm:$0xf]
        %v1932 = vld [vmem:[%s1928 + $0xc] sm:$0xf]
        %v1933 = vld [vmem:[%s1928 + $0x10] sm:$0xf]
        %v1934 = vld [vmem:[%s1928 + $0x14] sm:$0xf]
        %v1935 = vld [vmem:[%s1928 + $0x18] sm:$0xf]
        %v1936 = vld [vmem:[%s1928 + $0x1c] sm:$0xf]
        %v1937 = vld [vmem:[%s1928 + $0x20] sm:$0xf]
        %v1938 = vld [vmem:[%s1928 + $0x24] sm:$0xf]
        %v1939 = vld [vmem:[%s1928 + $0x28] sm:$0xf]
        %v1940 = vld [vmem:[%s1928 + $0x2c] sm:$0xf]
        %v1941 = vld [vmem:[%s1928 + $0x30] sm:$0xf]
        %v1942 = vld [vmem:[%s1928 + $0x34] sm:$0xf]
        %v1943 = vld [vmem:[%s1928 + $0x38] sm:$0xf]
        %v1944 = vld [vmem:[%s1928 + $0x3c] sm:$0xf]
        %v1945 = vld [vmem:[%s1928 + $0x40] sm:$0xf]
        %v1946 = vld [vmem:[%s1928 + $0x44] sm:$0xf]
        %v1947 = vld [vmem:[%s1928 + $0x48] sm:$0xf]
        %v1948 = vld [vmem:[%s1928 + $0x4c] sm:$0xf]
        %v1949 = vld [vmem:[%s1928 + $0x50] sm:$0xf]
        %v1950 = vld [vmem:[%s1928 + $0x54] sm:$0xf]
        %v1951 = vld [vmem:[%s1928 + $0x58] sm:$0xf]
        %v1952 = vld [vmem:[%s1928 + $0x5c] sm:$0xf]
        %v1953 = vld [vmem:[%s1928 + $0x60] sm:$0xf]
        %v1954 = vld [vmem:[%s1928 + $0x64] sm:$0xf]
        %v1955 = vld [vmem:[%s1928 + $0x68] sm:$0xf]
        %v1956 = vld [vmem:[%s1928 + $0x6c] sm:$0xf]
        %v1957 = vld [vmem:[%s1928 + $0x70] sm:$0xf]
        %v1958 = vld [vmem:[%s1928 + $0x74] sm:$0xf]
        %v1959 = vld [vmem:[%s1928 + $0x78] sm:$0xf]
        %v1960 = vld [vmem:[%s1928 + $0x7c] sm:$0xf]
        %v1961 = vld [vmem:[%s1928 + $0x80] sm:$0xf]
        %v1962 = vld [vmem:[%s1928 + $0x84] sm:$0xf]
        %v1963 = vld [vmem:[%s1928 + $0x88] sm:$0xf]
        %v1964 = vld [vmem:[%s1928 + $0x8c] sm:$0xf]
        %v1965 = vld [vmem:[%s1928 + $0x90] sm:$0xf]
        %v1966 = vld [vmem:[%s1928 + $0x94] sm:$0xf]
        %v1967 = vld [vmem:[%s1928 + $0x98] sm:$0xf]
        %v1968 = vld [vmem:[%s1928 + $0x9c] sm:$0xf]
        %v1969 = vld [vmem:[%s1928 + $0xa0] sm:$0xf]
        %v1970 = vld [vmem:[%s1928 + $0xa4] sm:$0xf]
        %v1971 = vld [vmem:[%s1928 + $0xa8] sm:$0xf]
        %v1972 = vld [vmem:[%s1928 + $0xac] sm:$0xf]
        %v1973 = vld [vmem:[%s1928 + $0xb0] sm:$0xf]
        %v1974 = vld [vmem:[%s1928 + $0xb4] sm:$0xf]
        %v1975 = vld [vmem:[%s1928 + $0xb8] sm:$0xf]
        %v1976 = vld [vmem:[%s1928 + $0xbc] sm:$0xf]
        %v2025 = vunpack.c.l.b16 %v1929
        %v2026 = vunpack.c.l.b16 %v1930
        %v2027 = vunpack.c.l.b16 %v1931
        %v2028 = vunpack.c.l.b16 %v1932
        %v2029 = vunpack.c.l.b16 %v1933
        %v2030 = vunpack.c.l.b16 %v1934
        %v2031 = vunpack.c.l.b16 %v1935
        %v2032 = vunpack.c.l.b16 %v1936
        %v2033 = vunpack.c.l.b16 %v1937
        %v2034 = vunpack.c.l.b16 %v1938
        %v2035 = vunpack.c.l.b16 %v1939
        %v2036 = vunpack.c.l.b16 %v1940
        %v2037 = vunpack.c.l.b16 %v1941
        %v2038 = vunpack.c.l.b16 %v1942
        %v2039 = vunpack.c.l.b16 %v1943
        %v2040 = vunpack.c.l.b16 %v1944
        %v2041 = vunpack.c.l.b16 %v1945
        %v2042 = vunpack.c.l.b16 %v1946
        %v2043 = vunpack.c.l.b16 %v1947
        %v2044 = vunpack.c.l.b16 %v1948
        %v2045 = vunpack.c.l.b16 %v1949
        %v2046 = vunpack.c.l.b16 %v1950
        %v2047 = vunpack.c.l.b16 %v1951
        %v2048 = vunpack.c.l.b16 %v1952
        %v2049 = vunpack.c.l.b16 %v1953
        %v2050 = vunpack.c.l.b16 %v1954
        %v2051 = vunpack.c.l.b16 %v1955
        %v2052 = vunpack.c.l.b16 %v1956
        %v2053 = vunpack.c.l.b16 %v1957
        %v2054 = vunpack.c.l.b16 %v1958
        %v2055 = vunpack.c.l.b16 %v1959
        %v2056 = vunpack.c.l.b16 %v1960
        %v2057 = vunpack.c.l.b16 %v1961
        %v2058 = vunpack.c.l.b16 %v1962
        %v2059 = vunpack.c.l.b16 %v1963
        %v2060 = vunpack.c.l.b16 %v1964
        %v2061 = vunpack.c.l.b16 %v1965
        %v2062 = vunpack.c.l.b16 %v1966
        %v2063 = vunpack.c.l.b16 %v1967
        %v2064 = vunpack.c.l.b16 %v1968
        %v2065 = vunpack.c.l.b16 %v1969
        %v2066 = vunpack.c.l.b16 %v1970
        %v2067 = vunpack.c.l.b16 %v1971
        %v2068 = vunpack.c.l.b16 %v1972
        %v2069 = vunpack.c.l.b16 %v1973
        %v2070 = vunpack.c.l.b16 %v1974
        %v2071 = vunpack.c.l.b16 %v1975
        %v2072 = vunpack.c.l.b16 %v1976
        %v2073 = vpack.c.b16 %v2026, %v2025
        %v2074 = vpack.c.b16 %v2028, %v2027
        %v2075 = vpack.c.b16 %v2030, %v2029
        %v2076 = vpack.c.b16 %v2032, %v2031
        %v2077 = vpack.c.b16 %v2034, %v2033
        %v2078 = vpack.c.b16 %v2036, %v2035
        %v2079 = vpack.c.b16 %v2038, %v2037
        %v2080 = vpack.c.b16 %v2040, %v2039
        %v2081 = vpack.c.b16 %v2042, %v2041
        %v2082 = vpack.c.b16 %v2044, %v2043
        %v2083 = vpack.c.b16 %v2046, %v2045
        %v2084 = vpack.c.b16 %v2048, %v2047
        %v2085 = vpack.c.b16 %v2050, %v2049
        %v2086 = vpack.c.b16 %v2052, %v2051
        %v2087 = vpack.c.b16 %v2054, %v2053
        %v2088 = vpack.c.b16 %v2056, %v2055
        %v2089 = vpack.c.b16 %v2058, %v2057
        %v2090 = vpack.c.b16 %v2060, %v2059
        %v2091 = vpack.c.b16 %v2062, %v2061
        %v2092 = vpack.c.b16 %v2064, %v2063
        %v2093 = vpack.c.b16 %v2066, %v2065
        %v2094 = vpack.c.b16 %v2068, %v2067
        %v2095 = vpack.c.b16 %v2070, %v2069
        %v2096 = vpack.c.b16 %v2072, %v2071
        %2121 = vmatprep.subr.bf16.mxu0 0
        %2122 = vmatpush1.bf16.msra.mxu0 %v2073
        %2123 = vmatprep.subr.bf16.mxu0 0
        %2124 = vmatpush1.bf16.msra.mxu0 %v2074
        %2125 = vmatprep.subr.bf16.mxu0 0
        %2126 = vmatpush1.bf16.msra.mxu0 %v2075
        %2127 = vmatprep.subr.bf16.mxu0 0
        %2128 = vmatpush1.bf16.msra.mxu0 %v2076
        %2129 = vmatprep.subr.bf16.mxu0 0
        %2130 = vmatpush1.bf16.msra.mxu0 %v2077
        %2131 = vmatprep.subr.bf16.mxu0 0
        %2132 = vmatpush1.bf16.msra.mxu0 %v2078
        %2133 = vmatprep.subr.bf16.mxu0 0
        %2134 = vmatpush1.bf16.msra.mxu0 %v2079
        %2135 = vmatprep.subr.bf16.mxu0 0
        %2136 = vmatpush1.bf16.msra.mxu0 %v2080
        %2137 = vmatprep.subr.bf16.mxu0 0
        %2138 = vmatpush1.bf16.msra.mxu0 %v2081
        %2139 = vmatprep.subr.bf16.mxu0 0
        %2140 = vmatpush1.bf16.msra.mxu0 %v2082
        %2141 = vmatprep.subr.bf16.mxu0 0
        %2142 = vmatpush1.bf16.msra.mxu0 %v2083
        %2143 = vmatprep.subr.bf16.mxu0 0
        %2144 = vmatpush1.bf16.msra.mxu0 %v2084
        %2145 = vmatprep.subr.bf16.mxu0 0
        %2146 = vmatpush1.bf16.msra.mxu0 %v2085
        %2147 = vmatprep.subr.bf16.mxu0 0
        %2148 = vmatpush1.bf16.msra.mxu0 %v2086
        %2149 = vmatprep.subr.bf16.mxu0 0
        %2150 = vmatpush1.bf16.msra.mxu0 %v2087
        %2151 = vmatprep.subr.bf16.mxu0 0
        %2152 = vmatpush1.bf16.msra.mxu0 %v2088
        %2153 = vmatprep.mubr.bf16.mxu0 %v1833
        %2154 = vmatmul.mubr.bf16.gmra.mrb[0].mxu0 %v1832
        %v2155 = vpop.f32.mrb[0].mxu0
        %v2156 = vadd.f32 0.0, %v2155
        %v2157 = vpop.f32.mrb[0].mxu0
        %v2158 = vpop.f32.mrb[0].mxu0
        %v2159 = vadd.f32 0.0, %v2158
        %v2160 = vpop.f32.mrb[0].mxu0
        %2161 = vmatprep.mubr.bf16.mxu0 %v1836
        %2162 = vmatmul.mubr.bf16.gmra.mrb[0].mxu0 %v1835
        %v2163 = vpop.f32.mrb[0].mxu0
        %v2164 = vadd.f32 0.0, %v2163
        %v2165 = vpop.f32.mrb[0].mxu0
        %v2166 = vpop.f32.mrb[0].mxu0
        %v2167 = vadd.f32 0.0, %v2166
        %v2168 = vpop.f32.mrb[0].mxu0
        %2169 = vmatprep.mubr.bf16.mxu0 %v1839
        %2170 = vmatmul.mubr.bf16.gmra.mrb[0].mxu0 %v1838
        %v2171 = vpop.f32.mrb[0].mxu0
        %v2172 = vadd.f32 0.0, %v2171
        %v2173 = vpop.f32.mrb[0].mxu0
        %v2174 = vpop.f32.mrb[0].mxu0
        %v2175 = vadd.f32 0.0, %v2174
        %v2176 = vpop.f32.mrb[0].mxu0
        %2177 = vmatprep.mubr.bf16.mxu0 %v1842
        %2178 = vmatmul.mubr.bf16.gmra.mrb[0].mxu0 %v1841
        %v2179 = vpop.f32.mrb[0].mxu0
        %v2180 = vadd.f32 0.0, %v2179
        %v2181 = vpop.f32.mrb[0].mxu0
        %v2182 = vpop.f32.mrb[0].mxu0
        %v2183 = vadd.f32 0.0, %v2182
        %v2184 = vpop.f32.mrb[0].mxu0
        %2185 = vmatprep.mubr.bf16.mxu0 %v1845
        %2186 = vmatmul.mubr.bf16.gmra.mrb[0].mxu0 %v1844
        %v2187 = vpop.f32.mrb[0].mxu0
        %v2188 = vadd.f32 0.0, %v2187
        %v2189 = vpop.f32.mrb[0].mxu0
        %v2190 = vpop.f32.mrb[0].mxu0
        %v2191 = vadd.f32 0.0, %v2190
        %v2192 = vpop.f32.mrb[0].mxu0
        %2193 = vmatprep.mubr.bf16.mxu0 %v1848
        %2194 = vmatmul.mubr.bf16.gmra.mrb[0].mxu0 %v1847
        %v2195 = vpop.f32.mrb[0].mxu0
        %v2196 = vadd.f32 0.0, %v2195
        %v2197 = vpop.f32.mrb[0].mxu0
        %v2198 = vpop.f32.mrb[0].mxu0
        %v2199 = vadd.f32 0.0, %v2198
        %v2200 = vpop.f32.mrb[0].mxu0
        %2201 = vmatprep.mubr.bf16.mxu0 %v1851
        %2202 = vmatmul.mubr.bf16.gmra.mrb[0].mxu0 %v1850
        %v2203 = vpop.f32.mrb[0].mxu0
        %v2204 = vadd.f32 0.0, %v2203
        %v2205 = vpop.f32.mrb[0].mxu0
        %v2206 = vpop.f32.mrb[0].mxu0
        %v2207 = vadd.f32 0.0, %v2206
        %v2208 = vpop.f32.mrb[0].mxu0
        %2209 = vmatprep.mubr.bf16.mxu0 %v1854
        %2210 = vmatmul.mubr.bf16.gmra.mrb[0].mxu0 %v1853
        %v2211 = vpop.f32.mrb[0].mxu0
        %v2212 = vadd.f32 0.0, %v2211
        %v2213 = vpop.f32.mrb[0].mxu0
        %v2214 = vpop.f32.mrb[0].mxu0
        %v2215 = vadd.f32 0.0, %v2214
        %v2216 = vpop.f32.mrb[0].mxu0
        %2217 = vmatprep.mubr.bf16.mxu0 %v1857
        %2218 = vmatmul.mubr.bf16.gmra.mrb[0].mxu0 %v1856
        %v2219 = vpop.f32.mrb[0].mxu0
        %v2220 = vadd.f32 0.0, %v2219
        %v2221 = vpop.f32.mrb[0].mxu0
        %v2222 = vpop.f32.mrb[0].mxu0
        %v2223 = vadd.f32 0.0, %v2222
        %v2224 = vpop.f32.mrb[0].mxu0
        %2225 = vmatprep.mubr.bf16.mxu0 %v1860
        %2226 = vmatmul.mubr.bf16.gmra.mrb[0].mxu0 %v1859
        %v2227 = vpop.f32.mrb[0].mxu0
        %v2228 = vadd.f32 0.0, %v2227
        %v2229 = vpop.f32.mrb[0].mxu0
        %v2230 = vpop.f32.mrb[0].mxu0
        %v2231 = vadd.f32 0.0, %v2230
        %v2232 = vpop.f32.mrb[0].mxu0
        %2233 = vmatprep.mubr.bf16.mxu0 %v1863
        %2234 = vmatmul.mubr.bf16.gmra.mrb[0].mxu0 %v1862
        %v2235 = vpop.f32.mrb[0].mxu0
        %v2236 = vadd.f32 0.0, %v2235
        %v2237 = vpop.f32.mrb[0].mxu0
        %v2238 = vpop.f32.mrb[0].mxu0
        %v2239 = vadd.f32 0.0, %v2238
        %v2240 = vpop.f32.mrb[0].mxu0
        %2241 = vmatprep.mubr.bf16.mxu0 %v1866
        %2242 = vmatmul.mubr.bf16.gmra.mrb[0].mxu0 %v1865
        %v2243 = vpop.f32.mrb[0].mxu0
        %v2244 = vadd.f32 0.0, %v2243
        %v2245 = vpop.f32.mrb[0].mxu0
        %v2246 = vpop.f32.mrb[0].mxu0
        %v2247 = vadd.f32 0.0, %v2246
        %v2248 = vpop.f32.mrb[0].mxu0
        %2249 = vmatprep.mubr.bf16.mxu0 %v1869
        %2250 = vmatmul.mubr.bf16.gmra.mrb[0].mxu0 %v1868
        %v2251 = vpop.f32.mrb[0].mxu0
        %v2252 = vadd.f32 0.0, %v2251
        %v2253 = vpop.f32.mrb[0].mxu0
        %v2254 = vpop.f32.mrb[0].mxu0
        %v2255 = vadd.f32 0.0, %v2254
        %v2256 = vpop.f32.mrb[0].mxu0
        %2257 = vmatprep.mubr.bf16.mxu0 %v1872
        %2258 = vmatmul.mubr.bf16.gmra.mrb[0].mxu0 %v1871
        %v2259 = vpop.f32.mrb[0].mxu0
        %v2260 = vadd.f32 0.0, %v2259
        %v2261 = vpop.f32.mrb[0].mxu0
        %v2262 = vpop.f32.mrb[0].mxu0
        %v2263 = vadd.f32 0.0, %v2262
        %v2264 = vpop.f32.mrb[0].mxu0
        %2265 = vmatprep.mubr.bf16.mxu0 %v1875
        %2266 = vmatmul.mubr.bf16.gmra.mrb[0].mxu0 %v1874
        %v2267 = vpop.f32.mrb[0].mxu0
        %v2268 = vadd.f32 0.0, %v2267
        %v2269 = vpop.f32.mrb[0].mxu0
        %v2270 = vpop.f32.mrb[0].mxu0
        %v2271 = vadd.f32 0.0, %v2270
        %v2272 = vpop.f32.mrb[0].mxu0
        %2273 = vmatprep.mubr.bf16.mxu0 %v1926
        %2274 = vmatmul.mubr.bf16.gmra.mrb[0].mxu0 %v1925
        %v2275 = vpop.f32.mrb[0].mxu0
        %v2276 = vadd.f32 0.0, %v2275
        %v2277 = vpop.f32.mrb[0].mxu0
        %v2278 = vpop.f32.mrb[0].mxu0
        %v2279 = vadd.f32 0.0, %v2278
        %v2280 = vpop.f32.mrb[0].mxu0
        %2281 = vdwg.mxu0
        %2282 = vmatprep.subr.bf16.mxu0 0
        %2283 = vmatpush1.bf16.msra.mxu0 %v2089
        %2284 = vmatprep.subr.bf16.mxu0 0
        %2285 = vmatpush1.bf16.msra.mxu0 %v2090
        %2286 = vmatprep.subr.bf16.mxu0 0
        %2287 = vmatpush1.bf16.msra.mxu0 %v2091
        %2288 = vmatprep.subr.bf16.mxu0 0
        %2289 = vmatpush1.bf16.msra.mxu0 %v2092
        %2290 = vmatprep.subr.bf16.mxu0 0
        %2291 = vmatpush1.bf16.msra.mxu0 %v2093
        %2292 = vmatprep.subr.bf16.mxu0 0
        %2293 = vmatpush1.bf16.msra.mxu0 %v2094
        %2294 = vmatprep.subr.bf16.mxu0 0
        %2295 = vmatpush1.bf16.msra.mxu0 %v2095
        %2296 = vmatprep.subr.bf16.mxu0 0
        %2297 = vmatpush1.bf16.msra.mxu0 %v2096
        %2298 = vmatprep.subr.bf16.mxu0 0
        %2299 = vmatpush1.bf16.msra.mxu0 0
        %2300 = vmatprep.subr.bf16.mxu0 0
        %2301 = vmatpush1.bf16.msra.mxu0 0
        %2302 = vmatprep.subr.bf16.mxu0 0
        %2303 = vmatpush1.bf16.msra.mxu0 0
        %2304 = vmatprep.subr.bf16.mxu0 0
        %2305 = vmatpush1.bf16.msra.mxu0 0
        %2306 = vmatprep.subr.bf16.mxu0 0
        %2307 = vmatpush1.bf16.msra.mxu0 0
        %2308 = vmatprep.subr.bf16.mxu0 0
        %2309 = vmatpush1.bf16.msra.mxu0 0
        %2310 = vmatprep.subr.bf16.mxu0 0
        %2311 = vmatpush1.bf16.msra.mxu0 0
        %2312 = vmatprep.subr.bf16.mxu0 0
        %2313 = vmatpush1.bf16.msra.mxu0 0
        %2314 = vmatprep.mubr.bf16.mxu0 0
        %2315 = vmatmul.mubr.bf16.gmra.mrb[0].mxu0 %v1834
        %v2316 = vpop.f32.mrb[0].mxu0
        %v2317 = vadd.f32 %v2156, %v2316
        %v2318 = vpop.f32.mrb[0].mxu0
        %v2319 = vpop.f32.mrb[0].mxu0
        %v2320 = vadd.f32 %v2159, %v2319
        %v2321 = vpop.f32.mrb[0].mxu0
        %2322 = vmatprep.mubr.bf16.mxu0 0
        %2323 = vmatmul.mubr.bf16.gmra.mrb[0].mxu0 %v1837
        %v2324 = vpop.f32.mrb[0].mxu0
        %v2325 = vadd.f32 %v2164, %v2324
        %v2326 = vpop.f32.mrb[0].mxu0
        %v2327 = vpop.f32.mrb[0].mxu0
        %v2328 = vadd.f32 %v2167, %v2327
        %v2329 = vpop.f32.mrb[0].mxu0
        %2330 = vmatprep.mubr.bf16.mxu0 0
        %2331 = vmatmul.mubr.bf16.gmra.mrb[0].mxu0 %v1840
        %v2332 = vpop.f32.mrb[0].mxu0
        %v2333 = vadd.f32 %v2172, %v2332
        %v2334 = vpop.f32.mrb[0].mxu0
        %v2335 = vpop.f32.mrb[0].mxu0
        %v2336 = vadd.f32 %v2175, %v2335
        %v2337 = vpop.f32.mrb[0].mxu0
        %2338 = vmatprep.mubr.bf16.mxu0 0
        %2339 = vmatmul.mubr.bf16.gmra.mrb[0].mxu0 %v1843
        %v2340 = vpop.f32.mrb[0].mxu0
        %v2341 = vadd.f32 %v2180, %v2340
        %v2342 = vpop.f32.mrb[0].mxu0
        %v2343 = vpop.f32.mrb[0].mxu0
        %v2344 = vadd.f32 %v2183, %v2343
        %v2345 = vpop.f32.mrb[0].mxu0
        %2346 = vmatprep.mubr.bf16.mxu0 0
        %2347 = vmatmul.mubr.bf16.gmra.mrb[0].mxu0 %v1846
        %v2348 = vpop.f32.mrb[0].mxu0
        %v2349 = vadd.f32 %v2188, %v2348
        %v2350 = vpop.f32.mrb[0].mxu0
        %v2351 = vpop.f32.mrb[0].mxu0
        %v2352 = vadd.f32 %v2191, %v2351
        %v2353 = vpop.f32.mrb[0].mxu0
        %2354 = vmatprep.mubr.bf16.mxu0 0
        %2355 = vmatmul.mubr.bf16.gmra.mrb[0].mxu0 %v1849
        %v2356 = vpop.f32.mrb[0].mxu0
        %v2357 = vadd.f32 %v2196, %v2356
        %v2358 = vpop.f32.mrb[0].mxu0
        %v2359 = vpop.f32.mrb[0].mxu0
        %v2360 = vadd.f32 %v2199, %v2359
        %v2361 = vpop.f32.mrb[0].mxu0
        %2362 = vmatprep.mubr.bf16.mxu0 0
        %2363 = vmatmul.mubr.bf16.gmra.mrb[0].mxu0 %v1852
        %v2364 = vpop.f32.mrb[0].mxu0
        %v2365 = vadd.f32 %v2204, %v2364
        %v2366 = vpop.f32.mrb[0].mxu0
        %v2367 = vpop.f32.mrb[0].mxu0
        %v2368 = vadd.f32 %v2207, %v2367
        %v2369 = vpop.f32.mrb[0].mxu0
        %2370 = vmatprep.mubr.bf16.mxu0 0
        %2371 = vmatmul.mubr.bf16.gmra.mrb[0].mxu0 %v1855
        %v2372 = vpop.f32.mrb[0].mxu0
        %v2373 = vadd.f32 %v2212, %v2372
        %v2374 = vpop.f32.mrb[0].mxu0
        %v2375 = vpop.f32.mrb[0].mxu0
        %v2376 = vadd.f32 %v2215, %v2375
        %v2377 = vpop.f32.mrb[0].mxu0
        %2378 = vmatprep.mubr.bf16.mxu0 0
        %2379 = vmatmul.mubr.bf16.gmra.mrb[0].mxu0 %v1858
        %v2380 = vpop.f32.mrb[0].mxu0
        %v2381 = vadd.f32 %v2220, %v2380
        %v2382 = vpop.f32.mrb[0].mxu0
        %v2383 = vpop.f32.mrb[0].mxu0
        %v2384 = vadd.f32 %v2223, %v2383
        %v2385 = vpop.f32.mrb[0].mxu0
        %2386 = vmatprep.mubr.bf16.mxu0 0
        %2387 = vmatmul.mubr.bf16.gmra.mrb[0].mxu0 %v1861
        %v2388 = vpop.f32.mrb[0].mxu0
        %v2389 = vadd.f32 %v2228, %v2388
        %v2390 = vpop.f32.mrb[0].mxu0
        %v2391 = vpop.f32.mrb[0].mxu0
        %v2392 = vadd.f32 %v2231, %v2391
        %v2393 = vpop.f32.mrb[0].mxu0
        %2394 = vmatprep.mubr.bf16.mxu0 0
        %2395 = vmatmul.mubr.bf16.gmra.mrb[0].mxu0 %v1864
        %v2396 = vpop.f32.mrb[0].mxu0
        %v2397 = vadd.f32 %v2236, %v2396
        %v2398 = vpop.f32.mrb[0].mxu0
        %v2399 = vpop.f32.mrb[0].mxu0
        %v2400 = vadd.f32 %v2239, %v2399
        %v2401 = vpop.f32.mrb[0].mxu0
        %2402 = vmatprep.mubr.bf16.mxu0 0
        %2403 = vmatmul.mubr.bf16.gmra.mrb[0].mxu0 %v1867
        %v2404 = vpop.f32.mrb[0].mxu0
        %v2405 = vadd.f32 %v2244, %v2404
        %v2406 = vpop.f32.mrb[0].mxu0
        %v2407 = vpop.f32.mrb[0].mxu0
        %v2408 = vadd.f32 %v2247, %v2407
        %v2409 = vpop.f32.mrb[0].mxu0
        %2410 = vmatprep.mubr.bf16.mxu0 0
        %2411 = vmatmul.mubr.bf16.gmra.mrb[0].mxu0 %v1870
        %v2412 = vpop.f32.mrb[0].mxu0
        %v2413 = vadd.f32 %v2252, %v2412
        %v2414 = vpop.f32.mrb[0].mxu0
        %v2415 = vpop.f32.mrb[0].mxu0
        %v2416 = vadd.f32 %v2255, %v2415
        %v2417 = vpop.f32.mrb[0].mxu0
        %2418 = vmatprep.mubr.bf16.mxu0 0
        %2419 = vmatmul.mubr.bf16.gmra.mrb[0].mxu0 %v1873
        %v2420 = vpop.f32.mrb[0].mxu0
        %v2421 = vadd.f32 %v2260, %v2420
        %v2422 = vpop.f32.mrb[0].mxu0
        %v2423 = vpop.f32.mrb[0].mxu0
        %v2424 = vadd.f32 %v2263, %v2423
        %v2425 = vpop.f32.mrb[0].mxu0
        %2426 = vmatprep.mubr.bf16.mxu0 0
        %2427 = vmatmul.mubr.bf16.gmra.mrb[0].mxu0 %v1876
        %v2428 = vpop.f32.mrb[0].mxu0
        %v2429 = vadd.f32 %v2268, %v2428
        %v2430 = vpop.f32.mrb[0].mxu0
        %v2431 = vpop.f32.mrb[0].mxu0
        %v2432 = vadd.f32 %v2271, %v2431
        %v2433 = vpop.f32.mrb[0].mxu0
        %2434 = vmatprep.mubr.bf16.mxu0 0
        %2435 = vmatmul.mubr.bf16.gmra.mrb[0].mxu0 %v1927
        %v2436 = vpop.f32.mrb[0].mxu0
        %v2437 = vadd.f32 %v2276, %v2436
        %v2438 = vpop.f32.mrb[0].mxu0
        %v2439 = vpop.f32.mrb[0].mxu0
        %v2440 = vadd.f32 %v2279, %v2439
        %v2441 = vpop.f32.mrb[0].mxu0
        %2442 = vdwg.mxu0
        %v2443 = vld [vmem:[#allocation2 + $0x30] sm:$0xff]
        %v2444 = vld [vmem:[#allocation2 + $0x38] sm:$0xff]
        %v2445 = vld [vmem:[#allocation2 + $0x40] sm:$0xff]
        %v2446 = vld [vmem:[#allocation2 + $0x48] sm:$0xff]
        %v2447 = vld [vmem:[#allocation2 + $0x50] sm:$0xff]
        %v2448 = vld [vmem:[#allocation2 + $0x58] sm:$0xff]
        %v2449 = vld [vmem:[#allocation2 + $0x60] sm:$0xff]
        %v2450 = vld [vmem:[#allocation2 + $0x68] sm:$0xff]
        %v2451 = vld [vmem:[#allocation2 + $0x70] sm:$0xff]
        %v2452 = vld [vmem:[#allocation2 + $0x78] sm:$0xff]
        %v2453 = vld [vmem:[#allocation2 + $0x80] sm:$0xff]
        %v2454 = vld [vmem:[#allocation2 + $0x88] sm:$0xff]
        %v2455 = vld [vmem:[#allocation2 + $0x90] sm:$0xff]
        %v2456 = vld [vmem:[#allocation2 + $0x98] sm:$0xff]
        %v2457 = vld [vmem:[#allocation2 + $0xa0] sm:$0xff]
        %v2458 = vld [vmem:[#allocation2 + $0xa8] sm:$0xff]
        %v2459 = vld [vmem:[#allocation2 + $0xb0] sm:$0xff]
        %v2460 = vld [vmem:[#allocation2 + $0xb8] sm:$0xff]
        %v2461 = vld [vmem:[#allocation2 + $0xc0] sm:$0xff]
        %v2462 = vld [vmem:[#allocation2 + $0xc8] sm:$0xff]
        %v2463 = vld [vmem:[#allocation2 + $0xd0] sm:$0xff]
        %v2464 = vld [vmem:[#allocation2 + $0xd8] sm:$0xff]
        %v2465 = vld [vmem:[#allocation2 + $0xe0] sm:$0xff]
        %v2466 = vld [vmem:[#allocation2 + $0xe8] sm:$0xff]
        %v2467 = vld [vmem:[#allocation2 + $0xf0] sm:$0xff]
        %v2468 = vld [vmem:[#allocation2 + $0xf8] sm:$0xff]
        %v2469 = vld [vmem:[#allocation2 + $0x100] sm:$0xff]
        %v2470 = vld [vmem:[#allocation2 + $0x108] sm:$0xff]
        %v2471 = vld [vmem:[#allocation2 + $0x110] sm:$0xff]
        %v2472 = vld [vmem:[#allocation2 + $0x118] sm:$0xff]
        %v2473 = vld [vmem:[#allocation2 + $0x120] sm:$0xff]
        %v2474 = vld [vmem:[#allocation2 + $0x128] sm:$0xff]
        %v2475 = vld [vmem:[#allocation2 + $0x130] sm:$0xff]
        %v2476 = vld [vmem:[#allocation2 + $0x138] sm:$0xff]
        %v2477 = vld [vmem:[#allocation2 + $0x140] sm:$0xff]
        %v2478 = vld [vmem:[#allocation2 + $0x148] sm:$0xff]
        %v2479 = vld [vmem:[#allocation2 + $0x150] sm:$0xff]
        %v2480 = vld [vmem:[#allocation2 + $0x158] sm:$0xff]
        %v2481 = vld [vmem:[#allocation2 + $0x160] sm:$0xff]
        %v2482 = vld [vmem:[#allocation2 + $0x168] sm:$0xff]
        %v2483 = vld [vmem:[#allocation2 + $0x170] sm:$0xff]
        %v2484 = vld [vmem:[#allocation2 + $0x178] sm:$0xff]
        %v2485 = vld [vmem:[#allocation2 + $0x180] sm:$0xff]
        %v2486 = vld [vmem:[#allocation2 + $0x188] sm:$0xff]
        %v2487 = vld [vmem:[#allocation2 + $0x190] sm:$0xff]
        %v2488 = vld [vmem:[#allocation2 + $0x198] sm:$0xff]
        %v2489 = vld [vmem:[#allocation2 + $0x1a0] sm:$0xff]
        %v2490 = vld [vmem:[#allocation2 + $0x1a8] sm:$0xff]
        %s2491 = scalar_lea.vmem [#allocation8], 384
        %v2492 = vld [vmem:[%s2491] sm:$0xf]
        %v2493 = vld [vmem:[%s2491 + $0x4] sm:$0xf]
        %v2494 = vld [vmem:[%s2491 + $0x8] sm:$0xf]
        %v2495 = vld [vmem:[%s2491 + $0xc] sm:$0xf]
        %v2496 = vld [vmem:[%s2491 + $0x10] sm:$0xf]
        %v2497 = vld [vmem:[%s2491 + $0x14] sm:$0xf]
        %v2498 = vld [vmem:[%s2491 + $0x18] sm:$0xf]
        %v2499 = vld [vmem:[%s2491 + $0x1c] sm:$0xf]
        %v2500 = vld [vmem:[%s2491 + $0x20] sm:$0xf]
        %v2501 = vld [vmem:[%s2491 + $0x24] sm:$0xf]
        %v2502 = vld [vmem:[%s2491 + $0x28] sm:$0xf]
        %v2503 = vld [vmem:[%s2491 + $0x2c] sm:$0xf]
        %v2504 = vld [vmem:[%s2491 + $0x30] sm:$0xf]
        %v2505 = vld [vmem:[%s2491 + $0x34] sm:$0xf]
        %v2506 = vld [vmem:[%s2491 + $0x38] sm:$0xf]
        %v2507 = vld [vmem:[%s2491 + $0x3c] sm:$0xf]
        %v2508 = vld [vmem:[%s2491 + $0x40] sm:$0xf]
        %v2509 = vld [vmem:[%s2491 + $0x44] sm:$0xf]
        %v2510 = vld [vmem:[%s2491 + $0x48] sm:$0xf]
        %v2511 = vld [vmem:[%s2491 + $0x4c] sm:$0xf]
        %v2512 = vld [vmem:[%s2491 + $0x50] sm:$0xf]
        %v2513 = vld [vmem:[%s2491 + $0x54] sm:$0xf]
        %v2514 = vld [vmem:[%s2491 + $0x58] sm:$0xf]
        %v2515 = vld [vmem:[%s2491 + $0x5c] sm:$0xf]
        %v2516 = vld [vmem:[%s2491 + $0x60] sm:$0xf]
        %v2517 = vld [vmem:[%s2491 + $0x64] sm:$0xf]
        %v2518 = vld [vmem:[%s2491 + $0x68] sm:$0xf]
        %v2519 = vld [vmem:[%s2491 + $0x6c] sm:$0xf]
        %v2520 = vld [vmem:[%s2491 + $0x70] sm:$0xf]
        %v2521 = vld [vmem:[%s2491 + $0x74] sm:$0xf]
        %v2522 = vld [vmem:[%s2491 + $0x78] sm:$0xf]
        %v2523 = vld [vmem:[%s2491 + $0x7c] sm:$0xf]
        %v2524 = vld [vmem:[%s2491 + $0x80] sm:$0xf]
        %v2525 = vld [vmem:[%s2491 + $0x84] sm:$0xf]
        %v2526 = vld [vmem:[%s2491 + $0x88] sm:$0xf]
        %v2527 = vld [vmem:[%s2491 + $0x8c] sm:$0xf]
        %v2528 = vld [vmem:[%s2491 + $0x90] sm:$0xf]
        %v2529 = vld [vmem:[%s2491 + $0x94] sm:$0xf]
        %v2530 = vld [vmem:[%s2491 + $0x98] sm:$0xf]
        %v2531 = vld [vmem:[%s2491 + $0x9c] sm:$0xf]
        %v2532 = vld [vmem:[%s2491 + $0xa0] sm:$0xf]
        %v2533 = vld [vmem:[%s2491 + $0xa4] sm:$0xf]
        %v2534 = vld [vmem:[%s2491 + $0xa8] sm:$0xf]
        %v2535 = vld [vmem:[%s2491 + $0xac] sm:$0xf]
        %v2536 = vld [vmem:[%s2491 + $0xb0] sm:$0xf]
        %v2537 = vld [vmem:[%s2491 + $0xb4] sm:$0xf]
        %v2538 = vld [vmem:[%s2491 + $0xb8] sm:$0xf]
        %v2539 = vld [vmem:[%s2491 + $0xbc] sm:$0xf]
        %v2588 = vunpack.c.l.b16 %v2492
        %v2589 = vunpack.c.l.b16 %v2493
        %v2590 = vunpack.c.l.b16 %v2494
        %v2591 = vunpack.c.l.b16 %v2495
        %v2592 = vunpack.c.l.b16 %v2496
        %v2593 = vunpack.c.l.b16 %v2497
        %v2594 = vunpack.c.l.b16 %v2498
        %v2595 = vunpack.c.l.b16 %v2499
        %v2596 = vunpack.c.l.b16 %v2500
        %v2597 = vunpack.c.l.b16 %v2501
        %v2598 = vunpack.c.l.b16 %v2502
        %v2599 = vunpack.c.l.b16 %v2503
        %v2600 = vunpack.c.l.b16 %v2504
        %v2601 = vunpack.c.l.b16 %v2505
        %v2602 = vunpack.c.l.b16 %v2506
        %v2603 = vunpack.c.l.b16 %v2507
        %v2604 = vunpack.c.l.b16 %v2508
        %v2605 = vunpack.c.l.b16 %v2509
        %v2606 = vunpack.c.l.b16 %v2510
        %v2607 = vunpack.c.l.b16 %v2511
        %v2608 = vunpack.c.l.b16 %v2512
        %v2609 = vunpack.c.l.b16 %v2513
        %v2610 = vunpack.c.l.b16 %v2514
        %v2611 = vunpack.c.l.b16 %v2515
        %v2612 = vunpack.c.l.b16 %v2516
        %v2613 = vunpack.c.l.b16 %v2517
        %v2614 = vunpack.c.l.b16 %v2518
        %v2615 = vunpack.c.l.b16 %v2519
        %v2616 = vunpack.c.l.b16 %v2520
        %v2617 = vunpack.c.l.b16 %v2521
        %v2618 = vunpack.c.l.b16 %v2522
        %v2619 = vunpack.c.l.b16 %v2523
        %v2620 = vunpack.c.l.b16 %v2524
        %v2621 = vunpack.c.l.b16 %v2525
        %v2622 = vunpack.c.l.b16 %v2526
        %v2623 = vunpack.c.l.b16 %v2527
        %v2624 = vunpack.c.l.b16 %v2528
        %v2625 = vunpack.c.l.b16 %v2529
        %v2626 = vunpack.c.l.b16 %v2530
        %v2627 = vunpack.c.l.b16 %v2531
        %v2628 = vunpack.c.l.b16 %v2532
        %v2629 = vunpack.c.l.b16 %v2533
        %v2630 = vunpack.c.l.b16 %v2534
        %v2631 = vunpack.c.l.b16 %v2535
        %v2632 = vunpack.c.l.b16 %v2536
        %v2633 = vunpack.c.l.b16 %v2537
        %v2634 = vunpack.c.l.b16 %v2538
        %v2635 = vunpack.c.l.b16 %v2539
        %v2636 = vpack.c.b16 %v2589, %v2588
        %v2637 = vpack.c.b16 %v2591, %v2590
        %v2638 = vpack.c.b16 %v2593, %v2592
        %v2639 = vpack.c.b16 %v2595, %v2594
        %v2640 = vpack.c.b16 %v2597, %v2596
        %v2641 = vpack.c.b16 %v2599, %v2598
        %v2642 = vpack.c.b16 %v2601, %v2600
        %v2643 = vpack.c.b16 %v2603, %v2602
        %v2644 = vpack.c.b16 %v2605, %v2604
        %v2645 = vpack.c.b16 %v2607, %v2606
        %v2646 = vpack.c.b16 %v2609, %v2608
        %v2647 = vpack.c.b16 %v2611, %v2610
        %v2648 = vpack.c.b16 %v2613, %v2612
        %v2649 = vpack.c.b16 %v2615, %v2614
        %v2650 = vpack.c.b16 %v2617, %v2616
        %v2651 = vpack.c.b16 %v2619, %v2618
        %v2652 = vpack.c.b16 %v2621, %v2620
        %v2653 = vpack.c.b16 %v2623, %v2622
        %v2654 = vpack.c.b16 %v2625, %v2624
        %v2655 = vpack.c.b16 %v2627, %v2626
        %v2656 = vpack.c.b16 %v2629, %v2628
        %v2657 = vpack.c.b16 %v2631, %v2630
        %v2658 = vpack.c.b16 %v2633, %v2632
        %v2659 = vpack.c.b16 %v2635, %v2634
        %2684 = vmatprep.subr.bf16.mxu0 0
        %2685 = vmatpush1.bf16.msra.mxu0 %v2636
        %2686 = vmatprep.subr.bf16.mxu0 0
        %2687 = vmatpush1.bf16.msra.mxu0 %v2637
        %2688 = vmatprep.subr.bf16.mxu0 0
        %2689 = vmatpush1.bf16.msra.mxu0 %v2638
        %2690 = vmatprep.subr.bf16.mxu0 0
        %2691 = vmatpush1.bf16.msra.mxu0 %v2639
        %2692 = vmatprep.subr.bf16.mxu0 0
        %2693 = vmatpush1.bf16.msra.mxu0 %v2640
        %2694 = vmatprep.subr.bf16.mxu0 0
        %2695 = vmatpush1.bf16.msra.mxu0 %v2641
        %2696 = vmatprep.subr.bf16.mxu0 0
        %2697 = vmatpush1.bf16.msra.mxu0 %v2642
        %2698 = vmatprep.subr.bf16.mxu0 0
        %2699 = vmatpush1.bf16.msra.mxu0 %v2643
        %2700 = vmatprep.subr.bf16.mxu0 0
        %2701 = vmatpush1.bf16.msra.mxu0 %v2644
        %2702 = vmatprep.subr.bf16.mxu0 0
        %2703 = vmatpush1.bf16.msra.mxu0 %v2645
        %2704 = vmatprep.subr.bf16.mxu0 0
        %2705 = vmatpush1.bf16.msra.mxu0 %v2646
        %2706 = vmatprep.subr.bf16.mxu0 0
        %2707 = vmatpush1.bf16.msra.mxu0 %v2647
        %2708 = vmatprep.subr.bf16.mxu0 0
        %2709 = vmatpush1.bf16.msra.mxu0 %v2648
        %2710 = vmatprep.subr.bf16.mxu0 0
        %2711 = vmatpush1.bf16.msra.mxu0 %v2649
        %2712 = vmatprep.subr.bf16.mxu0 0
        %2713 = vmatpush1.bf16.msra.mxu0 %v2650
        %2714 = vmatprep.subr.bf16.mxu0 0
        %2715 = vmatpush1.bf16.msra.mxu0 %v2651
        %2716 = vmatprep.mubr.bf16.mxu0 %v2444
        %2717 = vmatmul.mubr.bf16.gmra.mrb[0].mxu0 %v2443
        %v2718 = vpop.f32.mrb[0].mxu0
        %v2719 = vadd.f32 0.0, %v2718
        %v2720 = vpop.f32.mrb[0].mxu0
        %v2721 = vpop.f32.mrb[0].mxu0
        %v2722 = vadd.f32 0.0, %v2721
        %v2723 = vpop.f32.mrb[0].mxu0
        %2724 = vmatprep.mubr.bf16.mxu0 %v2447
        %2725 = vmatmul.mubr.bf16.gmra.mrb[0].mxu0 %v2446
        %v2726 = vpop.f32.mrb[0].mxu0
        %v2727 = vadd.f32 0.0, %v2726
        %v2728 = vpop.f32.mrb[0].mxu0
        %v2729 = vpop.f32.mrb[0].mxu0
        %v2730 = vadd.f32 0.0, %v2729
        %v2731 = vpop.f32.mrb[0].mxu0
        %2732 = vmatprep.mubr.bf16.mxu0 %v2450
        %2733 = vmatmul.mubr.bf16.gmra.mrb[0].mxu0 %v2449
        %v2734 = vpop.f32.mrb[0].mxu0
        %v2735 = vadd.f32 0.0, %v2734
        %v2736 = vpop.f32.mrb[0].mxu0
        %v2737 = vpop.f32.mrb[0].mxu0
        %v2738 = vadd.f32 0.0, %v2737
        %v2739 = vpop.f32.mrb[0].mxu0
        %2740 = vmatprep.mubr.bf16.mxu0 %v2453
        %2741 = vmatmul.mubr.bf16.gmra.mrb[0].mxu0 %v2452
        %v2742 = vpop.f32.mrb[0].mxu0
        %v2743 = vadd.f32 0.0, %v2742
        %v2744 = vpop.f32.mrb[0].mxu0
        %v2745 = vpop.f32.mrb[0].mxu0
        %v2746 = vadd.f32 0.0, %v2745
        %v2747 = vpop.f32.mrb[0].mxu0
        %2748 = vmatprep.mubr.bf16.mxu0 %v2456
        %2749 = vmatmul.mubr.bf16.gmra.mrb[0].mxu0 %v2455
        %v2750 = vpop.f32.mrb[0].mxu0
        %v2751 = vadd.f32 0.0, %v2750
        %v2752 = vpop.f32.mrb[0].mxu0
        %v2753 = vpop.f32.mrb[0].mxu0
        %v2754 = vadd.f32 0.0, %v2753
        %v2755 = vpop.f32.mrb[0].mxu0
        %2756 = vmatprep.mubr.bf16.mxu0 %v2459
        %2757 = vmatmul.mubr.bf16.gmra.mrb[0].mxu0 %v2458
        %v2758 = vpop.f32.mrb[0].mxu0
        %v2759 = vadd.f32 0.0, %v2758
        %v2760 = vpop.f32.mrb[0].mxu0
        %v2761 = vpop.f32.mrb[0].mxu0
        %v2762 = vadd.f32 0.0, %v2761
        %v2763 = vpop.f32.mrb[0].mxu0
        %2764 = vmatprep.mubr.bf16.mxu0 %v2462
        %2765 = vmatmul.mubr.bf16.gmra.mrb[0].mxu0 %v2461
        %v2766 = vpop.f32.mrb[0].mxu0
        %v2767 = vadd.f32 0.0, %v2766
        %v2768 = vpop.f32.mrb[0].mxu0
        %v2769 = vpop.f32.mrb[0].mxu0
        %v2770 = vadd.f32 0.0, %v2769
        %v2771 = vpop.f32.mrb[0].mxu0
        %2772 = vmatprep.mubr.bf16.mxu0 %v2465
        %2773 = vmatmul.mubr.bf16.gmra.mrb[0].mxu0 %v2464
        %v2774 = vpop.f32.mrb[0].mxu0
        %v2775 = vadd.f32 0.0, %v2774
        %v2776 = vpop.f32.mrb[0].mxu0
        %v2777 = vpop.f32.mrb[0].mxu0
        %v2778 = vadd.f32 0.0, %v2777
        %v2779 = vpop.f32.mrb[0].mxu0
        %2780 = vmatprep.mubr.bf16.mxu0 %v2468
        %2781 = vmatmul.mubr.bf16.gmra.mrb[0].mxu0 %v2467
        %v2782 = vpop.f32.mrb[0].mxu0
        %v2783 = vadd.f32 0.0, %v2782
        %v2784 = vpop.f32.mrb[0].mxu0
        %v2785 = vpop.f32.mrb[0].mxu0
        %v2786 = vadd.f32 0.0, %v2785
        %v2787 = vpop.f32.mrb[0].mxu0
        %2788 = vmatprep.mubr.bf16.mxu0 %v2471
        %2789 = vmatmul.mubr.bf16.gmra.mrb[0].mxu0 %v2470
        %v2790 = vpop.f32.mrb[0].mxu0
        %v2791 = vadd.f32 0.0, %v2790
        %v2792 = vpop.f32.mrb[0].mxu0
        %v2793 = vpop.f32.mrb[0].mxu0
        %v2794 = vadd.f32 0.0, %v2793
        %v2795 = vpop.f32.mrb[0].mxu0
        %2796 = vmatprep.mubr.bf16.mxu0 %v2474
        %2797 = vmatmul.mubr.bf16.gmra.mrb[0].mxu0 %v2473
        %v2798 = vpop.f32.mrb[0].mxu0
        %v2799 = vadd.f32 0.0, %v2798
        %v2800 = vpop.f32.mrb[0].mxu0
        %v2801 = vpop.f32.mrb[0].mxu0
        %v2802 = vadd.f32 0.0, %v2801
        %v2803 = vpop.f32.mrb[0].mxu0
        %2804 = vmatprep.mubr.bf16.mxu0 %v2477
        %2805 = vmatmul.mubr.bf16.gmra.mrb[0].mxu0 %v2476
        %v2806 = vpop.f32.mrb[0].mxu0
        %v2807 = vadd.f32 0.0, %v2806
        %v2808 = vpop.f32.mrb[0].mxu0
        %v2809 = vpop.f32.mrb[0].mxu0
        %v2810 = vadd.f32 0.0, %v2809
        %v2811 = vpop.f32.mrb[0].mxu0
        %2812 = vmatprep.mubr.bf16.mxu0 %v2480
        %2813 = vmatmul.mubr.bf16.gmra.mrb[0].mxu0 %v2479
        %v2814 = vpop.f32.mrb[0].mxu0
        %v2815 = vadd.f32 0.0, %v2814
        %v2816 = vpop.f32.mrb[0].mxu0
        %v2817 = vpop.f32.mrb[0].mxu0
        %v2818 = vadd.f32 0.0, %v2817
        %v2819 = vpop.f32.mrb[0].mxu0
        %2820 = vmatprep.mubr.bf16.mxu0 %v2483
        %2821 = vmatmul.mubr.bf16.gmra.mrb[0].mxu0 %v2482
        %v2822 = vpop.f32.mrb[0].mxu0
        %v2823 = vadd.f32 0.0, %v2822
        %v2824 = vpop.f32.mrb[0].mxu0
        %v2825 = vpop.f32.mrb[0].mxu0
        %v2826 = vadd.f32 0.0, %v2825
        %v2827 = vpop.f32.mrb[0].mxu0
        %2828 = vmatprep.mubr.bf16.mxu0 %v2486
        %2829 = vmatmul.mubr.bf16.gmra.mrb[0].mxu0 %v2485
        %v2830 = vpop.f32.mrb[0].mxu0
        %v2831 = vadd.f32 0.0, %v2830
        %v2832 = vpop.f32.mrb[0].mxu0
        %v2833 = vpop.f32.mrb[0].mxu0
        %v2834 = vadd.f32 0.0, %v2833
        %v2835 = vpop.f32.mrb[0].mxu0
        %2836 = vmatprep.mubr.bf16.mxu0 %v2489
        %2837 = vmatmul.mubr.bf16.gmra.mrb[0].mxu0 %v2488
        %v2838 = vpop.f32.mrb[0].mxu0
        %v2839 = vadd.f32 0.0, %v2838
        %v2840 = vpop.f32.mrb[0].mxu0
        %v2841 = vpop.f32.mrb[0].mxu0
        %v2842 = vadd.f32 0.0, %v2841
        %v2843 = vpop.f32.mrb[0].mxu0
        %2844 = vdwg.mxu0
        %2845 = vmatprep.subr.bf16.mxu0 0
        %2846 = vmatpush1.bf16.msra.mxu0 %v2652
        %2847 = vmatprep.subr.bf16.mxu0 0
        %2848 = vmatpush1.bf16.msra.mxu0 %v2653
        %2849 = vmatprep.subr.bf16.mxu0 0
        %2850 = vmatpush1.bf16.msra.mxu0 %v2654
        %2851 = vmatprep.subr.bf16.mxu0 0
        %2852 = vmatpush1.bf16.msra.mxu0 %v2655
        %2853 = vmatprep.subr.bf16.mxu0 0
        %2854 = vmatpush1.bf16.msra.mxu0 %v2656
        %2855 = vmatprep.subr.bf16.mxu0 0
        %2856 = vmatpush1.bf16.msra.mxu0 %v2657
        %2857 = vmatprep.subr.bf16.mxu0 0
        %2858 = vmatpush1.bf16.msra.mxu0 %v2658
        %2859 = vmatprep.subr.bf16.mxu0 0
        %2860 = vmatpush1.bf16.msra.mxu0 %v2659
        %2861 = vmatprep.subr.bf16.mxu0 0
        %2862 = vmatpush1.bf16.msra.mxu0 0
        %2863 = vmatprep.subr.bf16.mxu0 0
        %2864 = vmatpush1.bf16.msra.mxu0 0
        %2865 = vmatprep.subr.bf16.mxu0 0
        %2866 = vmatpush1.bf16.msra.mxu0 0
        %2867 = vmatprep.subr.bf16.mxu0 0
        %2868 = vmatpush1.bf16.msra.mxu0 0
        %2869 = vmatprep.subr.bf16.mxu0 0
        %2870 = vmatpush1.bf16.msra.mxu0 0
        %2871 = vmatprep.subr.bf16.mxu0 0
        %2872 = vmatpush1.bf16.msra.mxu0 0
        %2873 = vmatprep.subr.bf16.mxu0 0
        %2874 = vmatpush1.bf16.msra.mxu0 0
        %2875 = vmatprep.subr.bf16.mxu0 0
        %2876 = vmatpush1.bf16.msra.mxu0 0
        %2877 = vmatprep.mubr.bf16.mxu0 0
        %2878 = vmatmul.mubr.bf16.gmra.mrb[0].mxu0 %v2445
        %v2879 = vpop.f32.mrb[0].mxu0
        %v2880 = vadd.f32 %v2719, %v2879
        %v2881 = vpop.f32.mrb[0].mxu0
        %v2882 = vpop.f32.mrb[0].mxu0
        %v2883 = vadd.f32 %v2722, %v2882
        %v2884 = vpop.f32.mrb[0].mxu0
        %2885 = vmatprep.mubr.bf16.mxu0 0
        %2886 = vmatmul.mubr.bf16.gmra.mrb[0].mxu0 %v2448
        %v2887 = vpop.f32.mrb[0].mxu0
        %v2888 = vadd.f32 %v2727, %v2887
        %v2889 = vpop.f32.mrb[0].mxu0
        %v2890 = vpop.f32.mrb[0].mxu0
        %v2891 = vadd.f32 %v2730, %v2890
        %v2892 = vpop.f32.mrb[0].mxu0
        %2893 = vmatprep.mubr.bf16.mxu0 0
        %2894 = vmatmul.mubr.bf16.gmra.mrb[0].mxu0 %v2451
        %v2895 = vpop.f32.mrb[0].mxu0
        %v2896 = vadd.f32 %v2735, %v2895
        %v2897 = vpop.f32.mrb[0].mxu0
        %v2898 = vpop.f32.mrb[0].mxu0
        %v2899 = vadd.f32 %v2738, %v2898
        %v2900 = vpop.f32.mrb[0].mxu0
        %2901 = vmatprep.mubr.bf16.mxu0 0
        %2902 = vmatmul.mubr.bf16.gmra.mrb[0].mxu0 %v2454
        %v2903 = vpop.f32.mrb[0].mxu0
        %v2904 = vadd.f32 %v2743, %v2903
        %v2905 = vpop.f32.mrb[0].mxu0
        %v2906 = vpop.f32.mrb[0].mxu0
        %v2907 = vadd.f32 %v2746, %v2906
        %v2908 = vpop.f32.mrb[0].mxu0
        %2909 = vmatprep.mubr.bf16.mxu0 0
        %2910 = vmatmul.mubr.bf16.gmra.mrb[0].mxu0 %v2457
        %v2911 = vpop.f32.mrb[0].mxu0
        %v2912 = vadd.f32 %v2751, %v2911
        %v2913 = vpop.f32.mrb[0].mxu0
        %v2914 = vpop.f32.mrb[0].mxu0
        %v2915 = vadd.f32 %v2754, %v2914
        %v2916 = vpop.f32.mrb[0].mxu0
        %2917 = vmatprep.mubr.bf16.mxu0 0
        %2918 = vmatmul.mubr.bf16.gmra.mrb[0].mxu0 %v2460
        %v2919 = vpop.f32.mrb[0].mxu0
        %v2920 = vadd.f32 %v2759, %v2919
        %v2921 = vpop.f32.mrb[0].mxu0
        %v2922 = vpop.f32.mrb[0].mxu0
        %v2923 = vadd.f32 %v2762, %v2922
        %v2924 = vpop.f32.mrb[0].mxu0
        %2925 = vmatprep.mubr.bf16.mxu0 0
        %2926 = vmatmul.mubr.bf16.gmra.mrb[0].mxu0 %v2463
        %v2927 = vpop.f32.mrb[0].mxu0
        %v2928 = vadd.f32 %v2767, %v2927
        %v2929 = vpop.f32.mrb[0].mxu0
        %v2930 = vpop.f32.mrb[0].mxu0
        %v2931 = vadd.f32 %v2770, %v2930
        %v2932 = vpop.f32.mrb[0].mxu0
        %2933 = vmatprep.mubr.bf16.mxu0 0
        %2934 = vmatmul.mubr.bf16.gmra.mrb[0].mxu0 %v2466
        %v2935 = vpop.f32.mrb[0].mxu0
        %v2936 = vadd.f32 %v2775, %v2935
        %v2937 = vpop.f32.mrb[0].mxu0
        %v2938 = vpop.f32.mrb[0].mxu0
        %v2939 = vadd.f32 %v2778, %v2938
        %v2940 = vpop.f32.mrb[0].mxu0
        %2941 = vmatprep.mubr.bf16.mxu0 0
        %2942 = vmatmul.mubr.bf16.gmra.mrb[0].mxu0 %v2469
        %v2943 = vpop.f32.mrb[0].mxu0
        %v2944 = vadd.f32 %v2783, %v2943
        %v2945 = vpop.f32.mrb[0].mxu0
        %v2946 = vpop.f32.mrb[0].mxu0
        %v2947 = vadd.f32 %v2786, %v2946
        %v2948 = vpop.f32.mrb[0].mxu0
        %2949 = vmatprep.mubr.bf16.mxu0 0
        %2950 = vmatmul.mubr.bf16.gmra.mrb[0].mxu0 %v2472
        %v2951 = vpop.f32.mrb[0].mxu0
        %v2952 = vadd.f32 %v2791, %v2951
        %v2953 = vpop.f32.mrb[0].mxu0
        %v2954 = vpop.f32.mrb[0].mxu0
        %v2955 = vadd.f32 %v2794, %v2954
        %v2956 = vpop.f32.mrb[0].mxu0
        %2957 = vmatprep.mubr.bf16.mxu0 0
        %2958 = vmatmul.mubr.bf16.gmra.mrb[0].mxu0 %v2475
        %v2959 = vpop.f32.mrb[0].mxu0
        %v2960 = vadd.f32 %v2799, %v2959
        %v2961 = vpop.f32.mrb[0].mxu0
        %v2962 = vpop.f32.mrb[0].mxu0
        %v2963 = vadd.f32 %v2802, %v2962
        %v2964 = vpop.f32.mrb[0].mxu0
        %2965 = vmatprep.mubr.bf16.mxu0 0
        %2966 = vmatmul.mubr.bf16.gmra.mrb[0].mxu0 %v2478
        %v2967 = vpop.f32.mrb[0].mxu0
        %v2968 = vadd.f32 %v2807, %v2967
        %v2969 = vpop.f32.mrb[0].mxu0
        %v2970 = vpop.f32.mrb[0].mxu0
        %v2971 = vadd.f32 %v2810, %v2970
        %v2972 = vpop.f32.mrb[0].mxu0
        %2973 = vmatprep.mubr.bf16.mxu0 0
        %2974 = vmatmul.mubr.bf16.gmra.mrb[0].mxu0 %v2481
        %v2975 = vpop.f32.mrb[0].mxu0
        %v2976 = vadd.f32 %v2815, %v2975
        %v2977 = vpop.f32.mrb[0].mxu0
        %v2978 = vpop.f32.mrb[0].mxu0
        %v2979 = vadd.f32 %v2818, %v2978
        %v2980 = vpop.f32.mrb[0].mxu0
        %2981 = vmatprep.mubr.bf16.mxu0 0
        %2982 = vmatmul.mubr.bf16.gmra.mrb[0].mxu0 %v2484
        %v2983 = vpop.f32.mrb[0].mxu0
        %v2984 = vadd.f32 %v2823, %v2983
        %v2985 = vpop.f32.mrb[0].mxu0
        %v2986 = vpop.f32.mrb[0].mxu0
        %v2987 = vadd.f32 %v2826, %v2986
        %v2988 = vpop.f32.mrb[0].mxu0
        %2989 = vmatprep.mubr.bf16.mxu0 0
        %2990 = vmatmul.mubr.bf16.gmra.mrb[0].mxu0 %v2487
        %v2991 = vpop.f32.mrb[0].mxu0
        %v2992 = vadd.f32 %v2831, %v2991
        %v2993 = vpop.f32.mrb[0].mxu0
        %v2994 = vpop.f32.mrb[0].mxu0
        %v2995 = vadd.f32 %v2834, %v2994
        %v2996 = vpop.f32.mrb[0].mxu0
        %2997 = vmatprep.mubr.bf16.mxu0 0
        %2998 = vmatmul.mubr.bf16.gmra.mrb[0].mxu0 %v2490
        %v2999 = vpop.f32.mrb[0].mxu0
        %v3000 = vadd.f32 %v2839, %v2999
        %v3001 = vpop.f32.mrb[0].mxu0
        %v3002 = vpop.f32.mrb[0].mxu0
        %v3003 = vadd.f32 %v2842, %v3002
        %v3004 = vpop.f32.mrb[0].mxu0
        %3005 = vdwg.mxu0
        %v3054 = vunpack.c.l.b16 %v1877
        %v3055 = vunpack.c.l.b16 %v1878
        %v3056 = vunpack.c.l.b16 %v1879
        %v3057 = vunpack.c.l.b16 %v1880
        %v3058 = vunpack.c.l.b16 %v1881
        %v3059 = vunpack.c.l.b16 %v1882
        %v3060 = vunpack.c.l.b16 %v1883
        %v3061 = vunpack.c.l.b16 %v1884
        %v3062 = vunpack.c.l.b16 %v1885
        %v3063 = vunpack.c.l.b16 %v1886
        %v3064 = vunpack.c.l.b16 %v1887
        %v3065 = vunpack.c.l.b16 %v1888
        %v3066 = vunpack.c.l.b16 %v1889
        %v3067 = vunpack.c.l.b16 %v1890
        %v3068 = vunpack.c.l.b16 %v1891
        %v3069 = vunpack.c.l.b16 %v1892
        %v3070 = vunpack.c.l.b16 %v1893
        %v3071 = vunpack.c.l.b16 %v1894
        %v3072 = vunpack.c.l.b16 %v1895
        %v3073 = vunpack.c.l.b16 %v1896
        %v3074 = vunpack.c.l.b16 %v1897
        %v3075 = vunpack.c.l.b16 %v1898
        %v3076 = vunpack.c.l.b16 %v1899
        %v3077 = vunpack.c.l.b16 %v1900
        %v3078 = vunpack.c.l.b16 %v1901
        %v3079 = vunpack.c.l.b16 %v1902
        %v3080 = vunpack.c.l.b16 %v1903
        %v3081 = vunpack.c.l.b16 %v1904
        %v3082 = vunpack.c.l.b16 %v1905
        %v3083 = vunpack.c.l.b16 %v1906
        %v3084 = vunpack.c.l.b16 %v1907
        %v3085 = vunpack.c.l.b16 %v1908
        %v3086 = vunpack.c.l.b16 %v1909
        %v3087 = vunpack.c.l.b16 %v1910
        %v3088 = vunpack.c.l.b16 %v1911
        %v3089 = vunpack.c.l.b16 %v1912
        %v3090 = vunpack.c.l.b16 %v1913
        %v3091 = vunpack.c.l.b16 %v1914
        %v3092 = vunpack.c.l.b16 %v1915
        %v3093 = vunpack.c.l.b16 %v1916
        %v3094 = vunpack.c.l.b16 %v1917
        %v3095 = vunpack.c.l.b16 %v1918
        %v3096 = vunpack.c.l.b16 %v1919
        %v3097 = vunpack.c.l.b16 %v1920
        %v3098 = vunpack.c.l.b16 %v1921
        %v3099 = vunpack.c.l.b16 %v1922
        %v3100 = vunpack.c.l.b16 %v1923
        %v3101 = vunpack.c.l.b16 %v1924
        %v3102 = vpack.c.b16 %v3055, %v3054
        %v3103 = vpack.c.b16 %v3057, %v3056
        %v3104 = vpack.c.b16 %v3059, %v3058
        %v3105 = vpack.c.b16 %v3061, %v3060
        %v3106 = vpack.c.b16 %v3063, %v3062
        %v3107 = vpack.c.b16 %v3065, %v3064
        %v3108 = vpack.c.b16 %v3067, %v3066
        %v3109 = vpack.c.b16 %v3069, %v3068
        %v3110 = vpack.c.b16 %v3071, %v3070
        %v3111 = vpack.c.b16 %v3073, %v3072
        %v3112 = vpack.c.b16 %v3075, %v3074
        %v3113 = vpack.c.b16 %v3077, %v3076
        %v3114 = vpack.c.b16 %v3079, %v3078
        %v3115 = vpack.c.b16 %v3081, %v3080
        %v3116 = vpack.c.b16 %v3083, %v3082
        %v3117 = vpack.c.b16 %v3085, %v3084
        %v3118 = vpack.c.b16 %v3087, %v3086
        %v3119 = vpack.c.b16 %v3089, %v3088
        %v3120 = vpack.c.b16 %v3091, %v3090
        %v3121 = vpack.c.b16 %v3093, %v3092
        %v3122 = vpack.c.b16 %v3095, %v3094
        %v3123 = vpack.c.b16 %v3097, %v3096
        %v3124 = vpack.c.b16 %v3099, %v3098
        %v3125 = vpack.c.b16 %v3101, %v3100
        %3150 = vmatprep.subr.bf16.mxu0 0
        %3151 = vmatpush1.bf16.msra.mxu0 %v3102
        %3152 = vmatprep.subr.bf16.mxu0 0
        %3153 = vmatpush1.bf16.msra.mxu0 %v3103
        %3154 = vmatprep.subr.bf16.mxu0 0
        %3155 = vmatpush1.bf16.msra.mxu0 %v3104
        %3156 = vmatprep.subr.bf16.mxu0 0
        %3157 = vmatpush1.bf16.msra.mxu0 %v3105
        %3158 = vmatprep.subr.bf16.mxu0 0
        %3159 = vmatpush1.bf16.msra.mxu0 %v3106
        %3160 = vmatprep.subr.bf16.mxu0 0
        %3161 = vmatpush1.bf16.msra.mxu0 %v3107
        %3162 = vmatprep.subr.bf16.mxu0 0
        %3163 = vmatpush1.bf16.msra.mxu0 %v3108
        %3164 = vmatprep.subr.bf16.mxu0 0
        %3165 = vmatpush1.bf16.msra.mxu0 %v3109
        %3166 = vmatprep.subr.bf16.mxu0 0
        %3167 = vmatpush1.bf16.msra.mxu0 %v3110
        %3168 = vmatprep.subr.bf16.mxu0 0
        %3169 = vmatpush1.bf16.msra.mxu0 %v3111
        %3170 = vmatprep.subr.bf16.mxu0 0
        %3171 = vmatpush1.bf16.msra.mxu0 %v3112
        %3172 = vmatprep.subr.bf16.mxu0 0
        %3173 = vmatpush1.bf16.msra.mxu0 %v3113
        %3174 = vmatprep.subr.bf16.mxu0 0
        %3175 = vmatpush1.bf16.msra.mxu0 %v3114
        %3176 = vmatprep.subr.bf16.mxu0 0
        %3177 = vmatpush1.bf16.msra.mxu0 %v3115
        %3178 = vmatprep.subr.bf16.mxu0 0
        %3179 = vmatpush1.bf16.msra.mxu0 %v3116
        %3180 = vmatprep.subr.bf16.mxu0 0
        %3181 = vmatpush1.bf16.msra.mxu0 %v3117
        %3182 = vmatprep.mubr.bf16.mxu0 %v1830
        %3183 = vmatmul.mubr.bf16.gmra.mrb[0].mxu0 %v1829
        %v3184 = vpop.f32.mrb[0].mxu0
        %v3185 = vadd.f32 %v2317, %v3184
        %v3186 = vpop.f32.mrb[0].mxu0
        %v3187 = vpop.f32.mrb[0].mxu0
        %v3188 = vadd.f32 %v2320, %v3187
        %v3189 = vpop.f32.mrb[0].mxu0
        %3190 = vmatprep.mubr.bf16.mxu0 %v1833
        %3191 = vmatmul.mubr.bf16.gmra.mrb[0].mxu0 %v1832
        %v3192 = vpop.f32.mrb[0].mxu0
        %v3193 = vadd.f32 %v2325, %v3192
        %v3194 = vpop.f32.mrb[0].mxu0
        %v3195 = vpop.f32.mrb[0].mxu0
        %v3196 = vadd.f32 %v2328, %v3195
        %v3197 = vpop.f32.mrb[0].mxu0
        %3198 = vmatprep.mubr.bf16.mxu0 %v1836
        %3199 = vmatmul.mubr.bf16.gmra.mrb[0].mxu0 %v1835
        %v3200 = vpop.f32.mrb[0].mxu0
        %v3201 = vadd.f32 %v2333, %v3200
        %v3202 = vpop.f32.mrb[0].mxu0
        %v3203 = vpop.f32.mrb[0].mxu0
        %v3204 = vadd.f32 %v2336, %v3203
        %v3205 = vpop.f32.mrb[0].mxu0
        %3206 = vmatprep.mubr.bf16.mxu0 %v1839
        %3207 = vmatmul.mubr.bf16.gmra.mrb[0].mxu0 %v1838
        %v3208 = vpop.f32.mrb[0].mxu0
        %v3209 = vadd.f32 %v2341, %v3208
        %v3210 = vpop.f32.mrb[0].mxu0
        %v3211 = vpop.f32.mrb[0].mxu0
        %v3212 = vadd.f32 %v2344, %v3211
        %v3213 = vpop.f32.mrb[0].mxu0
        %3214 = vmatprep.mubr.bf16.mxu0 %v1842
        %3215 = vmatmul.mubr.bf16.gmra.mrb[0].mxu0 %v1841
        %v3216 = vpop.f32.mrb[0].mxu0
        %v3217 = vadd.f32 %v2349, %v3216
        %v3218 = vpop.f32.mrb[0].mxu0
        %v3219 = vpop.f32.mrb[0].mxu0
        %v3220 = vadd.f32 %v2352, %v3219
        %v3221 = vpop.f32.mrb[0].mxu0
        %3222 = vmatprep.mubr.bf16.mxu0 %v1845
        %3223 = vmatmul.mubr.bf16.gmra.mrb[0].mxu0 %v1844
        %v3224 = vpop.f32.mrb[0].mxu0
        %v3225 = vadd.f32 %v2357, %v3224
        %v3226 = vpop.f32.mrb[0].mxu0
        %v3227 = vpop.f32.mrb[0].mxu0
        %v3228 = vadd.f32 %v2360, %v3227
        %v3229 = vpop.f32.mrb[0].mxu0
        %3230 = vmatprep.mubr.bf16.mxu0 %v1848
        %3231 = vmatmul.mubr.bf16.gmra.mrb[0].mxu0 %v1847
        %v3232 = vpop.f32.mrb[0].mxu0
        %v3233 = vadd.f32 %v2365, %v3232
        %v3234 = vpop.f32.mrb[0].mxu0
        %v3235 = vpop.f32.mrb[0].mxu0
        %v3236 = vadd.f32 %v2368, %v3235
        %v3237 = vpop.f32.mrb[0].mxu0
        %3238 = vmatprep.mubr.bf16.mxu0 %v1851
        %3239 = vmatmul.mubr.bf16.gmra.mrb[0].mxu0 %v1850
        %v3240 = vpop.f32.mrb[0].mxu0
        %v3241 = vadd.f32 %v2373, %v3240
        %v3242 = vpop.f32.mrb[0].mxu0
        %v3243 = vpop.f32.mrb[0].mxu0
        %v3244 = vadd.f32 %v2376, %v3243
        %v3245 = vpop.f32.mrb[0].mxu0
        %3246 = vmatprep.mubr.bf16.mxu0 %v1854
        %3247 = vmatmul.mubr.bf16.gmra.mrb[0].mxu0 %v1853
        %v3248 = vpop.f32.mrb[0].mxu0
        %v3249 = vadd.f32 %v2381, %v3248
        %v3250 = vpop.f32.mrb[0].mxu0
        %v3251 = vpop.f32.mrb[0].mxu0
        %v3252 = vadd.f32 %v2384, %v3251
        %v3253 = vpop.f32.mrb[0].mxu0
        %3254 = vmatprep.mubr.bf16.mxu0 %v1857
        %3255 = vmatmul.mubr.bf16.gmra.mrb[0].mxu0 %v1856
        %v3256 = vpop.f32.mrb[0].mxu0
        %v3257 = vadd.f32 %v2389, %v3256
        %v3258 = vpop.f32.mrb[0].mxu0
        %v3259 = vpop.f32.mrb[0].mxu0
        %v3260 = vadd.f32 %v2392, %v3259
        %v3261 = vpop.f32.mrb[0].mxu0
        %3262 = vmatprep.mubr.bf16.mxu0 %v1860
        %3263 = vmatmul.mubr.bf16.gmra.mrb[0].mxu0 %v1859
        %v3264 = vpop.f32.mrb[0].mxu0
        %v3265 = vadd.f32 %v2397, %v3264
        %v3266 = vpop.f32.mrb[0].mxu0
        %v3267 = vpop.f32.mrb[0].mxu0
        %v3268 = vadd.f32 %v2400, %v3267
        %v3269 = vpop.f32.mrb[0].mxu0
        %3270 = vmatprep.mubr.bf16.mxu0 %v1863
        %3271 = vmatmul.mubr.bf16.gmra.mrb[0].mxu0 %v1862
        %v3272 = vpop.f32.mrb[0].mxu0
        %v3273 = vadd.f32 %v2405, %v3272
        %v3274 = vpop.f32.mrb[0].mxu0
        %v3275 = vpop.f32.mrb[0].mxu0
        %v3276 = vadd.f32 %v2408, %v3275
        %v3277 = vpop.f32.mrb[0].mxu0
        %3278 = vmatprep.mubr.bf16.mxu0 %v1866
        %3279 = vmatmul.mubr.bf16.gmra.mrb[0].mxu0 %v1865
        %v3280 = vpop.f32.mrb[0].mxu0
        %v3281 = vadd.f32 %v2413, %v3280
        %v3282 = vpop.f32.mrb[0].mxu0
        %v3283 = vpop.f32.mrb[0].mxu0
        %v3284 = vadd.f32 %v2416, %v3283
        %v3285 = vpop.f32.mrb[0].mxu0
        %3286 = vmatprep.mubr.bf16.mxu0 %v1869
        %3287 = vmatmul.mubr.bf16.gmra.mrb[0].mxu0 %v1868
        %v3288 = vpop.f32.mrb[0].mxu0
        %v3289 = vadd.f32 %v2421, %v3288
        %v3290 = vpop.f32.mrb[0].mxu0
        %v3291 = vpop.f32.mrb[0].mxu0
        %v3292 = vadd.f32 %v2424, %v3291
        %v3293 = vpop.f32.mrb[0].mxu0
        %3294 = vmatprep.mubr.bf16.mxu0 %v1872
        %3295 = vmatmul.mubr.bf16.gmra.mrb[0].mxu0 %v1871
        %v3296 = vpop.f32.mrb[0].mxu0
        %v3297 = vadd.f32 %v2429, %v3296
        %v3298 = vpop.f32.mrb[0].mxu0
        %v3299 = vpop.f32.mrb[0].mxu0
        %v3300 = vadd.f32 %v2432, %v3299
        %v3301 = vpop.f32.mrb[0].mxu0
        %3302 = vmatprep.mubr.bf16.mxu0 %v1875
        %3303 = vmatmul.mubr.bf16.gmra.mrb[0].mxu0 %v1874
        %v3304 = vpop.f32.mrb[0].mxu0
        %v3305 = vadd.f32 %v2437, %v3304
        %v3306 = vpop.f32.mrb[0].mxu0
        %v3307 = vpop.f32.mrb[0].mxu0
        %v3308 = vadd.f32 %v2440, %v3307
        %v3309 = vpop.f32.mrb[0].mxu0
        %3310 = vdwg.mxu0
        %3311 = vmatprep.subr.bf16.mxu0 0
        %3312 = vmatpush1.bf16.msra.mxu0 %v3118
        %3313 = vmatprep.subr.bf16.mxu0 0
        %3314 = vmatpush1.bf16.msra.mxu0 %v3119
        %3315 = vmatprep.subr.bf16.mxu0 0
        %3316 = vmatpush1.bf16.msra.mxu0 %v3120
        %3317 = vmatprep.subr.bf16.mxu0 0
        %3318 = vmatpush1.bf16.msra.mxu0 %v3121
        %3319 = vmatprep.subr.bf16.mxu0 0
        %3320 = vmatpush1.bf16.msra.mxu0 %v3122
        %3321 = vmatprep.subr.bf16.mxu0 0
        %3322 = vmatpush1.bf16.msra.mxu0 %v3123
        %3323 = vmatprep.subr.bf16.mxu0 0
        %3324 = vmatpush1.bf16.msra.mxu0 %v3124
        %3325 = vmatprep.subr.bf16.mxu0 0
        %3326 = vmatpush1.bf16.msra.mxu0 %v3125
        %3327 = vmatprep.subr.bf16.mxu0 0
        %3328 = vmatpush1.bf16.msra.mxu0 0
        %3329 = vmatprep.subr.bf16.mxu0 0
        %3330 = vmatpush1.bf16.msra.mxu0 0
        %3331 = vmatprep.subr.bf16.mxu0 0
        %3332 = vmatpush1.bf16.msra.mxu0 0
        %3333 = vmatprep.subr.bf16.mxu0 0
        %3334 = vmatpush1.bf16.msra.mxu0 0
        %3335 = vmatprep.subr.bf16.mxu0 0
        %3336 = vmatpush1.bf16.msra.mxu0 0
        %3337 = vmatprep.subr.bf16.mxu0 0
        %3338 = vmatpush1.bf16.msra.mxu0 0
        %3339 = vmatprep.subr.bf16.mxu0 0
        %3340 = vmatpush1.bf16.msra.mxu0 0
        %3341 = vmatprep.subr.bf16.mxu0 0
        %3342 = vmatpush1.bf16.msra.mxu0 0
        %3343 = vmatprep.mubr.bf16.mxu0 0
        %3344 = vmatmul.mubr.bf16.gmra.mrb[0].mxu0 %v1831
        %v3345 = vpop.f32.mrb[0].mxu0
        %v3346 = vadd.f32 %v3185, %v3345
        %v3347 = vpop.f32.mrb[0].mxu0
        %v3348 = vpop.f32.mrb[0].mxu0
        %v3349 = vadd.f32 %v3188, %v3348
        %v3350 = vpop.f32.mrb[0].mxu0
        %3351 = vmatprep.mubr.bf16.mxu0 0
        %3352 = vmatmul.mubr.bf16.gmra.mrb[0].mxu0 %v1834
        %v3353 = vpop.f32.mrb[0].mxu0
        %v3354 = vadd.f32 %v3193, %v3353
        %v3355 = vpop.f32.mrb[0].mxu0
        %v3356 = vpop.f32.mrb[0].mxu0
        %v3357 = vadd.f32 %v3196, %v3356
        %v3358 = vpop.f32.mrb[0].mxu0
        %3359 = vmatprep.mubr.bf16.mxu0 0
        %3360 = vmatmul.mubr.bf16.gmra.mrb[0].mxu0 %v1837
        %v3361 = vpop.f32.mrb[0].mxu0
        %v3362 = vadd.f32 %v3201, %v3361
        %v3363 = vpop.f32.mrb[0].mxu0
        %v3364 = vpop.f32.mrb[0].mxu0
        %v3365 = vadd.f32 %v3204, %v3364
        %v3366 = vpop.f32.mrb[0].mxu0
        %3367 = vmatprep.mubr.bf16.mxu0 0
        %3368 = vmatmul.mubr.bf16.gmra.mrb[0].mxu0 %v1840
        %v3369 = vpop.f32.mrb[0].mxu0
        %v3370 = vadd.f32 %v3209, %v3369
        %v3371 = vpop.f32.mrb[0].mxu0
        %v3372 = vpop.f32.mrb[0].mxu0
        %v3373 = vadd.f32 %v3212, %v3372
        %v3374 = vpop.f32.mrb[0].mxu0
        %3375 = vmatprep.mubr.bf16.mxu0 0
        %3376 = vmatmul.mubr.bf16.gmra.mrb[0].mxu0 %v1843
        %v3377 = vpop.f32.mrb[0].mxu0
        %v3378 = vadd.f32 %v3217, %v3377
        %v3379 = vpop.f32.mrb[0].mxu0
        %v3380 = vpop.f32.mrb[0].mxu0
        %v3381 = vadd.f32 %v3220, %v3380
        %v3382 = vpop.f32.mrb[0].mxu0
        %3383 = vmatprep.mubr.bf16.mxu0 0
        %3384 = vmatmul.mubr.bf16.gmra.mrb[0].mxu0 %v1846
        %v3385 = vpop.f32.mrb[0].mxu0
        %v3386 = vadd.f32 %v3225, %v3385
        %v3387 = vpop.f32.mrb[0].mxu0
        %v3388 = vpop.f32.mrb[0].mxu0
        %v3389 = vadd.f32 %v3228, %v3388
        %v3390 = vpop.f32.mrb[0].mxu0
        %3391 = vmatprep.mubr.bf16.mxu0 0
        %3392 = vmatmul.mubr.bf16.gmra.mrb[0].mxu0 %v1849
        %v3393 = vpop.f32.mrb[0].mxu0
        %v3394 = vadd.f32 %v3233, %v3393
        %v3395 = vpop.f32.mrb[0].mxu0
        %v3396 = vpop.f32.mrb[0].mxu0
        %v3397 = vadd.f32 %v3236, %v3396
        %v3398 = vpop.f32.mrb[0].mxu0
        %3399 = vmatprep.mubr.bf16.mxu0 0
        %3400 = vmatmul.mubr.bf16.gmra.mrb[0].mxu0 %v1852
        %v3401 = vpop.f32.mrb[0].mxu0
        %v3402 = vadd.f32 %v3241, %v3401
        %v3403 = vpop.f32.mrb[0].mxu0
        %v3404 = vpop.f32.mrb[0].mxu0
        %v3405 = vadd.f32 %v3244, %v3404
        %v3406 = vpop.f32.mrb[0].mxu0
        %3407 = vmatprep.mubr.bf16.mxu0 0
        %3408 = vmatmul.mubr.bf16.gmra.mrb[0].mxu0 %v1855
        %v3409 = vpop.f32.mrb[0].mxu0
        %v3410 = vadd.f32 %v3249, %v3409
        %v3411 = vpop.f32.mrb[0].mxu0
        %v3412 = vpop.f32.mrb[0].mxu0
        %v3413 = vadd.f32 %v3252, %v3412
        %v3414 = vpop.f32.mrb[0].mxu0
        %3415 = vmatprep.mubr.bf16.mxu0 0
        %3416 = vmatmul.mubr.bf16.gmra.mrb[0].mxu0 %v1858
        %v3417 = vpop.f32.mrb[0].mxu0
        %v3418 = vadd.f32 %v3257, %v3417
        %v3419 = vpop.f32.mrb[0].mxu0
        %v3420 = vpop.f32.mrb[0].mxu0
        %v3421 = vadd.f32 %v3260, %v3420
        %v3422 = vpop.f32.mrb[0].mxu0
        %3423 = vmatprep.mubr.bf16.mxu0 0
        %3424 = vmatmul.mubr.bf16.gmra.mrb[0].mxu0 %v1861
        %v3425 = vpop.f32.mrb[0].mxu0
        %v3426 = vadd.f32 %v3265, %v3425
        %v3427 = vpop.f32.mrb[0].mxu0
        %v3428 = vpop.f32.mrb[0].mxu0
        %v3429 = vadd.f32 %v3268, %v3428
        %v3430 = vpop.f32.mrb[0].mxu0
        %3431 = vmatprep.mubr.bf16.mxu0 0
        %3432 = vmatmul.mubr.bf16.gmra.mrb[0].mxu0 %v1864
        %v3433 = vpop.f32.mrb[0].mxu0
        %v3434 = vadd.f32 %v3273, %v3433
        %v3435 = vpop.f32.mrb[0].mxu0
        %v3436 = vpop.f32.mrb[0].mxu0
        %v3437 = vadd.f32 %v3276, %v3436
        %v3438 = vpop.f32.mrb[0].mxu0
        %3439 = vmatprep.mubr.bf16.mxu0 0
        %3440 = vmatmul.mubr.bf16.gmra.mrb[0].mxu0 %v1867
        %v3441 = vpop.f32.mrb[0].mxu0
        %v3442 = vadd.f32 %v3281, %v3441
        %v3443 = vpop.f32.mrb[0].mxu0
        %v3444 = vpop.f32.mrb[0].mxu0
        %v3445 = vadd.f32 %v3284, %v3444
        %v3446 = vpop.f32.mrb[0].mxu0
        %3447 = vmatprep.mubr.bf16.mxu0 0
        %3448 = vmatmul.mubr.bf16.gmra.mrb[0].mxu0 %v1870
        %v3449 = vpop.f32.mrb[0].mxu0
        %v3450 = vadd.f32 %v3289, %v3449
        %v3451 = vpop.f32.mrb[0].mxu0
        %v3452 = vpop.f32.mrb[0].mxu0
        %v3453 = vadd.f32 %v3292, %v3452
        %v3454 = vpop.f32.mrb[0].mxu0
        %3455 = vmatprep.mubr.bf16.mxu0 0
        %3456 = vmatmul.mubr.bf16.gmra.mrb[0].mxu0 %v1873
        %v3457 = vpop.f32.mrb[0].mxu0
        %v3458 = vadd.f32 %v3297, %v3457
        %v3459 = vpop.f32.mrb[0].mxu0
        %v3460 = vpop.f32.mrb[0].mxu0
        %v3461 = vadd.f32 %v3300, %v3460
        %v3462 = vpop.f32.mrb[0].mxu0
        %3463 = vmatprep.mubr.bf16.mxu0 0
        %3464 = vmatmul.mubr.bf16.gmra.mrb[0].mxu0 %v1876
        %v3465 = vpop.f32.mrb[0].mxu0
        %v3466 = vadd.f32 %v3305, %v3465
        %v3467 = vpop.f32.mrb[0].mxu0
        %v3468 = vpop.f32.mrb[0].mxu0
        %v3469 = vadd.f32 %v3308, %v3468
        %v3470 = vpop.f32.mrb[0].mxu0
        %3471 = vdwg.mxu0
        %v3472 = vadd.f32 %v3346, %v2880
        %v3473 = vadd.f32 %v3349, %v2883
        %v3474 = vadd.f32 %v3354, %v2888
        %v3475 = vadd.f32 %v3357, %v2891
        %v3476 = vadd.f32 %v3362, %v2896
        %v3477 = vadd.f32 %v3365, %v2899
        %v3478 = vadd.f32 %v3370, %v2904
        %v3479 = vadd.f32 %v3373, %v2907
        %v3480 = vadd.f32 %v3378, %v2912
        %v3481 = vadd.f32 %v3381, %v2915
        %v3482 = vadd.f32 %v3386, %v2920
        %v3483 = vadd.f32 %v3389, %v2923
        %v3484 = vadd.f32 %v3394, %v2928
        %v3485 = vadd.f32 %v3397, %v2931
        %v3486 = vadd.f32 %v3402, %v2936
        %v3487 = vadd.f32 %v3405, %v2939
        %v3488 = vadd.f32 %v3410, %v2944
        %v3489 = vadd.f32 %v3413, %v2947
        %v3490 = vadd.f32 %v3418, %v2952
        %v3491 = vadd.f32 %v3421, %v2955
        %v3492 = vadd.f32 %v3426, %v2960
        %v3493 = vadd.f32 %v3429, %v2963
        %v3494 = vadd.f32 %v3434, %v2968
        %v3495 = vadd.f32 %v3437, %v2971
        %v3496 = vadd.f32 %v3442, %v2976
        %v3497 = vadd.f32 %v3445, %v2979
        %v3498 = vadd.f32 %v3450, %v2984
        %v3499 = vadd.f32 %v3453, %v2987
        %v3500 = vadd.f32 %v3458, %v2992
        %v3501 = vadd.f32 %v3461, %v2995
        %v3502 = vadd.f32 %v3466, %v3000
        %v3503 = vadd.f32 %v3469, %v3003
        %v3504 = vld [vmem:[%s5] sm:$0x1]
        %v3506 = vlaneseq
        %v3507 = vshrl.u32 %v3506, 7
        %v3508 = vsub.s32 0, %v3507
        %v3509 = vrot.slane %v3504, %v3508
        %v3511 = vadd.f32 %v3472, %v3509
        %v3512 = vadd.f32 %v3473, %v3509
        %v3513 = vadd.f32 %v3474, %v3509
        %v3514 = vadd.f32 %v3475, %v3509
        %v3515 = vadd.f32 %v3476, %v3509
        %v3516 = vadd.f32 %v3477, %v3509
        %v3517 = vadd.f32 %v3478, %v3509
        %v3518 = vadd.f32 %v3479, %v3509
        %v3519 = vadd.f32 %v3480, %v3509
        %v3520 = vadd.f32 %v3481, %v3509
        %v3521 = vadd.f32 %v3482, %v3509
        %v3522 = vadd.f32 %v3483, %v3509
        %v3523 = vadd.f32 %v3484, %v3509
        %v3524 = vadd.f32 %v3485, %v3509
        %v3525 = vadd.f32 %v3486, %v3509
        %v3526 = vadd.f32 %v3487, %v3509
        %v3527 = vadd.f32 %v3488, %v3509
        %v3528 = vadd.f32 %v3489, %v3509
        %v3529 = vadd.f32 %v3490, %v3509
        %v3530 = vadd.f32 %v3491, %v3509
        %v3531 = vadd.f32 %v3492, %v3509
        %v3532 = vadd.f32 %v3493, %v3509
        %v3533 = vadd.f32 %v3494, %v3509
        %v3534 = vadd.f32 %v3495, %v3509
        %v3535 = vadd.f32 %v3496, %v3509
        %v3536 = vadd.f32 %v3497, %v3509
        %v3537 = vadd.f32 %v3498, %v3509
        %v3538 = vadd.f32 %v3499, %v3509
        %v3539 = vadd.f32 %v3500, %v3509
        %v3540 = vadd.f32 %v3501, %v3509
        %v3541 = vadd.f32 %v3502, %v3509
        %v3542 = vadd.f32 %v3503, %v3509
        %v3543 = vmax.f32 %v3511, 0.0
        %v3544 = vmax.f32 %v3512, 0.0
        %v3545 = vmax.f32 %v3513, 0.0
        %v3546 = vmax.f32 %v3514, 0.0
        %v3547 = vmax.f32 %v3515, 0.0
        %v3548 = vmax.f32 %v3516, 0.0
        %v3549 = vmax.f32 %v3517, 0.0
        %v3550 = vmax.f32 %v3518, 0.0
        %v3551 = vmax.f32 %v3519, 0.0
        %v3552 = vmax.f32 %v3520, 0.0
        %v3553 = vmax.f32 %v3521, 0.0
        %v3554 = vmax.f32 %v3522, 0.0
        %v3555 = vmax.f32 %v3523, 0.0
        %v3556 = vmax.f32 %v3524, 0.0
        %v3557 = vmax.f32 %v3525, 0.0
        %v3558 = vmax.f32 %v3526, 0.0
        %v3559 = vmax.f32 %v3527, 0.0
        %v3560 = vmax.f32 %v3528, 0.0
        %v3561 = vmax.f32 %v3529, 0.0
        %v3562 = vmax.f32 %v3530, 0.0
        %v3563 = vmax.f32 %v3531, 0.0
        %v3564 = vmax.f32 %v3532, 0.0
        %v3565 = vmax.f32 %v3533, 0.0
        %v3566 = vmax.f32 %v3534, 0.0
        %v3567 = vmax.f32 %v3535, 0.0
        %v3568 = vmax.f32 %v3536, 0.0
        %v3569 = vmax.f32 %v3537, 0.0
        %v3570 = vmax.f32 %v3538, 0.0
        %v3571 = vmax.f32 %v3539, 0.0
        %v3572 = vmax.f32 %v3540, 0.0
        %v3573 = vmax.f32 %v3541, 0.0
        %v3574 = vmax.f32 %v3542, 0.0
        %v3575 = vpack.c.bf16 %v3544, %v3543
        %v3576 = vpack.c.bf16 %v3546, %v3545
        %v3577 = vpack.c.bf16 %v3548, %v3547
        %v3578 = vpack.c.bf16 %v3550, %v3549
        %v3579 = vpack.c.bf16 %v3552, %v3551
        %v3580 = vpack.c.bf16 %v3554, %v3553
        %v3581 = vpack.c.bf16 %v3556, %v3555
        %v3582 = vpack.c.bf16 %v3558, %v3557
        %v3583 = vpack.c.bf16 %v3560, %v3559
        %v3584 = vpack.c.bf16 %v3562, %v3561
        %v3585 = vpack.c.bf16 %v3564, %v3563
        %v3586 = vpack.c.bf16 %v3566, %v3565
        %v3587 = vpack.c.bf16 %v3568, %v3567
        %v3588 = vpack.c.bf16 %v3570, %v3569
        %v3589 = vpack.c.bf16 %v3572, %v3571
        %v3590 = vpack.c.bf16 %v3574, %v3573
        %v3591 = vld [vmem:[#allocation9] sm:$0xf]
        %v3592 = vld [vmem:[#allocation9 + $0x4] sm:$0xf]
        %v3593 = vld [vmem:[#allocation9 + $0x8] sm:$0xf]
        %v3594 = vld [vmem:[#allocation9 + $0xc] sm:$0xf]
        %v3595 = vld [vmem:[#allocation9 + $0x10] sm:$0xf]
        %v3596 = vld [vmem:[#allocation9 + $0x14] sm:$0xf]
        %v3597 = vld [vmem:[#allocation9 + $0x18] sm:$0xf]
        %v3598 = vld [vmem:[#allocation9 + $0x1c] sm:$0xf]
        %v3599 = vld [vmem:[#allocation9 + $0x20] sm:$0xf]
        %v3600 = vld [vmem:[#allocation9 + $0x24] sm:$0xf]
        %v3601 = vld [vmem:[#allocation9 + $0x28] sm:$0xf]
        %v3602 = vld [vmem:[#allocation9 + $0x2c] sm:$0xf]
        %v3603 = vld [vmem:[#allocation9 + $0x30] sm:$0xf]
        %v3604 = vld [vmem:[#allocation9 + $0x34] sm:$0xf]
        %v3605 = vld [vmem:[#allocation9 + $0x38] sm:$0xf]
        %v3606 = vld [vmem:[#allocation9 + $0x3c] sm:$0xf]
        %v3607 = vld [vmem:[%s7] sm:$0x1]
        %v3609 = vlaneseq
        %v3610 = vshrl.u32 %v3609, 7
        %v3611 = vsub.s32 0, %v3610
        %v3612 = vrot.slane %v3607, %v3611
        %v3630 = vunpack.c.l.b16 %v3591
        %v3631 = vunpack.c.l.b16 %v3592
        %v3632 = vunpack.c.l.b16 %v3593
        %v3633 = vunpack.c.l.b16 %v3594
        %v3634 = vunpack.c.l.b16 %v3595
        %v3635 = vunpack.c.l.b16 %v3596
        %v3636 = vunpack.c.l.b16 %v3597
        %v3637 = vunpack.c.l.b16 %v3598
        %v3638 = vunpack.c.l.b16 %v3599
        %v3639 = vunpack.c.l.b16 %v3600
        %v3640 = vunpack.c.l.b16 %v3601
        %v3641 = vunpack.c.l.b16 %v3602
        %v3642 = vunpack.c.l.b16 %v3603
        %v3643 = vunpack.c.l.b16 %v3604
        %v3644 = vunpack.c.l.b16 %v3605
        %v3645 = vunpack.c.l.b16 %v3606
        %v3646 = vpack.c.b16 %v3631, %v3630
        %v3647 = vpack.c.b16 %v3633, %v3632
        %v3648 = vpack.c.b16 %v3635, %v3634
        %v3649 = vpack.c.b16 %v3637, %v3636
        %v3650 = vpack.c.b16 %v3639, %v3638
        %v3651 = vpack.c.b16 %v3641, %v3640
        %v3652 = vpack.c.b16 %v3643, %v3642
        %v3653 = vpack.c.b16 %v3645, %v3644
        %3662 = vmatprep.subr.bf16.mxu0 0
        %3663 = vmatpush1.bf16.msra.mxu0 %v3646
        %3664 = vmatprep.subr.bf16.mxu0 0
        %3665 = vmatpush1.bf16.msra.mxu0 %v3647
        %3666 = vmatprep.subr.bf16.mxu0 0
        %3667 = vmatpush1.bf16.msra.mxu0 %v3648
        %3668 = vmatprep.subr.bf16.mxu0 0
        %3669 = vmatpush1.bf16.msra.mxu0 %v3649
        %3670 = vmatprep.subr.bf16.mxu0 0
        %3671 = vmatpush1.bf16.msra.mxu0 %v3650
        %3672 = vmatprep.subr.bf16.mxu0 0
        %3673 = vmatpush1.bf16.msra.mxu0 %v3651
        %3674 = vmatprep.subr.bf16.mxu0 0
        %3675 = vmatpush1.bf16.msra.mxu0 %v3652
        %3676 = vmatprep.subr.bf16.mxu0 0
        %3677 = vmatpush1.bf16.msra.mxu0 %v3653
        %3678 = vmatprep.subr.bf16.mxu0 0
        %3679 = vmatpush1.bf16.msra.mxu0 0
        %3680 = vmatprep.subr.bf16.mxu0 0
        %3681 = vmatpush1.bf16.msra.mxu0 0
        %3682 = vmatprep.subr.bf16.mxu0 0
        %3683 = vmatpush1.bf16.msra.mxu0 0
        %3684 = vmatprep.subr.bf16.mxu0 0
        %3685 = vmatpush1.bf16.msra.mxu0 0
        %3686 = vmatprep.subr.bf16.mxu0 0
        %3687 = vmatpush1.bf16.msra.mxu0 0
        %3688 = vmatprep.subr.bf16.mxu0 0
        %3689 = vmatpush1.bf16.msra.mxu0 0
        %3690 = vmatprep.subr.bf16.mxu0 0
        %3691 = vmatpush1.bf16.msra.mxu0 0
        %3692 = vmatprep.subr.bf16.mxu0 0
        %3693 = vmatpush1.bf16.msra.mxu0 0
        %3694 = vmatprep.mubr.bf16.mxu0 0
        %3695 = vmatmul.mubr.bf16.gmra.mrb[0].mxu0 %v3575
        %v3696 = vpop.f32.mrb[0].mxu0
        %v3697 = vadd.f32 %v3612, %v3696
        %v3698 = vpop.f32.mrb[0].mxu0
        %v3699 = vpop.f32.mrb[0].mxu0
        %v3700 = vadd.f32 %v3612, %v3699
        %v3701 = vpop.f32.mrb[0].mxu0
        %3702 = vmatprep.mubr.bf16.mxu0 0
        %3703 = vmatmul.mubr.bf16.gmra.mrb[0].mxu0 %v3576
        %v3704 = vpop.f32.mrb[0].mxu0
        %v3705 = vadd.f32 %v3612, %v3704
        %v3706 = vpop.f32.mrb[0].mxu0
        %v3707 = vpop.f32.mrb[0].mxu0
        %v3708 = vadd.f32 %v3612, %v3707
        %v3709 = vpop.f32.mrb[0].mxu0
        %3710 = vmatprep.mubr.bf16.mxu0 0
        %3711 = vmatmul.mubr.bf16.gmra.mrb[0].mxu0 %v3577
        %v3712 = vpop.f32.mrb[0].mxu0
        %v3713 = vadd.f32 %v3612, %v3712
        %v3714 = vpop.f32.mrb[0].mxu0
        %v3715 = vpop.f32.mrb[0].mxu0
        %v3716 = vadd.f32 %v3612, %v3715
        %v3717 = vpop.f32.mrb[0].mxu0
        %3718 = vmatprep.mubr.bf16.mxu0 0
        %3719 = vmatmul.mubr.bf16.gmra.mrb[0].mxu0 %v3578
        %v3720 = vpop.f32.mrb[0].mxu0
        %v3721 = vadd.f32 %v3612, %v3720
        %v3722 = vpop.f32.mrb[0].mxu0
        %v3723 = vpop.f32.mrb[0].mxu0
        %v3724 = vadd.f32 %v3612, %v3723
        %v3725 = vpop.f32.mrb[0].mxu0
        %3726 = vmatprep.mubr.bf16.mxu0 0
        %3727 = vmatmul.mubr.bf16.gmra.mrb[0].mxu0 %v3579
        %v3728 = vpop.f32.mrb[0].mxu0
        %v3729 = vadd.f32 %v3612, %v3728
        %v3730 = vpop.f32.mrb[0].mxu0
        %v3731 = vpop.f32.mrb[0].mxu0
        %v3732 = vadd.f32 %v3612, %v3731
        %v3733 = vpop.f32.mrb[0].mxu0
        %3734 = vmatprep.mubr.bf16.mxu0 0
        %3735 = vmatmul.mubr.bf16.gmra.mrb[0].mxu0 %v3580
        %v3736 = vpop.f32.mrb[0].mxu0
        %v3737 = vadd.f32 %v3612, %v3736
        %v3738 = vpop.f32.mrb[0].mxu0
        %v3739 = vpop.f32.mrb[0].mxu0
        %v3740 = vadd.f32 %v3612, %v3739
        %v3741 = vpop.f32.mrb[0].mxu0
        %3742 = vmatprep.mubr.bf16.mxu0 0
        %3743 = vmatmul.mubr.bf16.gmra.mrb[0].mxu0 %v3581
        %v3744 = vpop.f32.mrb[0].mxu0
        %v3745 = vadd.f32 %v3612, %v3744
        %v3746 = vpop.f32.mrb[0].mxu0
        %v3747 = vpop.f32.mrb[0].mxu0
        %v3748 = vadd.f32 %v3612, %v3747
        %v3749 = vpop.f32.mrb[0].mxu0
        %3750 = vmatprep.mubr.bf16.mxu0 0
        %3751 = vmatmul.mubr.bf16.gmra.mrb[0].mxu0 %v3582
        %v3752 = vpop.f32.mrb[0].mxu0
        %v3753 = vadd.f32 %v3612, %v3752
        %v3754 = vpop.f32.mrb[0].mxu0
        %v3755 = vpop.f32.mrb[0].mxu0
        %v3756 = vadd.f32 %v3612, %v3755
        %v3757 = vpop.f32.mrb[0].mxu0
        %3758 = vmatprep.mubr.bf16.mxu0 0
        %3759 = vmatmul.mubr.bf16.gmra.mrb[0].mxu0 %v3583
        %v3760 = vpop.f32.mrb[0].mxu0
        %v3761 = vadd.f32 %v3612, %v3760
        %v3762 = vpop.f32.mrb[0].mxu0
        %v3763 = vpop.f32.mrb[0].mxu0
        %v3764 = vadd.f32 %v3612, %v3763
        %v3765 = vpop.f32.mrb[0].mxu0
        %3766 = vmatprep.mubr.bf16.mxu0 0
        %3767 = vmatmul.mubr.bf16.gmra.mrb[0].mxu0 %v3584
        %v3768 = vpop.f32.mrb[0].mxu0
        %v3769 = vadd.f32 %v3612, %v3768
        %v3770 = vpop.f32.mrb[0].mxu0
        %v3771 = vpop.f32.mrb[0].mxu0
        %v3772 = vadd.f32 %v3612, %v3771
        %v3773 = vpop.f32.mrb[0].mxu0
        %3774 = vmatprep.mubr.bf16.mxu0 0
        %3775 = vmatmul.mubr.bf16.gmra.mrb[0].mxu0 %v3585
        %v3776 = vpop.f32.mrb[0].mxu0
        %v3777 = vadd.f32 %v3612, %v3776
        %v3778 = vpop.f32.mrb[0].mxu0
        %v3779 = vpop.f32.mrb[0].mxu0
        %v3780 = vadd.f32 %v3612, %v3779
        %v3781 = vpop.f32.mrb[0].mxu0
        %3782 = vmatprep.mubr.bf16.mxu0 0
        %3783 = vmatmul.mubr.bf16.gmra.mrb[0].mxu0 %v3586
        %v3784 = vpop.f32.mrb[0].mxu0
        %v3785 = vadd.f32 %v3612, %v3784
        %v3786 = vpop.f32.mrb[0].mxu0
        %v3787 = vpop.f32.mrb[0].mxu0
        %v3788 = vadd.f32 %v3612, %v3787
        %v3789 = vpop.f32.mrb[0].mxu0
        %3790 = vmatprep.mubr.bf16.mxu0 0
        %3791 = vmatmul.mubr.bf16.gmra.mrb[0].mxu0 %v3587
        %v3792 = vpop.f32.mrb[0].mxu0
        %v3793 = vadd.f32 %v3612, %v3792
        %v3794 = vpop.f32.mrb[0].mxu0
        %v3795 = vpop.f32.mrb[0].mxu0
        %v3796 = vadd.f32 %v3612, %v3795
        %v3797 = vpop.f32.mrb[0].mxu0
        %3798 = vmatprep.mubr.bf16.mxu0 0
        %3799 = vmatmul.mubr.bf16.gmra.mrb[0].mxu0 %v3588
        %v3800 = vpop.f32.mrb[0].mxu0
        %v3801 = vadd.f32 %v3612, %v3800
        %v3802 = vpop.f32.mrb[0].mxu0
        %v3803 = vpop.f32.mrb[0].mxu0
        %v3804 = vadd.f32 %v3612, %v3803
        %v3805 = vpop.f32.mrb[0].mxu0
        %3806 = vmatprep.mubr.bf16.mxu0 0
        %3807 = vmatmul.mubr.bf16.gmra.mrb[0].mxu0 %v3589
        %v3808 = vpop.f32.mrb[0].mxu0
        %v3809 = vadd.f32 %v3612, %v3808
        %v3810 = vpop.f32.mrb[0].mxu0
        %v3811 = vpop.f32.mrb[0].mxu0
        %v3812 = vadd.f32 %v3612, %v3811
        %v3813 = vpop.f32.mrb[0].mxu0
        %3814 = vmatprep.mubr.bf16.mxu0 0
        %3815 = vmatmul.mubr.bf16.gmra.mrb[0].mxu0 %v3590
        %v3816 = vpop.f32.mrb[0].mxu0
        %v3817 = vadd.f32 %v3612, %v3816
        %v3818 = vpop.f32.mrb[0].mxu0
        %v3819 = vpop.f32.mrb[0].mxu0
        %v3820 = vadd.f32 %v3612, %v3819
        %v3821 = vpop.f32.mrb[0].mxu0
        %3822 = vdwg.mxu0
        %v3823 = vld [vmem:[%s357] sm:$0xf]
        %v3824 = vld [vmem:[%s357 + $0x4] sm:$0xf]
        %v3825 = vld [vmem:[%s357 + $0x8] sm:$0xf]
        %v3826 = vld [vmem:[%s357 + $0xc] sm:$0xf]
        %v3827 = vld [vmem:[%s357 + $0x10] sm:$0xf]
        %v3828 = vld [vmem:[%s357 + $0x14] sm:$0xf]
        %v3829 = vld [vmem:[%s357 + $0x18] sm:$0xf]
        %v3830 = vld [vmem:[%s357 + $0x1c] sm:$0xf]
        %v3831 = vld [vmem:[%s357 + $0x20] sm:$0xf]
        %v3832 = vld [vmem:[%s357 + $0x24] sm:$0xf]
        %v3833 = vld [vmem:[%s357 + $0x28] sm:$0xf]
        %v3834 = vld [vmem:[%s357 + $0x2c] sm:$0xf]
        %v3835 = vld [vmem:[%s357 + $0x30] sm:$0xf]
        %v3836 = vld [vmem:[%s357 + $0x34] sm:$0xf]
        %v3837 = vld [vmem:[%s357 + $0x38] sm:$0xf]
        %v3838 = vld [vmem:[%s357 + $0x3c] sm:$0xf]
        %v3839 = vld [vmem:[%s357 + $0x40] sm:$0xf]
        %v3840 = vld [vmem:[%s357 + $0x44] sm:$0xf]
        %v3841 = vld [vmem:[%s357 + $0x48] sm:$0xf]
        %v3842 = vld [vmem:[%s357 + $0x4c] sm:$0xf]
        %v3843 = vld [vmem:[%s357 + $0x50] sm:$0xf]
        %v3844 = vld [vmem:[%s357 + $0x54] sm:$0xf]
        %v3845 = vld [vmem:[%s357 + $0x58] sm:$0xf]
        %v3846 = vld [vmem:[%s357 + $0x5c] sm:$0xf]
        %v3847 = vld [vmem:[%s357 + $0x60] sm:$0xf]
        %v3848 = vld [vmem:[%s357 + $0x64] sm:$0xf]
        %v3849 = vld [vmem:[%s357 + $0x68] sm:$0xf]
        %v3850 = vld [vmem:[%s357 + $0x6c] sm:$0xf]
        %v3851 = vld [vmem:[%s357 + $0x70] sm:$0xf]
        %v3852 = vld [vmem:[%s357 + $0x74] sm:$0xf]
        %v3853 = vld [vmem:[%s357 + $0x78] sm:$0xf]
        %v3854 = vld [vmem:[%s357 + $0x7c] sm:$0xf]
        %v3855 = vunpack.c.l.bf16 %v3823
        %v3856 = vunpack.c.l.bf16 %v3824
        %v3857 = vunpack.c.l.bf16 %v3825
        %v3858 = vunpack.c.l.bf16 %v3826
        %v3859 = vunpack.c.l.bf16 %v3827
        %v3860 = vunpack.c.l.bf16 %v3828
        %v3861 = vunpack.c.l.bf16 %v3829
        %v3862 = vunpack.c.l.bf16 %v3830
        %v3863 = vunpack.c.l.bf16 %v3831
        %v3864 = vunpack.c.l.bf16 %v3832
        %v3865 = vunpack.c.l.bf16 %v3833
        %v3866 = vunpack.c.l.bf16 %v3834
        %v3867 = vunpack.c.l.bf16 %v3835
        %v3868 = vunpack.c.l.bf16 %v3836
        %v3869 = vunpack.c.l.bf16 %v3837
        %v3870 = vunpack.c.l.bf16 %v3838
        %v3871 = vunpack.c.l.bf16 %v3839
        %v3872 = vunpack.c.l.bf16 %v3840
        %v3873 = vunpack.c.l.bf16 %v3841
        %v3874 = vunpack.c.l.bf16 %v3842
        %v3875 = vunpack.c.l.bf16 %v3843
        %v3876 = vunpack.c.l.bf16 %v3844
        %v3877 = vunpack.c.l.bf16 %v3845
        %v3878 = vunpack.c.l.bf16 %v3846
        %v3879 = vunpack.c.l.bf16 %v3847
        %v3880 = vunpack.c.l.bf16 %v3848
        %v3881 = vunpack.c.l.bf16 %v3849
        %v3882 = vunpack.c.l.bf16 %v3850
        %v3883 = vunpack.c.l.bf16 %v3851
        %v3884 = vunpack.c.l.bf16 %v3852
        %v3885 = vunpack.c.l.bf16 %v3853
        %v3886 = vunpack.c.l.bf16 %v3854
        %v3887 = vadd.f32 %v3697, %v3855
        %v3888 = vadd.f32 %v3700, %v3856
        %v3889 = vadd.f32 %v3705, %v3857
        %v3890 = vadd.f32 %v3708, %v3858
        %v3891 = vadd.f32 %v3713, %v3859
        %v3892 = vadd.f32 %v3716, %v3860
        %v3893 = vadd.f32 %v3721, %v3861
        %v3894 = vadd.f32 %v3724, %v3862
        %v3895 = vadd.f32 %v3729, %v3863
        %v3896 = vadd.f32 %v3732, %v3864
        %v3897 = vadd.f32 %v3737, %v3865
        %v3898 = vadd.f32 %v3740, %v3866
        %v3899 = vadd.f32 %v3745, %v3867
        %v3900 = vadd.f32 %v3748, %v3868
        %v3901 = vadd.f32 %v3753, %v3869
        %v3902 = vadd.f32 %v3756, %v3870
        %v3903 = vadd.f32 %v3761, %v3871
        %v3904 = vadd.f32 %v3764, %v3872
        %v3905 = vadd.f32 %v3769, %v3873
        %v3906 = vadd.f32 %v3772, %v3874
        %v3907 = vadd.f32 %v3777, %v3875
        %v3908 = vadd.f32 %v3780, %v3876
        %v3909 = vadd.f32 %v3785, %v3877
        %v3910 = vadd.f32 %v3788, %v3878
        %v3911 = vadd.f32 %v3793, %v3879
        %v3912 = vadd.f32 %v3796, %v3880
        %v3913 = vadd.f32 %v3801, %v3881
        %v3914 = vadd.f32 %v3804, %v3882
        %v3915 = vadd.f32 %v3809, %v3883
        %v3916 = vadd.f32 %v3812, %v3884
        %v3917 = vadd.f32 %v3817, %v3885
        %v3918 = vadd.f32 %v3820, %v3886
        %v3919 = vmax.f32 %v3887, 0.0
        %v3920 = vmax.f32 %v3888, 0.0
        %v3921 = vmax.f32 %v3889, 0.0
        %v3922 = vmax.f32 %v3890, 0.0
        %v3923 = vmax.f32 %v3891, 0.0
        %v3924 = vmax.f32 %v3892, 0.0
        %v3925 = vmax.f32 %v3893, 0.0
        %v3926 = vmax.f32 %v3894, 0.0
        %v3927 = vmax.f32 %v3895, 0.0
        %v3928 = vmax.f32 %v3896, 0.0
        %v3929 = vmax.f32 %v3897, 0.0
        %v3930 = vmax.f32 %v3898, 0.0
        %v3931 = vmax.f32 %v3899, 0.0
        %v3932 = vmax.f32 %v3900, 0.0
        %v3933 = vmax.f32 %v3901, 0.0
        %v3934 = vmax.f32 %v3902, 0.0
        %v3935 = vmax.f32 %v3903, 0.0
        %v3936 = vmax.f32 %v3904, 0.0
        %v3937 = vmax.f32 %v3905, 0.0
        %v3938 = vmax.f32 %v3906, 0.0
        %v3939 = vmax.f32 %v3907, 0.0
        %v3940 = vmax.f32 %v3908, 0.0
        %v3941 = vmax.f32 %v3909, 0.0
        %v3942 = vmax.f32 %v3910, 0.0
        %v3943 = vmax.f32 %v3911, 0.0
        %v3944 = vmax.f32 %v3912, 0.0
        %v3945 = vmax.f32 %v3913, 0.0
        %v3946 = vmax.f32 %v3914, 0.0
        %v3947 = vmax.f32 %v3915, 0.0
        %v3948 = vmax.f32 %v3916, 0.0
        %v3949 = vmax.f32 %v3917, 0.0
        %v3950 = vmax.f32 %v3918, 0.0
        %v3951 = vpack.c.bf16 %v3920, %v3919
        %v3952 = vpack.c.bf16 %v3922, %v3921
        %v3953 = vpack.c.bf16 %v3924, %v3923
        %v3954 = vpack.c.bf16 %v3926, %v3925
        %v3955 = vpack.c.bf16 %v3928, %v3927
        %v3956 = vpack.c.bf16 %v3930, %v3929
        %v3957 = vpack.c.bf16 %v3932, %v3931
        %v3958 = vpack.c.bf16 %v3934, %v3933
        %v3959 = vpack.c.bf16 %v3936, %v3935
        %v3960 = vpack.c.bf16 %v3938, %v3937
        %v3961 = vpack.c.bf16 %v3940, %v3939
        %v3962 = vpack.c.bf16 %v3942, %v3941
        %v3963 = vpack.c.bf16 %v3944, %v3943
        %v3964 = vpack.c.bf16 %v3946, %v3945
        %v3965 = vpack.c.bf16 %v3948, %v3947
        %v3966 = vpack.c.bf16 %v3950, %v3949
        %v3983 = vunpack.c.l.b16 %v3951
        %v3984 = vunpack.c.h.b16 %v3951
        %v3985 = vunpack.c.l.b16 %v3952
        %v3986 = vunpack.c.h.b16 %v3952
        %v3987 = vunpack.c.l.b16 %v3953
        %v3988 = vunpack.c.h.b16 %v3953
        %v3989 = vunpack.c.l.b16 %v3954
        %v3990 = vunpack.c.h.b16 %v3954
        %v3991 = vunpack.c.l.b16 %v3955
        %v3992 = vunpack.c.h.b16 %v3955
        %v3993 = vunpack.c.l.b16 %v3956
        %v3994 = vunpack.c.h.b16 %v3956
        %v3995 = vunpack.c.l.b16 %v3957
        %v3996 = vunpack.c.h.b16 %v3957
        %v3997 = vunpack.c.l.b16 %v3958
        %v3998 = vunpack.c.h.b16 %v3958
        %v3999 = vunpack.c.l.b16 %v3959
        %v4000 = vunpack.c.h.b16 %v3959
        %v4001 = vunpack.c.l.b16 %v3960
        %v4002 = vunpack.c.h.b16 %v3960
        %v4003 = vunpack.c.l.b16 %v3961
        %v4004 = vunpack.c.h.b16 %v3961
        %v4005 = vunpack.c.l.b16 %v3962
        %v4006 = vunpack.c.h.b16 %v3962
        %v4007 = vunpack.c.l.b16 %v3963
        %v4008 = vunpack.c.h.b16 %v3963
        %v4009 = vunpack.c.l.b16 %v3964
        %v4010 = vunpack.c.h.b16 %v3964
        %v4011 = vunpack.c.l.b16 %v3965
        %v4012 = vunpack.c.h.b16 %v3965
        %v4013 = vunpack.c.l.b16 %v3966
        %v4014 = vunpack.c.h.b16 %v3966
        %v4015 = vpack.c.b16 %v3983, %v3983
        %v4016 = vpack.c.b16 %v3984, %v3984
        %v4017 = vpack.c.b16 %v3985, %v3985
        %v4018 = vpack.c.b16 %v3986, %v3986
        %v4019 = vpack.c.b16 %v3987, %v3987
        %v4020 = vpack.c.b16 %v3988, %v3988
        %v4021 = vpack.c.b16 %v3989, %v3989
        %v4022 = vpack.c.b16 %v3990, %v3990
        %v4023 = vpack.c.b16 %v3991, %v3991
        %v4024 = vpack.c.b16 %v3992, %v3992
        %v4025 = vpack.c.b16 %v3993, %v3993
        %v4026 = vpack.c.b16 %v3994, %v3994
        %v4027 = vpack.c.b16 %v3995, %v3995
        %v4028 = vpack.c.b16 %v3996, %v3996
        %v4029 = vpack.c.b16 %v3997, %v3997
        %v4030 = vpack.c.b16 %v3998, %v3998
        %v4031 = vpack.c.b16 %v3999, %v3999
        %v4032 = vpack.c.b16 %v4000, %v4000
        %v4033 = vpack.c.b16 %v4001, %v4001
        %v4034 = vpack.c.b16 %v4002, %v4002
        %v4035 = vpack.c.b16 %v4003, %v4003
        %v4036 = vpack.c.b16 %v4004, %v4004
        %v4037 = vpack.c.b16 %v4005, %v4005
        %v4038 = vpack.c.b16 %v4006, %v4006
        %v4039 = vpack.c.b16 %v4007, %v4007
        %v4040 = vpack.c.b16 %v4008, %v4008
        %v4041 = vpack.c.b16 %v4009, %v4009
        %v4042 = vpack.c.b16 %v4010, %v4010
        %v4043 = vpack.c.b16 %v4011, %v4011
        %v4044 = vpack.c.b16 %v4012, %v4012
        %v4045 = vpack.c.b16 %v4013, %v4013
        %v4046 = vpack.c.b16 %v4014, %v4014
        %4079 = vst [vmem:[%s410] sm:$0xf] %v4015
        %4080 = vst [vmem:[%s410 + $0x4] sm:$0xf] %v4016
        %4081 = vst [vmem:[%s410 + $0x8] sm:$0xf] %v4017
        %4082 = vst [vmem:[%s410 + $0xc] sm:$0xf] %v4018
        %4083 = vst [vmem:[%s410 + $0x10] sm:$0xf] %v4019
        %4084 = vst [vmem:[%s410 + $0x14] sm:$0xf] %v4020
        %4085 = vst [vmem:[%s410 + $0x18] sm:$0xf] %v4021
        %4086 = vst [vmem:[%s410 + $0x1c] sm:$0xf] %v4022
        %4087 = vst [vmem:[%s410 + $0x20] sm:$0xf] %v4023
        %4088 = vst [vmem:[%s410 + $0x24] sm:$0xf] %v4024
        %4089 = vst [vmem:[%s410 + $0x28] sm:$0xf] %v4025
        %4090 = vst [vmem:[%s410 + $0x2c] sm:$0xf] %v4026
        %4091 = vst [vmem:[%s410 + $0x30] sm:$0xf] %v4027
        %4092 = vst [vmem:[%s410 + $0x34] sm:$0xf] %v4028
        %4093 = vst [vmem:[%s410 + $0x38] sm:$0xf] %v4029
        %4094 = vst [vmem:[%s410 + $0x3c] sm:$0xf] %v4030
        %4095 = vst [vmem:[%s410 + $0x40] sm:$0xf] %v4031
        %4096 = vst [vmem:[%s410 + $0x44] sm:$0xf] %v4032
        %4097 = vst [vmem:[%s410 + $0x48] sm:$0xf] %v4033
        %4098 = vst [vmem:[%s410 + $0x4c] sm:$0xf] %v4034
        %4099 = vst [vmem:[%s410 + $0x50] sm:$0xf] %v4035
        %4100 = vst [vmem:[%s410 + $0x54] sm:$0xf] %v4036
        %4101 = vst [vmem:[%s410 + $0x58] sm:$0xf] %v4037
        %4102 = vst [vmem:[%s410 + $0x5c] sm:$0xf] %v4038
        %4103 = vst [vmem:[%s410 + $0x60] sm:$0xf] %v4039
        %4104 = vst [vmem:[%s410 + $0x64] sm:$0xf] %v4040
        %4105 = vst [vmem:[%s410 + $0x68] sm:$0xf] %v4041
        %4106 = vst [vmem:[%s410 + $0x6c] sm:$0xf] %v4042
        %4107 = vst [vmem:[%s410 + $0x70] sm:$0xf] %v4043
        %4108 = vst [vmem:[%s410 + $0x74] sm:$0xf] %v4044
        %4109 = vst [vmem:[%s410 + $0x78] sm:$0xf] %v4045
        %4110 = vst [vmem:[%s410 + $0x7c] sm:$0xf] %v4046
        %s4111 = sand.u32 %s231, 1
        %s4112 = scalar_lea.sflag [#allocation5], %s4111
        %s4113 = sand.u32 %s231, 1
        %s4114 = smul.addr %s4113, 128
        %s4115 = scalar_lea.vmem [#allocation11], %s4114
        // Predicated region
        $region73: #{bottleneck_forward_padded.1} parent=51 // pred_check
          %p4116 = pneg %p241
        $region74: #{bottleneck_forward_padded.1} parent=51 // pred_check_branch
          %4118 = sbr.rel (%p4116) target = $region76
        $region75: #{bottleneck_forward_padded.1} parent=51 // pred_region
          %s4119 = smul.u32 32, %s32
          %s4121 = ssub.s32 2048, 2048
          %4122 = vsyncadd %s4112, %s4121
          %s4123 = smul.addr %s31, 32
          %s4124 = sadd.s32 %s4119, %s4123
          %s4125 = smul.addr %s4124, 64
          %s4126 = scalar_lea.hbm %s8, %s4125
          %s4127 = sshll.u32 %s4115, 4
          %s4128 = int_to_ptr.vmem [resolvable:$true] %s4127
          %4133 = dma.vmem_to_hbm [thread:$0]  %s4128, 2048, %s4126, %s4112, 64, 64, 4
        $region76: #{bottleneck_forward_padded.1} parent=51 // pred_fallthru
          _
      $region52: #{bottleneck_forward_padded.1} parent=5 // pred_fallthru
        _
      %p4134 = scmp.le.s32.totalorder 2, %s22
      // Predicated region
      $region77: #{bottleneck_forward_padded.1} parent=5 // pred_check
        %p4135 = pneg %p4134
      $region78: #{bottleneck_forward_padded.1} parent=5 // pred_check_branch
        %4137 = sbr.rel (%p4135) target = $region80
      $region79: #{bottleneck_forward_padded.1} parent=5 // pred_region
        %s4138 = ssub.s32 %s22, 2
        // Predicated region
        $region81: #{bottleneck_forward_padded.1} parent=79 // pred_check
          %p4139 = pneg %p247
        $region82: #{bottleneck_forward_padded.1} parent=79 // pred_check_branch
          %4141 = sbr.rel (%p4139) target = $region84
        $region83: #{bottleneck_forward_padded.1} parent=79 // pred_region
          %s4142 = sand.u32 %s232, 1
          %s4143 = scalar_lea.sflag [#allocation5], %s4142
          %s4144 = sand.u32 %s232, 1
          %s4145 = smul.addr %s4144, 128
          %s4146 = scalar_lea.vmem [#allocation11], %s4145
          %4147 = dma.done %s4143, 2048
        $region84: #{bottleneck_forward_padded.1} parent=79 // pred_fallthru
          _
      $region80: #{bottleneck_forward_padded.1} parent=5 // pred_fallthru
        _
    $region6: #{bottleneck_forward_padded.1} parent=1 // loop_footer
      %s26 = sadd.s32 1, %s22
    $region7: #{bottleneck_forward_padded.1} parent=1 // loop_footer_branch
      %21 = sbr.rel target = $region3
    $region8: #{bottleneck_forward_padded.1} parent=1 // loop_exit
      _
    %4148 = vsyncpa [#allocation4], 1
    %s4149 = scalar_lea.sflag [#allocation4], 1
    %4150 = vsyncpa %s4149, 1
    %4151 = vsyncpa [#allocation7], 1
    %4152 = vsyncpa [#allocation10], 1
    %4153 = vsyncpa [#allocation5], 1
    %s4154 = scalar_lea.sflag [#allocation5], 1
    %4155 = vsyncpa %s4154, 1

</llo_original>
